<compile_context>
chip_gen: v6e
topology: v6e:2x2x1
jax: 0.10.0
libtpu: 0.0.40
codegen_flags: <defaults>
</compile_context>

<pallas_src>
import functools
import math

import jax
import jax.numpy as jnp
import numpy as np
from jax.experimental import pallas as pl
from jax.experimental.pallas import tpu as pltpu


_VMEM_LIMIT = 48 * 1024 * 1024      # > 32 MiB scoped default, safe on v7x (64 MiB)
_ATTN_BLOCK_BUDGET = 16 * 1024 * 1024


def _pick_tile(size, target, align):
    """Largest tile <= target that divides `size` and is a multiple of `align`
    (falls back to the full extent if no aligned divisor exists)."""
    if size <= target:
        return size
    t = (target // align) * align
    while t >= align:
        if size % t == 0:
            return t
        t -= align
    return size


# ---------------------------------------------------------------------------
# Linear projection kernels (tiled, pipelined)
# ---------------------------------------------------------------------------
def _linear_bias_kernel(x_ref, w_ref, b_ref, o_ref):
    acc = jnp.dot(x_ref[...], w_ref[...], preferred_element_type=jnp.float32)
    o_ref[...] = (acc + b_ref[...].astype(jnp.float32)).astype(o_ref.dtype)


def _linear_nobias_kernel(x_ref, w_ref, o_ref):
    acc = jnp.dot(x_ref[...], w_ref[...], preferred_element_type=jnp.float32)
    o_ref[...] = acc.astype(o_ref.dtype)


def _linear(x2d, w, b=None, *, tm=512, tn=512):
    """y = x @ w (+ b). Tiled over rows (M) and output features (N); K (din) is
    small for this module so it is kept as one block (no accumulator needed)."""
    n, din = x2d.shape
    dout = w.shape[1]
    TM = _pick_tile(n, tm, 8)
    TN = _pick_tile(dout, tn, 128)
    grid = (n // TM, dout // TN)

    in_specs = [
        pl.BlockSpec((TM, din), lambda i, j: (i, 0)),
        pl.BlockSpec((din, TN), lambda i, j: (0, j)),
    ]
    operands = [x2d, w]
    if b is not None:
        in_specs.append(pl.BlockSpec((1, TN), lambda i, j: (0, j)))
        operands.append(b)
        kernel = _linear_bias_kernel
    else:
        kernel = _linear_nobias_kernel

    return pl.pallas_call(
        kernel,
        out_shape=jax.ShapeDtypeStruct((n, dout), x2d.dtype),
        grid=grid,
        in_specs=in_specs,
        out_specs=pl.BlockSpec((TM, TN), lambda i, j: (i, j)),
        compiler_params=pltpu.CompilerParams(
            dimension_semantics=("parallel", "parallel"),
            vmem_limit_bytes=_VMEM_LIMIT,
        ),
    )(*operands)


# ---------------------------------------------------------------------------
# Windowed attention kernel (WB windows per grid step, all heads per block)
# ---------------------------------------------------------------------------
def _window_attn_kernel(q_ref, k_ref, v_ref, bias_ref, o_ref, *, heads, scale):
    # q/k/v refs: (heads, WB, win, head_dim);  bias: (win, win);  out: (WB, win, inner)
    bias = bias_ref[...][None, :, :]                       # broadcast over windows
    outs = []
    for h in range(heads):                                 # unrolled; heads is small
        qh = q_ref[h] * scale                              # scale the smaller operand
        s = jnp.einsum("bid,bjd->bij", qh, k_ref[h],
                       preferred_element_type=jnp.float32)
        s = s + bias
        m = jnp.max(s, axis=-1, keepdims=True)
        e = jnp.exp(s - m)
        l = jnp.sum(e, axis=-1, keepdims=True)
        attn = e * pl.reciprocal(l, approx=True)           # EUP reciprocal, not VPU div
        oh = jnp.einsum("bij,bjd->bid", attn.astype(v_ref.dtype), v_ref[h],
                        preferred_element_type=jnp.float32)
        outs.append(oh)
    # pack heads along channels -> lane-dense (WB, win, heads*head_dim) writeback
    out = outs[0] if heads == 1 else jnp.concatenate(outs, axis=-1)
    o_ref[...] = out.astype(o_ref.dtype)


def _pick_window_batch(total, heads, win, head_dim, itemsize,
                       budget=_ATTN_BLOCK_BUDGET, cap=512):
    inner = heads * head_dim
    per_window = (3 * heads * win * head_dim + win * inner) * itemsize
    per_window *= 2  # double-buffered in/out blocks
    max_wb = int(max(1, min(cap, budget // max(per_window, 1), total)))
    wb = max_wb
    while total % wb != 0:
        wb -= 1
    return wb


# ---------------------------------------------------------------------------
# Parameters
# ---------------------------------------------------------------------------
def init_window_attention_params(key, dim, heads, head_dim, window_size):
    inner = heads * head_dim
    w_h, w_w, w_d = window_size

    # relative indices (same construction as get_relative_distances + shift)
    idx = np.array(
        [[x, y, z] for x in range(w_h) for y in range(w_w) for z in range(w_d)],
        dtype=np.int32,
    )
    rel = idx[None, :, :] - idx[:, None, :]
    rel = rel - rel.min()
    max_idx = int(rel.max())

    k0, k1, k2, k3 = jax.random.split(key, 4)
    pos_embedding = jax.random.normal(
        k3, (max_idx + 1, max_idx + 1, max_idx + 1), jnp.float32
    )
    # precompute the static (win, win) relative-position bias once
    rel_j = jnp.asarray(rel, jnp.int32)
    rel_bias = pos_embedding[rel_j[:, :, 0], rel_j[:, :, 1], rel_j[:, :, 2]]

    params = {
        # to_qkv: Linear(dim -> 3*inner), no bias.  Stored as (dim, 3*inner).
        "w_qkv": jax.random.normal(k0, (dim, inner * 3), jnp.float32) * 0.02,
        # to_out: Linear(inner -> dim) with bias.
        "w_out": jax.random.normal(k1, (inner, dim), jnp.float32) * 0.02,
        "b_out": jax.random.normal(k2, (1, dim), jnp.float32) * 0.02,
        "pos_embedding": pos_embedding,
        "rel_bias": rel_bias.astype(jnp.float32),
    }
    return params


# ---------------------------------------------------------------------------
# Forward pass
# ---------------------------------------------------------------------------
def window_attention(x, params, *, heads, head_dim, window_size):
    b, n_h, n_w, n_d, dim = x.shape
    w_h, w_w, w_d = window_size
    nw_h, nw_w, nw_d = n_h // w_h, n_w // w_w, n_d // w_d
    nw = nw_h * nw_w * nw_d
    win = w_h * w_w * w_d
    inner = heads * head_dim
    scale = float(head_dim) ** -0.5

    # --- QKV projection (tiled Pallas matmul, no bias) ---
    x2d = x.reshape(-1, dim)
    qkv = _linear(x2d, params["w_qkv"])
    qkv = qkv.reshape(b, n_h, n_w, n_d, 3 * inner)
    q, k, v = jnp.split(qkv, 3, axis=-1)

    # --- window partition: -> (heads, b*nw, win, head_dim) ---
    # TODO(synk): express this window gather via BlockSpec index_maps (or fuse the
    # whole qkv -> attention -> out chain) to remove the extra HBM round trips.
    def to_windows(t):
        t = t.reshape(b, nw_h, w_h, nw_w, w_w, nw_d, w_d, heads, head_dim)
        t = t.transpose(7, 0, 1, 3, 5, 2, 4, 6, 8)
        return t.reshape(heads, b * nw, win, head_dim)

    qw, kw, vw = map(to_windows, (q, k, v))
    total = b * nw

    WB = _pick_window_batch(total, heads, win, head_dim, x.dtype.itemsize)
    grid = (total // WB,)

    attn_out = pl.pallas_call(
        functools.partial(_window_attn_kernel, heads=heads, scale=scale),
        out_shape=jax.ShapeDtypeStruct((total, win, inner), x.dtype),
        grid=grid,
        in_specs=[
            pl.BlockSpec((heads, WB, win, head_dim), lambda i: (0, i, 0, 0)),
            pl.BlockSpec((heads, WB, win, head_dim), lambda i: (0, i, 0, 0)),
            pl.BlockSpec((heads, WB, win, head_dim), lambda i: (0, i, 0, 0)),
            pl.BlockSpec((win, win), lambda i: (0, 0)),   # bias stays VMEM-resident
        ],
        out_specs=pl.BlockSpec((WB, win, inner), lambda i: (i, 0, 0)),
        compiler_params=pltpu.CompilerParams(
            dimension_semantics=("parallel",),
            vmem_limit_bytes=_VMEM_LIMIT,
        ),
    )(qw, kw, vw, params["rel_bias"])

    # --- window merge: (b*nw, win, inner) -> (b, n_h, n_w, n_d, inner) ---
    out = attn_out.reshape(b, nw_h, nw_w, nw_d, w_h, w_w, w_d, inner)
    out = out.transpose(0, 1, 4, 2, 5, 3, 6, 7)
    out = out.reshape(b, n_h, n_w, n_d, inner)

    # --- output projection (tiled Pallas matmul + bias) ---
    out2d = _linear(out.reshape(-1, inner), params["w_out"], params["b_out"])
    return out2d.reshape(b, n_h, n_w, n_d, dim)


# ---------------------------------------------------------------------------
if __name__ == "__main__":
    key = jax.random.PRNGKey(0)
    k_param, k_x = jax.random.split(key)

    dim = 16
    heads = 2
    head_dim = 8
    window_size = (2, 2, 2)
    b, n_h, n_w, n_d = 2, 4, 4, 4   # 2x2x2 = 8 windows of 8 tokens each

    params = init_window_attention_params(k_param, dim, heads, head_dim, window_size)
    x = jax.random.normal(k_x, (b, n_h, n_w, n_d, dim), jnp.float32)

    fwd = jax.jit(functools.partial(
        window_attention, heads=heads, head_dim=head_dim, window_size=window_size))
    out = fwd(x, params)
    jax.block_until_ready(out)
    assert out.shape == (b, n_h, n_w, n_d, dim)
    print("KERNEL_OK")
</pallas_src>

<mosaic_0001>
module attributes {stable_mosaic.version = 11 : i64} {
  func.func @_linear_nobias_kernel(%arg0: i32, %arg1: i32, %arg2: memref<128x16xf32, #tpu.memory_space<vmem>>, %arg3: memref<16x48xf32, #tpu.memory_space<vmem>>, %arg4: memref<128x48xf32, #tpu.memory_space<vmem>>) attributes {dimension_semantics = [#tpu.dimension_semantics<parallel>, #tpu.dimension_semantics<parallel>], iteration_bounds = array<i64: 1, 1>, scalar_prefetch = 0 : i64, scratch_operands = 0 : i64, tpu.core_type = #tpu.core_type<tc>, window_params = [{transform_indices = @transform_0, window_bounds = array<i64: 128, 16>}, {transform_indices = @transform_1, window_bounds = array<i64: 16, 48>}, {transform_indices = @transform_2, window_bounds = array<i64: 128, 48>}]} {
    %c0 = arith.constant 0 : index
    %c0_0 = arith.constant 0 : index
    %0 = vector.load %arg2[%c0, %c0_0] : memref<128x16xf32, #tpu.memory_space<vmem>>, vector<128x16xf32>
    %c0_1 = arith.constant 0 : index
    %c0_2 = arith.constant 0 : index
    %1 = vector.load %arg3[%c0_1, %c0_2] : memref<16x48xf32, #tpu.memory_space<vmem>>, vector<16x48xf32>
    %cst = arith.constant dense<0.000000e+00> : vector<128x48xf32>
    %2 = tpu.matmul %0, %1, %cst {dimension_numbers = #tpu.dot_dimension_numbers<[1], [0], [0], [1], [0, 0, 1, 1], [], []>} : vector<128x16xf32>, vector<16x48xf32>, vector<128x48xf32> -> vector<128x48xf32>
    %c0_3 = arith.constant 0 : index
    %c0_4 = arith.constant 0 : index
    %3 = vector.load %arg4[%c0_3, %c0_4] : memref<128x48xf32, #tpu.memory_space<vmem>>, vector<128x48xf32>
    tpu.vector_store %arg4[%c0_3, %c0_4], %2 {strides = array<i32>} : memref<128x48xf32, #tpu.memory_space<vmem>>, vector<128x48xf32>,
    return
  }
  func.func @transform_0(%arg0: i32, %arg1: i32) -> (i32, i32) {
    %c0_i32 = arith.constant 0 : i32
    %c0_i32_0 = arith.constant 0 : i32
    return %arg0, %c0_i32 : i32, i32
  }
  func.func @transform_1(%arg0: i32, %arg1: i32) -> (i32, i32) {
    %c0_i32 = arith.constant 0 : i32
    %c0_i32_0 = arith.constant 0 : i32
    return %c0_i32, %arg1 : i32, i32
  }
  func.func @transform_2(%arg0: i32, %arg1: i32) -> (i32, i32) {
    %c0_i32 = arith.constant 0 : i32
    return %arg0, %arg1 : i32, i32
  }
}

module attributes {stable_mosaic.version = 11 : i64} {
  func.func @_linear_bias_kernel(%arg0: i32, %arg1: i32, %arg2: memref<128x16xf32, #tpu.memory_space<vmem>>, %arg3: memref<16x16xf32, #tpu.memory_space<vmem>>, %arg4: memref<1x16xf32, #tpu.memory_space<vmem>>, %arg5: memref<128x16xf32, #tpu.memory_space<vmem>>) attributes {dimension_semantics = [#tpu.dimension_semantics<parallel>, #tpu.dimension_semantics<parallel>], iteration_bounds = array<i64: 1, 1>, scalar_prefetch = 0 : i64, scratch_operands = 0 : i64, tpu.core_type = #tpu.core_type<tc>, window_params = [{transform_indices = @transform_0, window_bounds = array<i64: 128, 16>}, {transform_indices = @transform_1, window_bounds = array<i64: 16, 16>}, {transform_indices = @transform_2, window_bounds = array<i64: 1, 16>}, {transform_indices = @transform_3, window_bounds = array<i64: 128, 16>}]} {
    %c0 = arith.constant 0 : index
    %c0_0 = arith.constant 0 : index
    %0 = vector.load %arg2[%c0, %c0_0] : memref<128x16xf32, #tpu.memory_space<vmem>>, vector<128x16xf32>
    %c0_1 = arith.constant 0 : index
    %c0_2 = arith.constant 0 : index
    %1 = vector.load %arg3[%c0_1, %c0_2] : memref<16x16xf32, #tpu.memory_space<vmem>>, vector<16x16xf32>
    %cst = arith.constant dense<0.000000e+00> : vector<128x16xf32>
    %2 = tpu.matmul %0, %1, %cst {dimension_numbers = #tpu.dot_dimension_numbers<[1], [0], [0], [1], [0, 0, 1, 1], [], []>} : vector<128x16xf32>, vector<16x16xf32>, vector<128x16xf32> -> vector<128x16xf32>
    %c0_3 = arith.constant 0 : index
    %c0_4 = arith.constant 0 : index
    %3 = vector.load %arg4[%c0_3, %c0_4] : memref<1x16xf32, #tpu.memory_space<vmem>>, vector<1x16xf32>
    %4 = vector.broadcast %3 : vector<1x16xf32> to vector<128x16xf32>
    %5 = arith.addf %2, %4 : vector<128x16xf32>
    %c0_5 = arith.constant 0 : index
    %c0_6 = arith.constant 0 : index
    %6 = vector.load %arg5[%c0_5, %c0_6] : memref<128x16xf32, #tpu.memory_space<vmem>>, vector<128x16xf32>
    tpu.vector_store %arg5[%c0_5, %c0_6], %5 {strides = array<i32>} : memref<128x16xf32, #tpu.memory_space<vmem>>, vector<128x16xf32>,
    return
  }
  func.func @transform_0(%arg0: i32, %arg1: i32) -> (i32, i32) {
    %c0_i32 = arith.constant 0 : i32
    %c0_i32_0 = arith.constant 0 : i32
    return %arg0, %c0_i32 : i32, i32
  }
  func.func @transform_1(%arg0: i32, %arg1: i32) -> (i32, i32) {
    %c0_i32 = arith.constant 0 : i32
    %c0_i32_0 = arith.constant 0 : i32
    return %c0_i32, %arg1 : i32, i32
  }
  func.func @transform_2(%arg0: i32, %arg1: i32) -> (i32, i32) {
    %c0_i32 = arith.constant 0 : i32
    %c0_i32_0 = arith.constant 0 : i32
    return %c0_i32, %arg1 : i32, i32
  }
  func.func @transform_3(%arg0: i32, %arg1: i32) -> (i32, i32) {
    %c0_i32 = arith.constant 0 : i32
    return %arg0, %arg1 : i32, i32
  }
}

module attributes {stable_mosaic.version = 11 : i64} {
  func.func @_window_attn_kernel(%arg0: i32, %arg1: memref<2x16x8x8xf32, #tpu.memory_space<vmem>>, %arg2: memref<2x16x8x8xf32, #tpu.memory_space<vmem>>, %arg3: memref<2x16x8x8xf32, #tpu.memory_space<vmem>>, %arg4: memref<8x8xf32, #tpu.memory_space<vmem>>, %arg5: memref<16x8x16xf32, #tpu.memory_space<vmem>>) attributes {dimension_semantics = [#tpu.dimension_semantics<parallel>], iteration_bounds = array<i64: 1>, scalar_prefetch = 0 : i64, scratch_operands = 0 : i64, tpu.core_type = #tpu.core_type<tc>, window_params = [{transform_indices = @transform_0, window_bounds = array<i64: 2, 16, 8, 8>}, {transform_indices = @transform_1, window_bounds = array<i64: 2, 16, 8, 8>}, {transform_indices = @transform_2, window_bounds = array<i64: 2, 16, 8, 8>}, {pipeline_mode = #tpu.pipeline_mode<synchronous>, transform_indices = @transform_3, window_bounds = array<i64: 8, 8>}, {transform_indices = @transform_4, window_bounds = array<i64: 16, 8, 16>}]} {
    %c0 = arith.constant 0 : index
    %c0_0 = arith.constant 0 : index
    %0 = vector.load %arg4[%c0, %c0_0] : memref<8x8xf32, #tpu.memory_space<vmem>>, vector<8x8xf32>
    %1 = vector.shape_cast %0 : vector<8x8xf32> to vector<1x8x8xf32>
    %c0_1 = arith.constant 0 : index
    %c0_2 = arith.constant 0 : index
    %c0_3 = arith.constant 0 : index
    %c0_4 = arith.constant 0 : index
    %2 = vector.load %arg1[%c0_1, %c0_2, %c0_3, %c0_4] : memref<2x16x8x8xf32, #tpu.memory_space<vmem>>, vector<1x16x8x8xf32>
    %3 = vector.shape_cast %2 : vector<1x16x8x8xf32> to vector<16x8x8xf32>
    %cst = arith.constant 0.353553385 : f32
    %4 = vector.broadcast %cst : f32 to vector<16x8x8xf32>
    %5 = arith.mulf %3, %4 : vector<16x8x8xf32>
    %c0_5 = arith.constant 0 : index
    %c0_6 = arith.constant 0 : index
    %c0_7 = arith.constant 0 : index
    %c0_8 = arith.constant 0 : index
    %6 = vector.load %arg2[%c0_5, %c0_6, %c0_7, %c0_8] : memref<2x16x8x8xf32, #tpu.memory_space<vmem>>, vector<1x16x8x8xf32>
    %7 = vector.shape_cast %6 : vector<1x16x8x8xf32> to vector<16x8x8xf32>
    "tpu.trace_start"() <{level = 10 : i32, message = "bid,bjd->bij"}> : () -> ()
    %cst_9 = arith.constant dense<0.000000e+00> : vector<16x8x8xf32>
    %8 = tpu.matmul %5, %7, %cst_9 {dimension_numbers = #tpu.dot_dimension_numbers<[2], [2], [1], [1], [0, 0, 0, 1, 1, 1], [0], [0]>} : vector<16x8x8xf32>, vector<16x8x8xf32>, vector<16x8x8xf32> -> vector<16x8x8xf32>
    "tpu.trace_stop"() : () -> ()
    %9 = vector.broadcast %1 : vector<1x8x8xf32> to vector<16x8x8xf32>
    %10 = arith.addf %8, %9 : vector<16x8x8xf32>
    %cst_10 = arith.constant dense<0xFF800000> : vector<16x8xf32>
    %11 = vector.multi_reduction <maximumf>, %10, %cst_10 [2] : vector<16x8x8xf32> to vector<16x8xf32>
    %12 = vector.shape_cast %11 : vector<16x8xf32> to vector<16x8x1xf32>
    %13 = vector.broadcast %12 : vector<16x8x1xf32> to vector<16x8x8xf32>
    %14 = arith.subf %10, %13 : vector<16x8x8xf32>
    %15 = math.exp %14 : vector<16x8x8xf32>
    %cst_11 = arith.constant dense<0.000000e+00> : vector<16x8xf32>
    %16 = vector.multi_reduction <add>, %15, %cst_11 [2] : vector<16x8x8xf32> to vector<16x8xf32>
    %17 = vector.shape_cast %16 : vector<16x8xf32> to vector<16x8x1xf32>
    %18 = tpu.reciprocal %17 {approx = true} : vector<16x8x1xf32> -> vector<16x8x1xf32>
    %19 = vector.broadcast %18 : vector<16x8x1xf32> to vector<16x8x8xf32>
    %20 = arith.mulf %15, %19 : vector<16x8x8xf32>
    %c0_12 = arith.constant 0 : index
    %c0_13 = arith.constant 0 : index
    %c0_14 = arith.constant 0 : index
    %c0_15 = arith.constant 0 : index
    %21 = vector.load %arg3[%c0_12, %c0_13, %c0_14, %c0_15] : memref<2x16x8x8xf32, #tpu.memory_space<vmem>>, vector<1x16x8x8xf32>
    %22 = vector.shape_cast %21 : vector<1x16x8x8xf32> to vector<16x8x8xf32>
    "tpu.trace_start"() <{level = 10 : i32, message = "bij,bjd->bid"}> : () -> ()
    %cst_16 = arith.constant dense<0.000000e+00> : vector<16x8x8xf32>
    %23 = tpu.matmul %20, %22, %cst_16 {dimension_numbers = #tpu.dot_dimension_numbers<[2], [1], [1], [2], [0, 0, 0, 1, 1, 2], [0], [0]>} : vector<16x8x8xf32>, vector<16x8x8xf32>, vector<16x8x8xf32> -> vector<16x8x8xf32>
    "tpu.trace_stop"() : () -> ()
    %c1 = arith.constant 1 : index
    %c0_17 = arith.constant 0 : index
    %c0_18 = arith.constant 0 : index
    %c0_19 = arith.constant 0 : index
    %24 = vector.load %arg1[%c1, %c0_17, %c0_18, %c0_19] : memref<2x16x8x8xf32, #tpu.memory_space<vmem>>, vector<1x16x8x8xf32>
    %25 = vector.shape_cast %24 : vector<1x16x8x8xf32> to vector<16x8x8xf32>
    %cst_20 = arith.constant 0.353553385 : f32
    %26 = vector.broadcast %cst_20 : f32 to vector<16x8x8xf32>
    %27 = arith.mulf %25, %26 : vector<16x8x8xf32>
    %c1_21 = arith.constant 1 : index
    %c0_22 = arith.constant 0 : index
    %c0_23 = arith.constant 0 : index
    %c0_24 = arith.constant 0 : index
    %28 = vector.load %arg2[%c1_21, %c0_22, %c0_23, %c0_24] : memref<2x16x8x8xf32, #tpu.memory_space<vmem>>, vector<1x16x8x8xf32>
    %29 = vector.shape_cast %28 : vector<1x16x8x8xf32> to vector<16x8x8xf32>
    "tpu.trace_start"() <{level = 10 : i32, message = "bid,bjd->bij"}> : () -> ()
    %cst_25 = arith.constant dense<0.000000e+00> : vector<16x8x8xf32>
    %30 = tpu.matmul %27, %29, %cst_25 {dimension_numbers = #tpu.dot_dimension_numbers<[2], [2], [1], [1], [0, 0, 0, 1, 1, 1], [0], [0]>} : vector<16x8x8xf32>, vector<16x8x8xf32>, vector<16x8x8xf32> -> vector<16x8x8xf32>
    "tpu.trace_stop"() : () -> ()
    %31 = vector.broadcast %1 : vector<1x8x8xf32> to vector<16x8x8xf32>
    %32 = arith.addf %30, %31 : vector<16x8x8xf32>
    %cst_26 = arith.constant dense<0xFF800000> : vector<16x8xf32>
    %33 = vector.multi_reduction <maximumf>, %32, %cst_26 [2] : vector<16x8x8xf32> to vector<16x8xf32>
    %34 = vector.shape_cast %33 : vector<16x8xf32> to vector<16x8x1xf32>
    %35 = vector.broadcast %34 : vector<16x8x1xf32> to vector<16x8x8xf32>
    %36 = arith.subf %32, %35 : vector<16x8x8xf32>
    %37 = math.exp %36 : vector<16x8x8xf32>
    %cst_27 = arith.constant dense<0.000000e+00> : vector<16x8xf32>
    %38 = vector.multi_reduction <add>, %37, %cst_27 [2] : vector<16x8x8xf32> to vector<16x8xf32>
    %39 = vector.shape_cast %38 : vector<16x8xf32> to vector<16x8x1xf32>
    %40 = tpu.reciprocal %39 {approx = true} : vector<16x8x1xf32> -> vector<16x8x1xf32>
    %41 = vector.broadcast %40 : vector<16x8x1xf32> to vector<16x8x8xf32>
    %42 = arith.mulf %37, %41 : vector<16x8x8xf32>
    %c1_28 = arith.constant 1 : index
    %c0_29 = arith.constant 0 : index
    %c0_30 = arith.constant 0 : index
    %c0_31 = arith.constant 0 : index
    %43 = vector.load %arg3[%c1_28, %c0_29, %c0_30, %c0_31] : memref<2x16x8x8xf32, #tpu.memory_space<vmem>>, vector<1x16x8x8xf32>
    %44 = vector.shape_cast %43 : vector<1x16x8x8xf32> to vector<16x8x8xf32>
    "tpu.trace_start"() <{level = 10 : i32, message = "bij,bjd->bid"}> : () -> ()
    %cst_32 = arith.constant dense<0.000000e+00> : vector<16x8x8xf32>
    %45 = tpu.matmul %42, %44, %cst_32 {dimension_numbers = #tpu.dot_dimension_numbers<[2], [1], [1], [2], [0, 0, 0, 1, 1, 2], [0], [0]>} : vector<16x8x8xf32>, vector<16x8x8xf32>, vector<16x8x8xf32> -> vector<16x8x8xf32>
    "tpu.trace_stop"() : () -> ()
    %46 = tpu.concatenate %23, %45 in 2 : vector<16x8x8xf32>, vector<16x8x8xf32> -> vector<16x8x16xf32>
    %c0_33 = arith.constant 0 : index
    %c0_34 = arith.constant 0 : index
    %c0_35 = arith.constant 0 : index
    %47 = vector.load %arg5[%c0_33, %c0_34, %c0_35] : memref<16x8x16xf32, #tpu.memory_space<vmem>>, vector<16x8x16xf32>
    tpu.vector_store %arg5[%c0_33, %c0_34, %c0_35], %46 {strides = array<i32>} : memref<16x8x16xf32, #tpu.memory_space<vmem>>, vector<16x8x16xf32>,
    return
  }
  func.func @transform_0(%arg0: i32) -> (i32, i32, i32, i32) {
    %c0_i32 = arith.constant 0 : i32
    %c0_i32_0 = arith.constant 0 : i32
    %c0_i32_1 = arith.constant 0 : i32
    %c0_i32_2 = arith.constant 0 : i32
    return %c0_i32, %arg0, %c0_i32_0, %c0_i32_1 : i32, i32, i32, i32
  }
  func.func @transform_1(%arg0: i32) -> (i32, i32, i32, i32) {
    %c0_i32 = arith.constant 0 : i32
    %c0_i32_0 = arith.constant 0 : i32
    %c0_i32_1 = arith.constant 0 : i32
    %c0_i32_2 = arith.constant 0 : i32
    return %c0_i32, %arg0, %c0_i32_0, %c0_i32_1 : i32, i32, i32, i32
  }
  func.func @transform_2(%arg0: i32) -> (i32, i32, i32, i32) {
    %c0_i32 = arith.constant 0 : i32
    %c0_i32_0 = arith.constant 0 : i32
    %c0_i32_1 = arith.constant 0 : i32
    %c0_i32_2 = arith.constant 0 : i32
    return %c0_i32, %arg0, %c0_i32_0, %c0_i32_1 : i32, i32, i32, i32
  }
  func.func @transform_3(%arg0: i32) -> (i32, i32) {
    %c0_i32 = arith.constant 0 : i32
    %c0_i32_0 = arith.constant 0 : i32
    %c0_i32_1 = arith.constant 0 : i32
    return %c0_i32, %c0_i32_0 : i32, i32
  }
  func.func @transform_4(%arg0: i32) -> (i32, i32, i32) {
    %c0_i32 = arith.constant 0 : i32
    %c0_i32_0 = arith.constant 0 : i32
    %c0_i32_1 = arith.constant 0 : i32
    return %arg0, %c0_i32, %c0_i32_0 : i32, i32, i32
  }
}

</mosaic_0001>

<llo_original>
// kernel: window_attention.3
$region0: #{window_attention.3}
  #allocation0 [shape = 'u32[]', space=smem, size = 0x4, offset = 0x4, fixed_abs, tag = 'smem constant byte address 0x4 - core index']
  #allocation1 [shape = 'u32[144,128]{1,0:T(1,128)}', space=vmem, size = 0x12000, scoped, tag = 'internal scratch']
  %s0 = inlined_call_operand.hbm [shape: f32[128,16], index: 0, kind: input, shape index: {}]
  %s1 = inlined_call_operand.hbm [shape: f32[16,48], index: 1, kind: input, shape index: {}]
  %s2 = inlined_call_operand.vmem [shape: f32[128,48], index: 2, kind: output, shape index: {}]
  %s3 = sld [smem:[#allocation0]]
  $region26: #{window_attention.3} parent=0
    _
  %s5 = ssub.s32 1, %s3
  %s6 = scalar_select 0, %s5, %s3
  $region1: #{window_attention.3} parent=0
    #allocation2 [shape = 'u8[65536]{0}', space=vmem, size = 0x10000, scoped, tag = 'input window, operand 0, single buffered']
    #allocation3 [shape = 's32[1]{0}', space=sflag, size = 0x4, scoped, tag = 'scoped memory for window_attention.3']
    #allocation4 [shape = 'u8[8192]{0}', space=vmem, size = 0x2000, scoped, tag = 'input window, operand 1, single buffered']
    #allocation5 [shape = 's32[1]{0}', space=sflag, size = 0x4, scoped, tag = 'scoped memory for window_attention.3']
    %7 = vsyncpa [#allocation3], 0
    %8 = vsyncpa [#allocation5], 0
    // Predicated region
    $region2: #{window_attention.3} parent=1 // pred_check
      _
    $region3: #{window_attention.3} parent=1 // pred_check_branch
      %10 = sbr.rel (0) target = $region5
    $region4: #{window_attention.3} parent=1 // pred_region
      %s12 = ssub.s32 2048, 2048
      %13 = vsyncadd [#allocation3], %s12
      %s14 = sshll.u32 [#allocation2], 4
      %s15 = int_to_ptr.vmem [resolvable:$true] %s14
      %20 = dma.hbm_to_vmem [thread:$0]  %s0, 2048, %s15, [#allocation3], 128, 128, 8
    $region5: #{window_attention.3} parent=1 // pred_fallthru
      _
    // Predicated region
    $region6: #{window_attention.3} parent=1 // pred_check
      _
    $region7: #{window_attention.3} parent=1 // pred_check_branch
      %22 = sbr.rel (0) target = $region9
    $region8: #{window_attention.3} parent=1 // pred_region
      %s24 = ssub.s32 256, 256
      %25 = vsyncadd [#allocation5], %s24
      %s26 = sshll.u32 [#allocation4], 4
      %s27 = int_to_ptr.vmem [resolvable:$true] %s26
      %32 = dma.hbm_to_vmem [thread:$0]  %s1, 256, %s27, [#allocation5], 128, 128, 8
    $region9: #{window_attention.3} parent=1 // pred_fallthru
      _
    // Predicated region
    $region10: #{window_attention.3} parent=1 // pred_check
      _
    $region11: #{window_attention.3} parent=1 // pred_check_branch
      %34 = sbr.rel (0) target = $region13
    $region12: #{window_attention.3} parent=1 // pred_region
      %35 = dma.done [#allocation3], 2048
    $region13: #{window_attention.3} parent=1 // pred_fallthru
      _
    // Predicated region
    $region14: #{window_attention.3} parent=1 // pred_check
      _
    $region15: #{window_attention.3} parent=1 // pred_check_branch
      %37 = sbr.rel (0) target = $region17
    $region16: #{window_attention.3} parent=1 // pred_region
      %38 = dma.done [#allocation5], 256
    $region17: #{window_attention.3} parent=1 // pred_fallthru
      _
    %v39 = vld [vmem:[#allocation2] sm:$0xff]
    %v40 = vld [vmem:[#allocation2 + $0x8] sm:$0xff]
    %v41 = vld [vmem:[#allocation2 + $0x10] sm:$0xff]
    %v42 = vld [vmem:[#allocation2 + $0x18] sm:$0xff]
    %v43 = vld [vmem:[#allocation2 + $0x20] sm:$0xff]
    %v44 = vld [vmem:[#allocation2 + $0x28] sm:$0xff]
    %v45 = vld [vmem:[#allocation2 + $0x30] sm:$0xff]
    %v46 = vld [vmem:[#allocation2 + $0x38] sm:$0xff]
    %v47 = vld [vmem:[#allocation2 + $0x40] sm:$0xff]
    %v48 = vld [vmem:[#allocation2 + $0x48] sm:$0xff]
    %v49 = vld [vmem:[#allocation2 + $0x50] sm:$0xff]
    %v50 = vld [vmem:[#allocation2 + $0x58] sm:$0xff]
    %v51 = vld [vmem:[#allocation2 + $0x60] sm:$0xff]
    %v52 = vld [vmem:[#allocation2 + $0x68] sm:$0xff]
    %v53 = vld [vmem:[#allocation2 + $0x70] sm:$0xff]
    %v54 = vld [vmem:[#allocation2 + $0x78] sm:$0xff]
    %v55 = vld [vmem:[#allocation4] sm:$0xff]
    %v56 = vld [vmem:[#allocation4 + $0x8] sm:$0xff]
    %vm57 = vcmask 130048
    %v59 = vsel %vm57, %v39, 0
    %v62 = vsel %vm57, %v40, 0
    %v65 = vsel %vm57, %v41, 0
    %v68 = vsel %vm57, %v42, 0
    %v71 = vsel %vm57, %v43, 0
    %v74 = vsel %vm57, %v44, 0
    %v77 = vsel %vm57, %v45, 0
    %v80 = vsel %vm57, %v46, 0
    %v83 = vsel %vm57, %v47, 0
    %v86 = vsel %vm57, %v48, 0
    %v89 = vsel %vm57, %v49, 0
    %v92 = vsel %vm57, %v50, 0
    %v95 = vsel %vm57, %v51, 0
    %v98 = vsel %vm57, %v52, 0
    %v101 = vsel %vm57, %v53, 0
    %v104 = vsel %vm57, %v54, 0
    %106 = vmatprep.subr.mxu0 0.0
    %107 = vmatpush1.msra.mxu0 0.0
    %108 = vmatprep.subr.mxu0 0.0
    %109 = vmatpush1.msra.mxu0 0.0
    %110 = vmatprep.subr.mxu0 0.0
    %111 = vmatpush1.msra.mxu0 0.0
    %112 = vmatprep.subr.mxu0 0.0
    %113 = vmatpush1.msra.mxu0 0.0
    %114 = vmatprep.subr.mxu0 0.0
    %115 = vmatpush1.msra.mxu0 0.0
    %116 = vmatprep.subr.mxu0 0.0
    %117 = vmatpush1.msra.mxu0 0.0
    %118 = vmatprep.subr.mxu0 0.0
    %119 = vmatpush1.msra.mxu0 0.0
    %120 = vmatprep.subr.mxu0 0.0
    %121 = vmatpush1.msra.mxu0 0.0
    %122 = vmatprep.subr.mxu0 0.0
    %123 = vmatpush1.msra.mxu0 0.0
    %124 = vmatprep.subr.mxu0 0.0
    %125 = vmatpush1.msra.mxu0 0.0
    %126 = vmatprep.subr.mxu0 0.0
    %127 = vmatpush1.msra.mxu0 0.0
    %128 = vmatprep.subr.mxu0 0.0
    %129 = vmatpush1.msra.mxu0 0.0
    %130 = vmatprep.subr.mxu0 0.0
    %131 = vmatpush1.msra.mxu0 0.0
    %132 = vmatprep.subr.mxu0 0.0
    %133 = vmatpush1.msra.mxu0 0.0
    %134 = vmatprep.subr.mxu0 0.0
    %135 = vmatpush1.msra.mxu0 %v56
    %136 = vmatprep.subr.mxu0 0.0
    %137 = vmatpush1.msra.mxu0 %v55
    %138 = vmatprep.subr.mxu0 0.0
    %139 = vmatpush2.msra.mxu0 0.0
    %140 = vmatprep.subr.mxu0 0.0
    %141 = vmatpush2.msra.mxu0 0.0
    %142 = vmatprep.subr.mxu0 0.0
    %143 = vmatpush2.msra.mxu0 0.0
    %144 = vmatprep.subr.mxu0 0.0
    %145 = vmatpush2.msra.mxu0 0.0
    %146 = vmatprep.subr.mxu0 0.0
    %147 = vmatpush2.msra.mxu0 0.0
    %148 = vmatprep.subr.mxu0 0.0
    %149 = vmatpush2.msra.mxu0 0.0
    %150 = vmatprep.subr.mxu0 0.0
    %151 = vmatpush2.msra.mxu0 0.0
    %152 = vmatprep.subr.mxu0 0.0
    %153 = vmatpush2.msra.mxu0 0.0
    %154 = vmatprep.subr.mxu0 0.0
    %155 = vmatpush2.msra.mxu0 0.0
    %156 = vmatprep.subr.mxu0 0.0
    %157 = vmatpush2.msra.mxu0 0.0
    %158 = vmatprep.subr.mxu0 0.0
    %159 = vmatpush2.msra.mxu0 0.0
    %160 = vmatprep.subr.mxu0 0.0
    %161 = vmatpush2.msra.mxu0 0.0
    %162 = vmatprep.subr.mxu0 0.0
    %163 = vmatpush2.msra.mxu0 0.0
    %164 = vmatprep.subr.mxu0 0.0
    %165 = vmatpush2.msra.mxu0 0.0
    %166 = vmatprep.subr.mxu0 0.0
    %167 = vmatpush2.msra.mxu0 0.0
    %168 = vmatprep.subr.mxu0 0.0
    %169 = vmatpush2.msra.mxu0 0.0
    %170 = vmatprep.mubr.f32.mxu0 0.0
    %171 = vmatmul.mubr.f32.gmra.mxu0 %v59
    %v172 = vpop.f32.mrf.mxu0
    %v173 = vadd.f32 0.0, %v172
    %v174 = vpop.f32.mrf.mxu0
    %175 = vmatprep.mubr.f32.mxu0 0.0
    %176 = vmatmul.mubr.f32.gmra.mxu0 %v62
    %v177 = vpop.f32.mrf.mxu0
    %v178 = vadd.f32 0.0, %v177
    %v179 = vpop.f32.mrf.mxu0
    %180 = vmatprep.mubr.f32.mxu0 0.0
    %181 = vmatmul.mubr.f32.gmra.mxu0 %v65
    %v182 = vpop.f32.mrf.mxu0
    %v183 = vadd.f32 0.0, %v182
    %v184 = vpop.f32.mrf.mxu0
    %185 = vmatprep.mubr.f32.mxu0 0.0
    %186 = vmatmul.mubr.f32.gmra.mxu0 %v68
    %v187 = vpop.f32.mrf.mxu0
    %v188 = vadd.f32 0.0, %v187
    %v189 = vpop.f32.mrf.mxu0
    %190 = vmatprep.mubr.f32.mxu0 0.0
    %191 = vmatmul.mubr.f32.gmra.mxu0 %v71
    %v192 = vpop.f32.mrf.mxu0
    %v193 = vadd.f32 0.0, %v192
    %v194 = vpop.f32.mrf.mxu0
    %195 = vmatprep.mubr.f32.mxu0 0.0
    %196 = vmatmul.mubr.f32.gmra.mxu0 %v74
    %v197 = vpop.f32.mrf.mxu0
    %v198 = vadd.f32 0.0, %v197
    %v199 = vpop.f32.mrf.mxu0
    %200 = vmatprep.mubr.f32.mxu0 0.0
    %201 = vmatmul.mubr.f32.gmra.mxu0 %v77
    %v202 = vpop.f32.mrf.mxu0
    %v203 = vadd.f32 0.0, %v202
    %v204 = vpop.f32.mrf.mxu0
    %205 = vmatprep.mubr.f32.mxu0 0.0
    %206 = vmatmul.mubr.f32.gmra.mxu0 %v80
    %v207 = vpop.f32.mrf.mxu0
    %v208 = vadd.f32 0.0, %v207
    %v209 = vpop.f32.mrf.mxu0
    %210 = vmatprep.mubr.f32.mxu0 0.0
    %211 = vmatmul.mubr.f32.gmra.mxu0 %v83
    %v212 = vpop.f32.mrf.mxu0
    %v213 = vadd.f32 0.0, %v212
    %v214 = vpop.f32.mrf.mxu0
    %215 = vmatprep.mubr.f32.mxu0 0.0
    %216 = vmatmul.mubr.f32.gmra.mxu0 %v86
    %v217 = vpop.f32.mrf.mxu0
    %v218 = vadd.f32 0.0, %v217
    %v219 = vpop.f32.mrf.mxu0
    %220 = vmatprep.mubr.f32.mxu0 0.0
    %221 = vmatmul.mubr.f32.gmra.mxu0 %v89
    %v222 = vpop.f32.mrf.mxu0
    %v223 = vadd.f32 0.0, %v222
    %v224 = vpop.f32.mrf.mxu0
    %225 = vmatprep.mubr.f32.mxu0 0.0
    %226 = vmatmul.mubr.f32.gmra.mxu0 %v92
    %v227 = vpop.f32.mrf.mxu0
    %v228 = vadd.f32 0.0, %v227
    %v229 = vpop.f32.mrf.mxu0
    %230 = vmatprep.mubr.f32.mxu0 0.0
    %231 = vmatmul.mubr.f32.gmra.mxu0 %v95
    %v232 = vpop.f32.mrf.mxu0
    %v233 = vadd.f32 0.0, %v232
    %v234 = vpop.f32.mrf.mxu0
    %235 = vmatprep.mubr.f32.mxu0 0.0
    %236 = vmatmul.mubr.f32.gmra.mxu0 %v98
    %v237 = vpop.f32.mrf.mxu0
    %v238 = vadd.f32 0.0, %v237
    %v239 = vpop.f32.mrf.mxu0
    %240 = vmatprep.mubr.f32.mxu0 0.0
    %241 = vmatmul.mubr.f32.gmra.mxu0 %v101
    %v242 = vpop.f32.mrf.mxu0
    %v243 = vadd.f32 0.0, %v242
    %v244 = vpop.f32.mrf.mxu0
    %245 = vmatprep.mubr.f32.mxu0 0.0
    %246 = vmatmul.mubr.f32.gmra.mxu0 %v104
    %v247 = vpop.f32.mrf.mxu0
    %v248 = vadd.f32 0.0, %v247
    %v249 = vpop.f32.mrf.mxu0
    %250 = vdwg.mxu0
    %vm251 = vcmask 392192
    %252 = vst.msk [vmem:[%s2] sm:$0xff] %vm251, %v173
    %253 = vst.msk [vmem:[%s2 + $0x8] sm:$0xff] %vm251, %v178
    %254 = vst.msk [vmem:[%s2 + $0x10] sm:$0xff] %vm251, %v183
    %255 = vst.msk [vmem:[%s2 + $0x18] sm:$0xff] %vm251, %v188
    %256 = vst.msk [vmem:[%s2 + $0x20] sm:$0xff] %vm251, %v193
    %257 = vst.msk [vmem:[%s2 + $0x28] sm:$0xff] %vm251, %v198
    %258 = vst.msk [vmem:[%s2 + $0x30] sm:$0xff] %vm251, %v203
    %259 = vst.msk [vmem:[%s2 + $0x38] sm:$0xff] %vm251, %v208
    %260 = vst.msk [vmem:[%s2 + $0x40] sm:$0xff] %vm251, %v213
    %261 = vst.msk [vmem:[%s2 + $0x48] sm:$0xff] %vm251, %v218
    %262 = vst.msk [vmem:[%s2 + $0x50] sm:$0xff] %vm251, %v223
    %263 = vst.msk [vmem:[%s2 + $0x58] sm:$0xff] %vm251, %v228
    %264 = vst.msk [vmem:[%s2 + $0x60] sm:$0xff] %vm251, %v233
    %265 = vst.msk [vmem:[%s2 + $0x68] sm:$0xff] %vm251, %v238
    %266 = vst.msk [vmem:[%s2 + $0x70] sm:$0xff] %vm251, %v243
    %267 = vst.msk [vmem:[%s2 + $0x78] sm:$0xff] %vm251, %v248
    // Predicated region
    $region18: #{window_attention.3} parent=1 // pred_check
      _
    $region19: #{window_attention.3} parent=1 // pred_check_branch
      %269 = sbr.rel (0) target = $region21
    $region20: #{window_attention.3} parent=1 // pred_region
      _
    $region21: #{window_attention.3} parent=1 // pred_fallthru
      _
    // Predicated region
    $region22: #{window_attention.3} parent=1 // pred_check
      _
    $region23: #{window_attention.3} parent=1 // pred_check_branch
      %271 = sbr.rel (0) target = $region25
    $region24: #{window_attention.3} parent=1 // pred_region
      _
    $region25: #{window_attention.3} parent=1 // pred_fallthru
      _
    %272 = vsyncpa [#allocation3], 1
    %273 = vsyncpa [#allocation5], 1

// kernel: window_attention.5
$region0: #{window_attention.5}
  #allocation0 [shape = 'u32[]', space=smem, size = 0x4, offset = 0x4, fixed_abs, tag = 'smem constant byte address 0x4 - core index']
  #allocation1 [shape = 'u32[144,128]{1,0:T(1,128)}', space=vmem, size = 0x12000, scoped, tag = 'internal scratch']
  %s0 = inlined_call_operand.vmem [shape: f32[128,16], index: 0, kind: input, shape index: {}]
  %s1 = inlined_call_operand.vmem [shape: f32[16,16], index: 1, kind: input, shape index: {}]
  %s2 = inlined_call_operand.vmem [shape: f32[1,16], index: 2, kind: input, shape index: {}]
  %s3 = inlined_call_operand.hbm [shape: f32[128,16], index: 3, kind: output, shape index: {}]
  %s4 = sld [smem:[#allocation0]]
  $region22: #{window_attention.5} parent=0
    _
  %s6 = ssub.s32 1, %s4
  %s7 = scalar_select 0, %s6, %s4
  $region1: #{window_attention.5} parent=0
    #allocation2 [shape = 'u8[65536]{0}', space=vmem, size = 0x10000, scoped, tag = 'output window, operand 0, single buffered']
    #allocation3 [shape = 's32[1]{0}', space=sflag, size = 0x4, scoped, tag = 'scoped memory for window_attention.5']
    %8 = vsyncpa [#allocation3], 0
    // Predicated region
    $region2: #{window_attention.5} parent=1 // pred_check
      _
    $region3: #{window_attention.5} parent=1 // pred_check_branch
      %10 = sbr.rel (0) target = $region5
    $region4: #{window_attention.5} parent=1 // pred_region
      _
    $region5: #{window_attention.5} parent=1 // pred_fallthru
      _
    // Predicated region
    $region6: #{window_attention.5} parent=1 // pred_check
      _
    $region7: #{window_attention.5} parent=1 // pred_check_branch
      %12 = sbr.rel (0) target = $region9
    $region8: #{window_attention.5} parent=1 // pred_region
      _
    $region9: #{window_attention.5} parent=1 // pred_fallthru
      _
    // Predicated region
    $region10: #{window_attention.5} parent=1 // pred_check
      _
    $region11: #{window_attention.5} parent=1 // pred_check_branch
      %14 = sbr.rel (0) target = $region13
    $region12: #{window_attention.5} parent=1 // pred_region
      _
    $region13: #{window_attention.5} parent=1 // pred_fallthru
      _
    %v15 = vld [vmem:[%s0] sm:$0xff]
    %v16 = vld [vmem:[%s0 + $0x8] sm:$0xff]
    %v17 = vld [vmem:[%s0 + $0x10] sm:$0xff]
    %v18 = vld [vmem:[%s0 + $0x18] sm:$0xff]
    %v19 = vld [vmem:[%s0 + $0x20] sm:$0xff]
    %v20 = vld [vmem:[%s0 + $0x28] sm:$0xff]
    %v21 = vld [vmem:[%s0 + $0x30] sm:$0xff]
    %v22 = vld [vmem:[%s0 + $0x38] sm:$0xff]
    %v23 = vld [vmem:[%s0 + $0x40] sm:$0xff]
    %v24 = vld [vmem:[%s0 + $0x48] sm:$0xff]
    %v25 = vld [vmem:[%s0 + $0x50] sm:$0xff]
    %v26 = vld [vmem:[%s0 + $0x58] sm:$0xff]
    %v27 = vld [vmem:[%s0 + $0x60] sm:$0xff]
    %v28 = vld [vmem:[%s0 + $0x68] sm:$0xff]
    %v29 = vld [vmem:[%s0 + $0x70] sm:$0xff]
    %v30 = vld [vmem:[%s0 + $0x78] sm:$0xff]
    %v31 = vld [vmem:[%s1] sm:$0xff]
    %v32 = vld [vmem:[%s1 + $0x8] sm:$0xff]
    %v33 = vld [vmem:[%s2] sm:$0x1]
    %v35 = vlaneseq
    %v36 = vshrl.u32 %v35, 7
    %v37 = vsub.s32 0, %v36
    %v38 = vrot.slane %v33, %v37
    %vm40 = vcmask 130048
    %v42 = vsel %vm40, %v15, 0
    %v45 = vsel %vm40, %v16, 0
    %v48 = vsel %vm40, %v17, 0
    %v51 = vsel %vm40, %v18, 0
    %v54 = vsel %vm40, %v19, 0
    %v57 = vsel %vm40, %v20, 0
    %v60 = vsel %vm40, %v21, 0
    %v63 = vsel %vm40, %v22, 0
    %v66 = vsel %vm40, %v23, 0
    %v69 = vsel %vm40, %v24, 0
    %v72 = vsel %vm40, %v25, 0
    %v75 = vsel %vm40, %v26, 0
    %v78 = vsel %vm40, %v27, 0
    %v81 = vsel %vm40, %v28, 0
    %v84 = vsel %vm40, %v29, 0
    %v87 = vsel %vm40, %v30, 0
    %89 = vmatprep.subr.mxu0 0.0
    %90 = vmatpush1.msra.mxu0 0.0
    %91 = vmatprep.subr.mxu0 0.0
    %92 = vmatpush1.msra.mxu0 0.0
    %93 = vmatprep.subr.mxu0 0.0
    %94 = vmatpush1.msra.mxu0 0.0
    %95 = vmatprep.subr.mxu0 0.0
    %96 = vmatpush1.msra.mxu0 0.0
    %97 = vmatprep.subr.mxu0 0.0
    %98 = vmatpush1.msra.mxu0 0.0
    %99 = vmatprep.subr.mxu0 0.0
    %100 = vmatpush1.msra.mxu0 0.0
    %101 = vmatprep.subr.mxu0 0.0
    %102 = vmatpush1.msra.mxu0 0.0
    %103 = vmatprep.subr.mxu0 0.0
    %104 = vmatpush1.msra.mxu0 0.0
    %105 = vmatprep.subr.mxu0 0.0
    %106 = vmatpush1.msra.mxu0 0.0
    %107 = vmatprep.subr.mxu0 0.0
    %108 = vmatpush1.msra.mxu0 0.0
    %109 = vmatprep.subr.mxu0 0.0
    %110 = vmatpush1.msra.mxu0 0.0
    %111 = vmatprep.subr.mxu0 0.0
    %112 = vmatpush1.msra.mxu0 0.0
    %113 = vmatprep.subr.mxu0 0.0
    %114 = vmatpush1.msra.mxu0 0.0
    %115 = vmatprep.subr.mxu0 0.0
    %116 = vmatpush1.msra.mxu0 0.0
    %117 = vmatprep.subr.mxu0 0.0
    %118 = vmatpush1.msra.mxu0 %v32
    %119 = vmatprep.subr.mxu0 0.0
    %120 = vmatpush1.msra.mxu0 %v31
    %121 = vmatprep.subr.mxu0 0.0
    %122 = vmatpush2.msra.mxu0 0.0
    %123 = vmatprep.subr.mxu0 0.0
    %124 = vmatpush2.msra.mxu0 0.0
    %125 = vmatprep.subr.mxu0 0.0
    %126 = vmatpush2.msra.mxu0 0.0
    %127 = vmatprep.subr.mxu0 0.0
    %128 = vmatpush2.msra.mxu0 0.0
    %129 = vmatprep.subr.mxu0 0.0
    %130 = vmatpush2.msra.mxu0 0.0
    %131 = vmatprep.subr.mxu0 0.0
    %132 = vmatpush2.msra.mxu0 0.0
    %133 = vmatprep.subr.mxu0 0.0
    %134 = vmatpush2.msra.mxu0 0.0
    %135 = vmatprep.subr.mxu0 0.0
    %136 = vmatpush2.msra.mxu0 0.0
    %137 = vmatprep.subr.mxu0 0.0
    %138 = vmatpush2.msra.mxu0 0.0
    %139 = vmatprep.subr.mxu0 0.0
    %140 = vmatpush2.msra.mxu0 0.0
    %141 = vmatprep.subr.mxu0 0.0
    %142 = vmatpush2.msra.mxu0 0.0
    %143 = vmatprep.subr.mxu0 0.0
    %144 = vmatpush2.msra.mxu0 0.0
    %145 = vmatprep.subr.mxu0 0.0
    %146 = vmatpush2.msra.mxu0 0.0
    %147 = vmatprep.subr.mxu0 0.0
    %148 = vmatpush2.msra.mxu0 0.0
    %149 = vmatprep.subr.mxu0 0.0
    %150 = vmatpush2.msra.mxu0 0.0
    %151 = vmatprep.subr.mxu0 0.0
    %152 = vmatpush2.msra.mxu0 0.0
    %153 = vmatprep.mubr.f32.mxu0 0.0
    %154 = vmatmul.mubr.f32.gmra.mxu0 %v42
    %v155 = vpop.f32.mrf.mxu0
    %v156 = vadd.f32 %v38, %v155
    %v157 = vpop.f32.mrf.mxu0
    %158 = vmatprep.mubr.f32.mxu0 0.0
    %159 = vmatmul.mubr.f32.gmra.mxu0 %v45
    %v160 = vpop.f32.mrf.mxu0
    %v161 = vadd.f32 %v38, %v160
    %v162 = vpop.f32.mrf.mxu0
    %163 = vmatprep.mubr.f32.mxu0 0.0
    %164 = vmatmul.mubr.f32.gmra.mxu0 %v48
    %v165 = vpop.f32.mrf.mxu0
    %v166 = vadd.f32 %v38, %v165
    %v167 = vpop.f32.mrf.mxu0
    %168 = vmatprep.mubr.f32.mxu0 0.0
    %169 = vmatmul.mubr.f32.gmra.mxu0 %v51
    %v170 = vpop.f32.mrf.mxu0
    %v171 = vadd.f32 %v38, %v170
    %v172 = vpop.f32.mrf.mxu0
    %173 = vmatprep.mubr.f32.mxu0 0.0
    %174 = vmatmul.mubr.f32.gmra.mxu0 %v54
    %v175 = vpop.f32.mrf.mxu0
    %v176 = vadd.f32 %v38, %v175
    %v177 = vpop.f32.mrf.mxu0
    %178 = vmatprep.mubr.f32.mxu0 0.0
    %179 = vmatmul.mubr.f32.gmra.mxu0 %v57
    %v180 = vpop.f32.mrf.mxu0
    %v181 = vadd.f32 %v38, %v180
    %v182 = vpop.f32.mrf.mxu0
    %183 = vmatprep.mubr.f32.mxu0 0.0
    %184 = vmatmul.mubr.f32.gmra.mxu0 %v60
    %v185 = vpop.f32.mrf.mxu0
    %v186 = vadd.f32 %v38, %v185
    %v187 = vpop.f32.mrf.mxu0
    %188 = vmatprep.mubr.f32.mxu0 0.0
    %189 = vmatmul.mubr.f32.gmra.mxu0 %v63
    %v190 = vpop.f32.mrf.mxu0
    %v191 = vadd.f32 %v38, %v190
    %v192 = vpop.f32.mrf.mxu0
    %193 = vmatprep.mubr.f32.mxu0 0.0
    %194 = vmatmul.mubr.f32.gmra.mxu0 %v66
    %v195 = vpop.f32.mrf.mxu0
    %v196 = vadd.f32 %v38, %v195
    %v197 = vpop.f32.mrf.mxu0
    %198 = vmatprep.mubr.f32.mxu0 0.0
    %199 = vmatmul.mubr.f32.gmra.mxu0 %v69
    %v200 = vpop.f32.mrf.mxu0
    %v201 = vadd.f32 %v38, %v200
    %v202 = vpop.f32.mrf.mxu0
    %203 = vmatprep.mubr.f32.mxu0 0.0
    %204 = vmatmul.mubr.f32.gmra.mxu0 %v72
    %v205 = vpop.f32.mrf.mxu0
    %v206 = vadd.f32 %v38, %v205
    %v207 = vpop.f32.mrf.mxu0
    %208 = vmatprep.mubr.f32.mxu0 0.0
    %209 = vmatmul.mubr.f32.gmra.mxu0 %v75
    %v210 = vpop.f32.mrf.mxu0
    %v211 = vadd.f32 %v38, %v210
    %v212 = vpop.f32.mrf.mxu0
    %213 = vmatprep.mubr.f32.mxu0 0.0
    %214 = vmatmul.mubr.f32.gmra.mxu0 %v78
    %v215 = vpop.f32.mrf.mxu0
    %v216 = vadd.f32 %v38, %v215
    %v217 = vpop.f32.mrf.mxu0
    %218 = vmatprep.mubr.f32.mxu0 0.0
    %219 = vmatmul.mubr.f32.gmra.mxu0 %v81
    %v220 = vpop.f32.mrf.mxu0
    %v221 = vadd.f32 %v38, %v220
    %v222 = vpop.f32.mrf.mxu0
    %223 = vmatprep.mubr.f32.mxu0 0.0
    %224 = vmatmul.mubr.f32.gmra.mxu0 %v84
    %v225 = vpop.f32.mrf.mxu0
    %v226 = vadd.f32 %v38, %v225
    %v227 = vpop.f32.mrf.mxu0
    %228 = vmatprep.mubr.f32.mxu0 0.0
    %229 = vmatmul.mubr.f32.gmra.mxu0 %v87
    %v230 = vpop.f32.mrf.mxu0
    %v231 = vadd.f32 %v38, %v230
    %v232 = vpop.f32.mrf.mxu0
    %233 = vdwg.mxu0
    %234 = vst.msk [vmem:[#allocation2] sm:$0xff] %vm40, %v156
    %235 = vst.msk [vmem:[#allocation2 + $0x8] sm:$0xff] %vm40, %v161
    %236 = vst.msk [vmem:[#allocation2 + $0x10] sm:$0xff] %vm40, %v166
    %237 = vst.msk [vmem:[#allocation2 + $0x18] sm:$0xff] %vm40, %v171
    %238 = vst.msk [vmem:[#allocation2 + $0x20] sm:$0xff] %vm40, %v176
    %239 = vst.msk [vmem:[#allocation2 + $0x28] sm:$0xff] %vm40, %v181
    %240 = vst.msk [vmem:[#allocation2 + $0x30] sm:$0xff] %vm40, %v186
    %241 = vst.msk [vmem:[#allocation2 + $0x38] sm:$0xff] %vm40, %v191
    %242 = vst.msk [vmem:[#allocation2 + $0x40] sm:$0xff] %vm40, %v196
    %243 = vst.msk [vmem:[#allocation2 + $0x48] sm:$0xff] %vm40, %v201
    %244 = vst.msk [vmem:[#allocation2 + $0x50] sm:$0xff] %vm40, %v206
    %245 = vst.msk [vmem:[#allocation2 + $0x58] sm:$0xff] %vm40, %v211
    %246 = vst.msk [vmem:[#allocation2 + $0x60] sm:$0xff] %vm40, %v216
    %247 = vst.msk [vmem:[#allocation2 + $0x68] sm:$0xff] %vm40, %v221
    %248 = vst.msk [vmem:[#allocation2 + $0x70] sm:$0xff] %vm40, %v226
    %249 = vst.msk [vmem:[#allocation2 + $0x78] sm:$0xff] %vm40, %v231
    // Predicated region
    $region14: #{window_attention.5} parent=1 // pred_check
      _
    $region15: #{window_attention.5} parent=1 // pred_check_branch
      %251 = sbr.rel (0) target = $region17
    $region16: #{window_attention.5} parent=1 // pred_region
      %s253 = ssub.s32 2048, 2048
      %254 = vsyncadd [#allocation3], %s253
      %s255 = sshll.u32 [#allocation2], 4
      %s256 = int_to_ptr.vmem [resolvable:$true] %s255
      %261 = dma.vmem_to_hbm [thread:$0]  %s256, 2048, %s3, [#allocation3], 128, 128, 8
    $region17: #{window_attention.5} parent=1 // pred_fallthru
      _
    // Predicated region
    $region18: #{window_attention.5} parent=1 // pred_check
      _
    $region19: #{window_attention.5} parent=1 // pred_check_branch
      %263 = sbr.rel (0) target = $region21
    $region20: #{window_attention.5} parent=1 // pred_region
      %264 = dma.done [#allocation3], 2048
    $region21: #{window_attention.5} parent=1 // pred_fallthru
      _
    %265 = vsyncpa [#allocation3], 1

// kernel: window_attention.4
$region0: #{window_attention.4}
  #allocation0 [shape = 'u32[]', space=smem, size = 0x4, offset = 0x4, fixed_abs, tag = 'smem constant byte address 0x4 - core index']
  #allocation1 [shape = 'u32[144,128]{1,0:T(1,128)}', space=vmem, size = 0x12000, scoped, tag = 'internal scratch']
  %s0 = inlined_call_operand.vmem [shape: f32[2,16,8,8], index: 0, kind: input, shape index: {}]
  %s1 = inlined_call_operand.vmem [shape: f32[2,16,8,8], index: 1, kind: input, shape index: {}]
  %s2 = inlined_call_operand.vmem [shape: f32[2,16,8,8], index: 2, kind: input, shape index: {}]
  %s3 = inlined_call_operand.vmem [shape: f32[8,8], index: 3, kind: input, shape index: {}]
  %s4 = inlined_call_operand.vmem [shape: f32[16,8,16], index: 4, kind: output, shape index: {}]
  %s5 = sld [smem:[#allocation0]]
  $region26: #{window_attention.4} parent=0
    _
  %s7 = ssub.s32 1, %s5
  %s8 = scalar_select 0, %s7, %s5
  // Predicated region
  $region2: #{window_attention.4} parent=0 // pred_check
    _
  $region3: #{window_attention.4} parent=0 // pred_check_branch
    %10 = sbr.rel (0) target = $region5
  $region4: #{window_attention.4} parent=0 // pred_region
    _
  $region5: #{window_attention.4} parent=0 // pred_fallthru
    _
  // Predicated region
  $region6: #{window_attention.4} parent=0 // pred_check
    _
  $region7: #{window_attention.4} parent=0 // pred_check_branch
    %12 = sbr.rel (0) target = $region9
  $region8: #{window_attention.4} parent=0 // pred_region
    _
  $region9: #{window_attention.4} parent=0 // pred_fallthru
    _
  // Predicated region
  $region10: #{window_attention.4} parent=0 // pred_check
    _
  $region11: #{window_attention.4} parent=0 // pred_check_branch
    %14 = sbr.rel (0) target = $region13
  $region12: #{window_attention.4} parent=0 // pred_region
    _
  $region13: #{window_attention.4} parent=0 // pred_fallthru
    _
  // Predicated region
  $region14: #{window_attention.4} parent=0 // pred_check
    _
  $region15: #{window_attention.4} parent=0 // pred_check_branch
    %16 = sbr.rel (0) target = $region17
  $region16: #{window_attention.4} parent=0 // pred_region
    _
  $region17: #{window_attention.4} parent=0 // pred_fallthru
    _
  %v17 = vld [vmem:[%s3] sm:$0xff]
  %v18 = vld [vmem:[%s0] sm:$0xff]
  %v19 = vld [vmem:[%s0 + $0x8] sm:$0xff]
  %v20 = vld [vmem:[%s0 + $0x10] sm:$0xff]
  %v21 = vld [vmem:[%s0 + $0x18] sm:$0xff]
  %v22 = vld [vmem:[%s0 + $0x20] sm:$0xff]
  %v23 = vld [vmem:[%s0 + $0x28] sm:$0xff]
  %v24 = vld [vmem:[%s0 + $0x30] sm:$0xff]
  %v25 = vld [vmem:[%s0 + $0x38] sm:$0xff]
  %v26 = vld [vmem:[%s0 + $0x40] sm:$0xff]
  %v27 = vld [vmem:[%s0 + $0x48] sm:$0xff]
  %v28 = vld [vmem:[%s0 + $0x50] sm:$0xff]
  %v29 = vld [vmem:[%s0 + $0x58] sm:$0xff]
  %v30 = vld [vmem:[%s0 + $0x60] sm:$0xff]
  %v31 = vld [vmem:[%s0 + $0x68] sm:$0xff]
  %v32 = vld [vmem:[%s0 + $0x70] sm:$0xff]
  %v33 = vld [vmem:[%s0 + $0x78] sm:$0xff]
  %v34 = vmul.f32 %v18, 0.35355338
  %v35 = vmul.f32 %v19, 0.35355338
  %v36 = vmul.f32 %v20, 0.35355338
  %v37 = vmul.f32 %v21, 0.35355338
  %v38 = vmul.f32 %v22, 0.35355338
  %v39 = vmul.f32 %v23, 0.35355338
  %v40 = vmul.f32 %v24, 0.35355338
  %v41 = vmul.f32 %v25, 0.35355338
  %v42 = vmul.f32 %v26, 0.35355338
  %v43 = vmul.f32 %v27, 0.35355338
  %v44 = vmul.f32 %v28, 0.35355338
  %v45 = vmul.f32 %v29, 0.35355338
  %v46 = vmul.f32 %v30, 0.35355338
  %v47 = vmul.f32 %v31, 0.35355338
  %v48 = vmul.f32 %v32, 0.35355338
  %v49 = vmul.f32 %v33, 0.35355338
  %v50 = vld [vmem:[%s1] sm:$0xff]
  %v51 = vld [vmem:[%s1 + $0x8] sm:$0xff]
  %v52 = vld [vmem:[%s1 + $0x10] sm:$0xff]
  %v53 = vld [vmem:[%s1 + $0x18] sm:$0xff]
  %v54 = vld [vmem:[%s1 + $0x20] sm:$0xff]
  %v55 = vld [vmem:[%s1 + $0x28] sm:$0xff]
  %v56 = vld [vmem:[%s1 + $0x30] sm:$0xff]
  %v57 = vld [vmem:[%s1 + $0x38] sm:$0xff]
  %v58 = vld [vmem:[%s1 + $0x40] sm:$0xff]
  %v59 = vld [vmem:[%s1 + $0x48] sm:$0xff]
  %v60 = vld [vmem:[%s1 + $0x50] sm:$0xff]
  %v61 = vld [vmem:[%s1 + $0x58] sm:$0xff]
  %v62 = vld [vmem:[%s1 + $0x60] sm:$0xff]
  %v63 = vld [vmem:[%s1 + $0x68] sm:$0xff]
  %v64 = vld [vmem:[%s1 + $0x70] sm:$0xff]
  %v65 = vld [vmem:[%s1 + $0x78] sm:$0xff]
  %vm66 = vcmask 64512
  %v68 = vsel %vm66, %v34, 0
  %v71 = vsel %vm66, %v50, 0
  %73 = vmatprep.subr.mxu0 0.0
  %74 = vmatpush1.xpose.msra.mxu0 0.0
  %75 = vmatprep.subr.mxu0 0.0
  %76 = vmatpush1.xpose.msra.mxu0 0.0
  %77 = vmatprep.subr.mxu0 0.0
  %78 = vmatpush1.xpose.msra.mxu0 0.0
  %79 = vmatprep.subr.mxu0 0.0
  %80 = vmatpush1.xpose.msra.mxu0 0.0
  %81 = vmatprep.subr.mxu0 0.0
  %82 = vmatpush1.xpose.msra.mxu0 0.0
  %83 = vmatprep.subr.mxu0 0.0
  %84 = vmatpush1.xpose.msra.mxu0 0.0
  %85 = vmatprep.subr.mxu0 0.0
  %86 = vmatpush1.xpose.msra.mxu0 0.0
  %87 = vmatprep.subr.mxu0 0.0
  %88 = vmatpush1.xpose.msra.mxu0 0.0
  %89 = vmatprep.subr.mxu0 0.0
  %90 = vmatpush1.xpose.msra.mxu0 0.0
  %91 = vmatprep.subr.mxu0 0.0
  %92 = vmatpush1.xpose.msra.mxu0 0.0
  %93 = vmatprep.subr.mxu0 0.0
  %94 = vmatpush1.xpose.msra.mxu0 0.0
  %95 = vmatprep.subr.mxu0 0.0
  %96 = vmatpush1.xpose.msra.mxu0 0.0
  %97 = vmatprep.subr.mxu0 0.0
  %98 = vmatpush1.xpose.msra.mxu0 0.0
  %99 = vmatprep.subr.mxu0 0.0
  %100 = vmatpush1.xpose.msra.mxu0 0.0
  %101 = vmatprep.subr.mxu0 0.0
  %102 = vmatpush1.xpose.msra.mxu0 0.0
  %103 = vmatprep.subr.mxu0 0.0
  %104 = vmatpush1.xpose.msra.mxu0 %v71
  %105 = vmatprep.subr.mxu0 0.0
  %106 = vmatpush2.xpose.msra.mxu0 0.0
  %107 = vmatprep.subr.mxu0 0.0
  %108 = vmatpush2.xpose.msra.mxu0 0.0
  %109 = vmatprep.subr.mxu0 0.0
  %110 = vmatpush2.xpose.msra.mxu0 0.0
  %111 = vmatprep.subr.mxu0 0.0
  %112 = vmatpush2.xpose.msra.mxu0 0.0
  %113 = vmatprep.subr.mxu0 0.0
  %114 = vmatpush2.xpose.msra.mxu0 0.0
  %115 = vmatprep.subr.mxu0 0.0
  %116 = vmatpush2.xpose.msra.mxu0 0.0
  %117 = vmatprep.subr.mxu0 0.0
  %118 = vmatpush2.xpose.msra.mxu0 0.0
  %119 = vmatprep.subr.mxu0 0.0
  %120 = vmatpush2.xpose.msra.mxu0 0.0
  %121 = vmatprep.subr.mxu0 0.0
  %122 = vmatpush2.xpose.msra.mxu0 0.0
  %123 = vmatprep.subr.mxu0 0.0
  %124 = vmatpush2.xpose.msra.mxu0 0.0
  %125 = vmatprep.subr.mxu0 0.0
  %126 = vmatpush2.xpose.msra.mxu0 0.0
  %127 = vmatprep.subr.mxu0 0.0
  %128 = vmatpush2.xpose.msra.mxu0 0.0
  %129 = vmatprep.subr.mxu0 0.0
  %130 = vmatpush2.xpose.msra.mxu0 0.0
  %131 = vmatprep.subr.mxu0 0.0
  %132 = vmatpush2.xpose.msra.mxu0 0.0
  %133 = vmatprep.subr.mxu0 0.0
  %134 = vmatpush2.xpose.msra.mxu0 0.0
  %135 = vmatprep.subr.mxu0 0.0
  %136 = vmatpush2.xpose.msra.mxu0 0.0
  %137 = vmatprep.mubr.f32.mxu0 0.0
  %138 = vmatmul.mubr.f32.gmra.mxu0 %v68
  %v139 = vpop.f32.mrf.mxu0
  %v140 = vadd.f32 %v17, %v139
  %v141 = vpop.f32.mrf.mxu0
  %142 = vdwg.mxu0
  %v144 = vsel %vm66, %v35, 0
  %v147 = vsel %vm66, %v51, 0
  %149 = vmatprep.subr.mxu0 0.0
  %150 = vmatpush1.xpose.msra.mxu0 0.0
  %151 = vmatprep.subr.mxu0 0.0
  %152 = vmatpush1.xpose.msra.mxu0 0.0
  %153 = vmatprep.subr.mxu0 0.0
  %154 = vmatpush1.xpose.msra.mxu0 0.0
  %155 = vmatprep.subr.mxu0 0.0
  %156 = vmatpush1.xpose.msra.mxu0 0.0
  %157 = vmatprep.subr.mxu0 0.0
  %158 = vmatpush1.xpose.msra.mxu0 0.0
  %159 = vmatprep.subr.mxu0 0.0
  %160 = vmatpush1.xpose.msra.mxu0 0.0
  %161 = vmatprep.subr.mxu0 0.0
  %162 = vmatpush1.xpose.msra.mxu0 0.0
  %163 = vmatprep.subr.mxu0 0.0
  %164 = vmatpush1.xpose.msra.mxu0 0.0
  %165 = vmatprep.subr.mxu0 0.0
  %166 = vmatpush1.xpose.msra.mxu0 0.0
  %167 = vmatprep.subr.mxu0 0.0
  %168 = vmatpush1.xpose.msra.mxu0 0.0
  %169 = vmatprep.subr.mxu0 0.0
  %170 = vmatpush1.xpose.msra.mxu0 0.0
  %171 = vmatprep.subr.mxu0 0.0
  %172 = vmatpush1.xpose.msra.mxu0 0.0
  %173 = vmatprep.subr.mxu0 0.0
  %174 = vmatpush1.xpose.msra.mxu0 0.0
  %175 = vmatprep.subr.mxu0 0.0
  %176 = vmatpush1.xpose.msra.mxu0 0.0
  %177 = vmatprep.subr.mxu0 0.0
  %178 = vmatpush1.xpose.msra.mxu0 0.0
  %179 = vmatprep.subr.mxu0 0.0
  %180 = vmatpush1.xpose.msra.mxu0 %v147
  %181 = vmatprep.subr.mxu0 0.0
  %182 = vmatpush2.xpose.msra.mxu0 0.0
  %183 = vmatprep.subr.mxu0 0.0
  %184 = vmatpush2.xpose.msra.mxu0 0.0
  %185 = vmatprep.subr.mxu0 0.0
  %186 = vmatpush2.xpose.msra.mxu0 0.0
  %187 = vmatprep.subr.mxu0 0.0
  %188 = vmatpush2.xpose.msra.mxu0 0.0
  %189 = vmatprep.subr.mxu0 0.0
  %190 = vmatpush2.xpose.msra.mxu0 0.0
  %191 = vmatprep.subr.mxu0 0.0
  %192 = vmatpush2.xpose.msra.mxu0 0.0
  %193 = vmatprep.subr.mxu0 0.0
  %194 = vmatpush2.xpose.msra.mxu0 0.0
  %195 = vmatprep.subr.mxu0 0.0
  %196 = vmatpush2.xpose.msra.mxu0 0.0
  %197 = vmatprep.subr.mxu0 0.0
  %198 = vmatpush2.xpose.msra.mxu0 0.0
  %199 = vmatprep.subr.mxu0 0.0
  %200 = vmatpush2.xpose.msra.mxu0 0.0
  %201 = vmatprep.subr.mxu0 0.0
  %202 = vmatpush2.xpose.msra.mxu0 0.0
  %203 = vmatprep.subr.mxu0 0.0
  %204 = vmatpush2.xpose.msra.mxu0 0.0
  %205 = vmatprep.subr.mxu0 0.0
  %206 = vmatpush2.xpose.msra.mxu0 0.0
  %207 = vmatprep.subr.mxu0 0.0
  %208 = vmatpush2.xpose.msra.mxu0 0.0
  %209 = vmatprep.subr.mxu0 0.0
  %210 = vmatpush2.xpose.msra.mxu0 0.0
  %211 = vmatprep.subr.mxu0 0.0
  %212 = vmatpush2.xpose.msra.mxu0 0.0
  %213 = vmatprep.mubr.f32.mxu0 0.0
  %214 = vmatmul.mubr.f32.gmra.mxu0 %v144
  %v215 = vpop.f32.mrf.mxu0
  %v216 = vadd.f32 %v17, %v215
  %v217 = vpop.f32.mrf.mxu0
  %218 = vdwg.mxu0
  %v220 = vsel %vm66, %v36, 0
  %v223 = vsel %vm66, %v52, 0
  %225 = vmatprep.subr.mxu0 0.0
  %226 = vmatpush1.xpose.msra.mxu0 0.0
  %227 = vmatprep.subr.mxu0 0.0
  %228 = vmatpush1.xpose.msra.mxu0 0.0
  %229 = vmatprep.subr.mxu0 0.0
  %230 = vmatpush1.xpose.msra.mxu0 0.0
  %231 = vmatprep.subr.mxu0 0.0
  %232 = vmatpush1.xpose.msra.mxu0 0.0
  %233 = vmatprep.subr.mxu0 0.0
  %234 = vmatpush1.xpose.msra.mxu0 0.0
  %235 = vmatprep.subr.mxu0 0.0
  %236 = vmatpush1.xpose.msra.mxu0 0.0
  %237 = vmatprep.subr.mxu0 0.0
  %238 = vmatpush1.xpose.msra.mxu0 0.0
  %239 = vmatprep.subr.mxu0 0.0
  %240 = vmatpush1.xpose.msra.mxu0 0.0
  %241 = vmatprep.subr.mxu0 0.0
  %242 = vmatpush1.xpose.msra.mxu0 0.0
  %243 = vmatprep.subr.mxu0 0.0
  %244 = vmatpush1.xpose.msra.mxu0 0.0
  %245 = vmatprep.subr.mxu0 0.0
  %246 = vmatpush1.xpose.msra.mxu0 0.0
  %247 = vmatprep.subr.mxu0 0.0
  %248 = vmatpush1.xpose.msra.mxu0 0.0
  %249 = vmatprep.subr.mxu0 0.0
  %250 = vmatpush1.xpose.msra.mxu0 0.0
  %251 = vmatprep.subr.mxu0 0.0
  %252 = vmatpush1.xpose.msra.mxu0 0.0
  %253 = vmatprep.subr.mxu0 0.0
  %254 = vmatpush1.xpose.msra.mxu0 0.0
  %255 = vmatprep.subr.mxu0 0.0
  %256 = vmatpush1.xpose.msra.mxu0 %v223
  %257 = vmatprep.subr.mxu0 0.0
  %258 = vmatpush2.xpose.msra.mxu0 0.0
  %259 = vmatprep.subr.mxu0 0.0
  %260 = vmatpush2.xpose.msra.mxu0 0.0
  %261 = vmatprep.subr.mxu0 0.0
  %262 = vmatpush2.xpose.msra.mxu0 0.0
  %263 = vmatprep.subr.mxu0 0.0
  %264 = vmatpush2.xpose.msra.mxu0 0.0
  %265 = vmatprep.subr.mxu0 0.0
  %266 = vmatpush2.xpose.msra.mxu0 0.0
  %267 = vmatprep.subr.mxu0 0.0
  %268 = vmatpush2.xpose.msra.mxu0 0.0
  %269 = vmatprep.subr.mxu0 0.0
  %270 = vmatpush2.xpose.msra.mxu0 0.0
  %271 = vmatprep.subr.mxu0 0.0
  %272 = vmatpush2.xpose.msra.mxu0 0.0
  %273 = vmatprep.subr.mxu0 0.0
  %274 = vmatpush2.xpose.msra.mxu0 0.0
  %275 = vmatprep.subr.mxu0 0.0
  %276 = vmatpush2.xpose.msra.mxu0 0.0
  %277 = vmatprep.subr.mxu0 0.0
  %278 = vmatpush2.xpose.msra.mxu0 0.0
  %279 = vmatprep.subr.mxu0 0.0
  %280 = vmatpush2.xpose.msra.mxu0 0.0
  %281 = vmatprep.subr.mxu0 0.0
  %282 = vmatpush2.xpose.msra.mxu0 0.0
  %283 = vmatprep.subr.mxu0 0.0
  %284 = vmatpush2.xpose.msra.mxu0 0.0
  %285 = vmatprep.subr.mxu0 0.0
  %286 = vmatpush2.xpose.msra.mxu0 0.0
  %287 = vmatprep.subr.mxu0 0.0
  %288 = vmatpush2.xpose.msra.mxu0 0.0
  %289 = vmatprep.mubr.f32.mxu0 0.0
  %290 = vmatmul.mubr.f32.gmra.mxu0 %v220
  %v291 = vpop.f32.mrf.mxu0
  %v292 = vadd.f32 %v17, %v291
  %v293 = vpop.f32.mrf.mxu0
  %294 = vdwg.mxu0
  %v296 = vsel %vm66, %v37, 0
  %v299 = vsel %vm66, %v53, 0
  %301 = vmatprep.subr.mxu0 0.0
  %302 = vmatpush1.xpose.msra.mxu0 0.0
  %303 = vmatprep.subr.mxu0 0.0
  %304 = vmatpush1.xpose.msra.mxu0 0.0
  %305 = vmatprep.subr.mxu0 0.0
  %306 = vmatpush1.xpose.msra.mxu0 0.0
  %307 = vmatprep.subr.mxu0 0.0
  %308 = vmatpush1.xpose.msra.mxu0 0.0
  %309 = vmatprep.subr.mxu0 0.0
  %310 = vmatpush1.xpose.msra.mxu0 0.0
  %311 = vmatprep.subr.mxu0 0.0
  %312 = vmatpush1.xpose.msra.mxu0 0.0
  %313 = vmatprep.subr.mxu0 0.0
  %314 = vmatpush1.xpose.msra.mxu0 0.0
  %315 = vmatprep.subr.mxu0 0.0
  %316 = vmatpush1.xpose.msra.mxu0 0.0
  %317 = vmatprep.subr.mxu0 0.0
  %318 = vmatpush1.xpose.msra.mxu0 0.0
  %319 = vmatprep.subr.mxu0 0.0
  %320 = vmatpush1.xpose.msra.mxu0 0.0
  %321 = vmatprep.subr.mxu0 0.0
  %322 = vmatpush1.xpose.msra.mxu0 0.0
  %323 = vmatprep.subr.mxu0 0.0
  %324 = vmatpush1.xpose.msra.mxu0 0.0
  %325 = vmatprep.subr.mxu0 0.0
  %326 = vmatpush1.xpose.msra.mxu0 0.0
  %327 = vmatprep.subr.mxu0 0.0
  %328 = vmatpush1.xpose.msra.mxu0 0.0
  %329 = vmatprep.subr.mxu0 0.0
  %330 = vmatpush1.xpose.msra.mxu0 0.0
  %331 = vmatprep.subr.mxu0 0.0
  %332 = vmatpush1.xpose.msra.mxu0 %v299
  %333 = vmatprep.subr.mxu0 0.0
  %334 = vmatpush2.xpose.msra.mxu0 0.0
  %335 = vmatprep.subr.mxu0 0.0
  %336 = vmatpush2.xpose.msra.mxu0 0.0
  %337 = vmatprep.subr.mxu0 0.0
  %338 = vmatpush2.xpose.msra.mxu0 0.0
  %339 = vmatprep.subr.mxu0 0.0
  %340 = vmatpush2.xpose.msra.mxu0 0.0
  %341 = vmatprep.subr.mxu0 0.0
  %342 = vmatpush2.xpose.msra.mxu0 0.0
  %343 = vmatprep.subr.mxu0 0.0
  %344 = vmatpush2.xpose.msra.mxu0 0.0
  %345 = vmatprep.subr.mxu0 0.0
  %346 = vmatpush2.xpose.msra.mxu0 0.0
  %347 = vmatprep.subr.mxu0 0.0
  %348 = vmatpush2.xpose.msra.mxu0 0.0
  %349 = vmatprep.subr.mxu0 0.0
  %350 = vmatpush2.xpose.msra.mxu0 0.0
  %351 = vmatprep.subr.mxu0 0.0
  %352 = vmatpush2.xpose.msra.mxu0 0.0
  %353 = vmatprep.subr.mxu0 0.0
  %354 = vmatpush2.xpose.msra.mxu0 0.0
  %355 = vmatprep.subr.mxu0 0.0
  %356 = vmatpush2.xpose.msra.mxu0 0.0
  %357 = vmatprep.subr.mxu0 0.0
  %358 = vmatpush2.xpose.msra.mxu0 0.0
  %359 = vmatprep.subr.mxu0 0.0
  %360 = vmatpush2.xpose.msra.mxu0 0.0
  %361 = vmatprep.subr.mxu0 0.0
  %362 = vmatpush2.xpose.msra.mxu0 0.0
  %363 = vmatprep.subr.mxu0 0.0
  %364 = vmatpush2.xpose.msra.mxu0 0.0
  %365 = vmatprep.mubr.f32.mxu0 0.0
  %366 = vmatmul.mubr.f32.gmra.mxu0 %v296
  %v367 = vpop.f32.mrf.mxu0
  %v368 = vadd.f32 %v17, %v367
  %v369 = vpop.f32.mrf.mxu0
  %370 = vdwg.mxu0
  %v372 = vsel %vm66, %v38, 0
  %v375 = vsel %vm66, %v54, 0
  %377 = vmatprep.subr.mxu0 0.0
  %378 = vmatpush1.xpose.msra.mxu0 0.0
  %379 = vmatprep.subr.mxu0 0.0
  %380 = vmatpush1.xpose.msra.mxu0 0.0
  %381 = vmatprep.subr.mxu0 0.0
  %382 = vmatpush1.xpose.msra.mxu0 0.0
  %383 = vmatprep.subr.mxu0 0.0
  %384 = vmatpush1.xpose.msra.mxu0 0.0
  %385 = vmatprep.subr.mxu0 0.0
  %386 = vmatpush1.xpose.msra.mxu0 0.0
  %387 = vmatprep.subr.mxu0 0.0
  %388 = vmatpush1.xpose.msra.mxu0 0.0
  %389 = vmatprep.subr.mxu0 0.0
  %390 = vmatpush1.xpose.msra.mxu0 0.0
  %391 = vmatprep.subr.mxu0 0.0
  %392 = vmatpush1.xpose.msra.mxu0 0.0
  %393 = vmatprep.subr.mxu0 0.0
  %394 = vmatpush1.xpose.msra.mxu0 0.0
  %395 = vmatprep.subr.mxu0 0.0
  %396 = vmatpush1.xpose.msra.mxu0 0.0
  %397 = vmatprep.subr.mxu0 0.0
  %398 = vmatpush1.xpose.msra.mxu0 0.0
  %399 = vmatprep.subr.mxu0 0.0
  %400 = vmatpush1.xpose.msra.mxu0 0.0
  %401 = vmatprep.subr.mxu0 0.0
  %402 = vmatpush1.xpose.msra.mxu0 0.0
  %403 = vmatprep.subr.mxu0 0.0
  %404 = vmatpush1.xpose.msra.mxu0 0.0
  %405 = vmatprep.subr.mxu0 0.0
  %406 = vmatpush1.xpose.msra.mxu0 0.0
  %407 = vmatprep.subr.mxu0 0.0
  %408 = vmatpush1.xpose.msra.mxu0 %v375
  %409 = vmatprep.subr.mxu0 0.0
  %410 = vmatpush2.xpose.msra.mxu0 0.0
  %411 = vmatprep.subr.mxu0 0.0
  %412 = vmatpush2.xpose.msra.mxu0 0.0
  %413 = vmatprep.subr.mxu0 0.0
  %414 = vmatpush2.xpose.msra.mxu0 0.0
  %415 = vmatprep.subr.mxu0 0.0
  %416 = vmatpush2.xpose.msra.mxu0 0.0
  %417 = vmatprep.subr.mxu0 0.0
  %418 = vmatpush2.xpose.msra.mxu0 0.0
  %419 = vmatprep.subr.mxu0 0.0
  %420 = vmatpush2.xpose.msra.mxu0 0.0
  %421 = vmatprep.subr.mxu0 0.0
  %422 = vmatpush2.xpose.msra.mxu0 0.0
  %423 = vmatprep.subr.mxu0 0.0
  %424 = vmatpush2.xpose.msra.mxu0 0.0
  %425 = vmatprep.subr.mxu0 0.0
  %426 = vmatpush2.xpose.msra.mxu0 0.0
  %427 = vmatprep.subr.mxu0 0.0
  %428 = vmatpush2.xpose.msra.mxu0 0.0
  %429 = vmatprep.subr.mxu0 0.0
  %430 = vmatpush2.xpose.msra.mxu0 0.0
  %431 = vmatprep.subr.mxu0 0.0
  %432 = vmatpush2.xpose.msra.mxu0 0.0
  %433 = vmatprep.subr.mxu0 0.0
  %434 = vmatpush2.xpose.msra.mxu0 0.0
  %435 = vmatprep.subr.mxu0 0.0
  %436 = vmatpush2.xpose.msra.mxu0 0.0
  %437 = vmatprep.subr.mxu0 0.0
  %438 = vmatpush2.xpose.msra.mxu0 0.0
  %439 = vmatprep.subr.mxu0 0.0
  %440 = vmatpush2.xpose.msra.mxu0 0.0
  %441 = vmatprep.mubr.f32.mxu0 0.0
  %442 = vmatmul.mubr.f32.gmra.mxu0 %v372
  %v443 = vpop.f32.mrf.mxu0
  %v444 = vadd.f32 %v17, %v443
  %v445 = vpop.f32.mrf.mxu0
  %446 = vdwg.mxu0
  %v448 = vsel %vm66, %v39, 0
  %v451 = vsel %vm66, %v55, 0
  %453 = vmatprep.subr.mxu0 0.0
  %454 = vmatpush1.xpose.msra.mxu0 0.0
  %455 = vmatprep.subr.mxu0 0.0
  %456 = vmatpush1.xpose.msra.mxu0 0.0
  %457 = vmatprep.subr.mxu0 0.0
  %458 = vmatpush1.xpose.msra.mxu0 0.0
  %459 = vmatprep.subr.mxu0 0.0
  %460 = vmatpush1.xpose.msra.mxu0 0.0
  %461 = vmatprep.subr.mxu0 0.0
  %462 = vmatpush1.xpose.msra.mxu0 0.0
  %463 = vmatprep.subr.mxu0 0.0
  %464 = vmatpush1.xpose.msra.mxu0 0.0
  %465 = vmatprep.subr.mxu0 0.0
  %466 = vmatpush1.xpose.msra.mxu0 0.0
  %467 = vmatprep.subr.mxu0 0.0
  %468 = vmatpush1.xpose.msra.mxu0 0.0
  %469 = vmatprep.subr.mxu0 0.0
  %470 = vmatpush1.xpose.msra.mxu0 0.0
  %471 = vmatprep.subr.mxu0 0.0
  %472 = vmatpush1.xpose.msra.mxu0 0.0
  %473 = vmatprep.subr.mxu0 0.0
  %474 = vmatpush1.xpose.msra.mxu0 0.0
  %475 = vmatprep.subr.mxu0 0.0
  %476 = vmatpush1.xpose.msra.mxu0 0.0
  %477 = vmatprep.subr.mxu0 0.0
  %478 = vmatpush1.xpose.msra.mxu0 0.0
  %479 = vmatprep.subr.mxu0 0.0
  %480 = vmatpush1.xpose.msra.mxu0 0.0
  %481 = vmatprep.subr.mxu0 0.0
  %482 = vmatpush1.xpose.msra.mxu0 0.0
  %483 = vmatprep.subr.mxu0 0.0
  %484 = vmatpush1.xpose.msra.mxu0 %v451
  %485 = vmatprep.subr.mxu0 0.0
  %486 = vmatpush2.xpose.msra.mxu0 0.0
  %487 = vmatprep.subr.mxu0 0.0
  %488 = vmatpush2.xpose.msra.mxu0 0.0
  %489 = vmatprep.subr.mxu0 0.0
  %490 = vmatpush2.xpose.msra.mxu0 0.0
  %491 = vmatprep.subr.mxu0 0.0
  %492 = vmatpush2.xpose.msra.mxu0 0.0
  %493 = vmatprep.subr.mxu0 0.0
  %494 = vmatpush2.xpose.msra.mxu0 0.0
  %495 = vmatprep.subr.mxu0 0.0
  %496 = vmatpush2.xpose.msra.mxu0 0.0
  %497 = vmatprep.subr.mxu0 0.0
  %498 = vmatpush2.xpose.msra.mxu0 0.0
  %499 = vmatprep.subr.mxu0 0.0
  %500 = vmatpush2.xpose.msra.mxu0 0.0
  %501 = vmatprep.subr.mxu0 0.0
  %502 = vmatpush2.xpose.msra.mxu0 0.0
  %503 = vmatprep.subr.mxu0 0.0
  %504 = vmatpush2.xpose.msra.mxu0 0.0
  %505 = vmatprep.subr.mxu0 0.0
  %506 = vmatpush2.xpose.msra.mxu0 0.0
  %507 = vmatprep.subr.mxu0 0.0
  %508 = vmatpush2.xpose.msra.mxu0 0.0
  %509 = vmatprep.subr.mxu0 0.0
  %510 = vmatpush2.xpose.msra.mxu0 0.0
  %511 = vmatprep.subr.mxu0 0.0
  %512 = vmatpush2.xpose.msra.mxu0 0.0
  %513 = vmatprep.subr.mxu0 0.0
  %514 = vmatpush2.xpose.msra.mxu0 0.0
  %515 = vmatprep.subr.mxu0 0.0
  %516 = vmatpush2.xpose.msra.mxu0 0.0
  %517 = vmatprep.mubr.f32.mxu0 0.0
  %518 = vmatmul.mubr.f32.gmra.mxu0 %v448
  %v519 = vpop.f32.mrf.mxu0
  %v520 = vadd.f32 %v17, %v519
  %v521 = vpop.f32.mrf.mxu0
  %522 = vdwg.mxu0
  %v524 = vsel %vm66, %v40, 0
  %v527 = vsel %vm66, %v56, 0
  %529 = vmatprep.subr.mxu0 0.0
  %530 = vmatpush1.xpose.msra.mxu0 0.0
  %531 = vmatprep.subr.mxu0 0.0
  %532 = vmatpush1.xpose.msra.mxu0 0.0
  %533 = vmatprep.subr.mxu0 0.0
  %534 = vmatpush1.xpose.msra.mxu0 0.0
  %535 = vmatprep.subr.mxu0 0.0
  %536 = vmatpush1.xpose.msra.mxu0 0.0
  %537 = vmatprep.subr.mxu0 0.0
  %538 = vmatpush1.xpose.msra.mxu0 0.0
  %539 = vmatprep.subr.mxu0 0.0
  %540 = vmatpush1.xpose.msra.mxu0 0.0
  %541 = vmatprep.subr.mxu0 0.0
  %542 = vmatpush1.xpose.msra.mxu0 0.0
  %543 = vmatprep.subr.mxu0 0.0
  %544 = vmatpush1.xpose.msra.mxu0 0.0
  %545 = vmatprep.subr.mxu0 0.0
  %546 = vmatpush1.xpose.msra.mxu0 0.0
  %547 = vmatprep.subr.mxu0 0.0
  %548 = vmatpush1.xpose.msra.mxu0 0.0
  %549 = vmatprep.subr.mxu0 0.0
  %550 = vmatpush1.xpose.msra.mxu0 0.0
  %551 = vmatprep.subr.mxu0 0.0
  %552 = vmatpush1.xpose.msra.mxu0 0.0
  %553 = vmatprep.subr.mxu0 0.0
  %554 = vmatpush1.xpose.msra.mxu0 0.0
  %555 = vmatprep.subr.mxu0 0.0
  %556 = vmatpush1.xpose.msra.mxu0 0.0
  %557 = vmatprep.subr.mxu0 0.0
  %558 = vmatpush1.xpose.msra.mxu0 0.0
  %559 = vmatprep.subr.mxu0 0.0
  %560 = vmatpush1.xpose.msra.mxu0 %v527
  %561 = vmatprep.subr.mxu0 0.0
  %562 = vmatpush2.xpose.msra.mxu0 0.0
  %563 = vmatprep.subr.mxu0 0.0
  %564 = vmatpush2.xpose.msra.mxu0 0.0
  %565 = vmatprep.subr.mxu0 0.0
  %566 = vmatpush2.xpose.msra.mxu0 0.0
  %567 = vmatprep.subr.mxu0 0.0
  %568 = vmatpush2.xpose.msra.mxu0 0.0
  %569 = vmatprep.subr.mxu0 0.0
  %570 = vmatpush2.xpose.msra.mxu0 0.0
  %571 = vmatprep.subr.mxu0 0.0
  %572 = vmatpush2.xpose.msra.mxu0 0.0
  %573 = vmatprep.subr.mxu0 0.0
  %574 = vmatpush2.xpose.msra.mxu0 0.0
  %575 = vmatprep.subr.mxu0 0.0
  %576 = vmatpush2.xpose.msra.mxu0 0.0
  %577 = vmatprep.subr.mxu0 0.0
  %578 = vmatpush2.xpose.msra.mxu0 0.0
  %579 = vmatprep.subr.mxu0 0.0
  %580 = vmatpush2.xpose.msra.mxu0 0.0
  %581 = vmatprep.subr.mxu0 0.0
  %582 = vmatpush2.xpose.msra.mxu0 0.0
  %583 = vmatprep.subr.mxu0 0.0
  %584 = vmatpush2.xpose.msra.mxu0 0.0
  %585 = vmatprep.subr.mxu0 0.0
  %586 = vmatpush2.xpose.msra.mxu0 0.0
  %587 = vmatprep.subr.mxu0 0.0
  %588 = vmatpush2.xpose.msra.mxu0 0.0
  %589 = vmatprep.subr.mxu0 0.0
  %590 = vmatpush2.xpose.msra.mxu0 0.0
  %591 = vmatprep.subr.mxu0 0.0
  %592 = vmatpush2.xpose.msra.mxu0 0.0
  %593 = vmatprep.mubr.f32.mxu0 0.0
  %594 = vmatmul.mubr.f32.gmra.mxu0 %v524
  %v595 = vpop.f32.mrf.mxu0
  %v596 = vadd.f32 %v17, %v595
  %v597 = vpop.f32.mrf.mxu0
  %598 = vdwg.mxu0
  %v600 = vsel %vm66, %v41, 0
  %v603 = vsel %vm66, %v57, 0
  %605 = vmatprep.subr.mxu0 0.0
  %606 = vmatpush1.xpose.msra.mxu0 0.0
  %607 = vmatprep.subr.mxu0 0.0
  %608 = vmatpush1.xpose.msra.mxu0 0.0
  %609 = vmatprep.subr.mxu0 0.0
  %610 = vmatpush1.xpose.msra.mxu0 0.0
  %611 = vmatprep.subr.mxu0 0.0
  %612 = vmatpush1.xpose.msra.mxu0 0.0
  %613 = vmatprep.subr.mxu0 0.0
  %614 = vmatpush1.xpose.msra.mxu0 0.0
  %615 = vmatprep.subr.mxu0 0.0
  %616 = vmatpush1.xpose.msra.mxu0 0.0
  %617 = vmatprep.subr.mxu0 0.0
  %618 = vmatpush1.xpose.msra.mxu0 0.0
  %619 = vmatprep.subr.mxu0 0.0
  %620 = vmatpush1.xpose.msra.mxu0 0.0
  %621 = vmatprep.subr.mxu0 0.0
  %622 = vmatpush1.xpose.msra.mxu0 0.0
  %623 = vmatprep.subr.mxu0 0.0
  %624 = vmatpush1.xpose.msra.mxu0 0.0
  %625 = vmatprep.subr.mxu0 0.0
  %626 = vmatpush1.xpose.msra.mxu0 0.0
  %627 = vmatprep.subr.mxu0 0.0
  %628 = vmatpush1.xpose.msra.mxu0 0.0
  %629 = vmatprep.subr.mxu0 0.0
  %630 = vmatpush1.xpose.msra.mxu0 0.0
  %631 = vmatprep.subr.mxu0 0.0
  %632 = vmatpush1.xpose.msra.mxu0 0.0
  %633 = vmatprep.subr.mxu0 0.0
  %634 = vmatpush1.xpose.msra.mxu0 0.0
  %635 = vmatprep.subr.mxu0 0.0
  %636 = vmatpush1.xpose.msra.mxu0 %v603
  %637 = vmatprep.subr.mxu0 0.0
  %638 = vmatpush2.xpose.msra.mxu0 0.0
  %639 = vmatprep.subr.mxu0 0.0
  %640 = vmatpush2.xpose.msra.mxu0 0.0
  %641 = vmatprep.subr.mxu0 0.0
  %642 = vmatpush2.xpose.msra.mxu0 0.0
  %643 = vmatprep.subr.mxu0 0.0
  %644 = vmatpush2.xpose.msra.mxu0 0.0
  %645 = vmatprep.subr.mxu0 0.0
  %646 = vmatpush2.xpose.msra.mxu0 0.0
  %647 = vmatprep.subr.mxu0 0.0
  %648 = vmatpush2.xpose.msra.mxu0 0.0
  %649 = vmatprep.subr.mxu0 0.0
  %650 = vmatpush2.xpose.msra.mxu0 0.0
  %651 = vmatprep.subr.mxu0 0.0
  %652 = vmatpush2.xpose.msra.mxu0 0.0
  %653 = vmatprep.subr.mxu0 0.0
  %654 = vmatpush2.xpose.msra.mxu0 0.0
  %655 = vmatprep.subr.mxu0 0.0
  %656 = vmatpush2.xpose.msra.mxu0 0.0
  %657 = vmatprep.subr.mxu0 0.0
  %658 = vmatpush2.xpose.msra.mxu0 0.0
  %659 = vmatprep.subr.mxu0 0.0
  %660 = vmatpush2.xpose.msra.mxu0 0.0
  %661 = vmatprep.subr.mxu0 0.0
  %662 = vmatpush2.xpose.msra.mxu0 0.0
  %663 = vmatprep.subr.mxu0 0.0
  %664 = vmatpush2.xpose.msra.mxu0 0.0
  %665 = vmatprep.subr.mxu0 0.0
  %666 = vmatpush2.xpose.msra.mxu0 0.0
  %667 = vmatprep.subr.mxu0 0.0
  %668 = vmatpush2.xpose.msra.mxu0 0.0
  %669 = vmatprep.mubr.f32.mxu0 0.0
  %670 = vmatmul.mubr.f32.gmra.mxu0 %v600
  %v671 = vpop.f32.mrf.mxu0
  %v672 = vadd.f32 %v17, %v671
  %v673 = vpop.f32.mrf.mxu0
  %674 = vdwg.mxu0
  %v676 = vsel %vm66, %v42, 0
  %v679 = vsel %vm66, %v58, 0
  %681 = vmatprep.subr.mxu0 0.0
  %682 = vmatpush1.xpose.msra.mxu0 0.0
  %683 = vmatprep.subr.mxu0 0.0
  %684 = vmatpush1.xpose.msra.mxu0 0.0
  %685 = vmatprep.subr.mxu0 0.0
  %686 = vmatpush1.xpose.msra.mxu0 0.0
  %687 = vmatprep.subr.mxu0 0.0
  %688 = vmatpush1.xpose.msra.mxu0 0.0
  %689 = vmatprep.subr.mxu0 0.0
  %690 = vmatpush1.xpose.msra.mxu0 0.0
  %691 = vmatprep.subr.mxu0 0.0
  %692 = vmatpush1.xpose.msra.mxu0 0.0
  %693 = vmatprep.subr.mxu0 0.0
  %694 = vmatpush1.xpose.msra.mxu0 0.0
  %695 = vmatprep.subr.mxu0 0.0
  %696 = vmatpush1.xpose.msra.mxu0 0.0
  %697 = vmatprep.subr.mxu0 0.0
  %698 = vmatpush1.xpose.msra.mxu0 0.0
  %699 = vmatprep.subr.mxu0 0.0
  %700 = vmatpush1.xpose.msra.mxu0 0.0
  %701 = vmatprep.subr.mxu0 0.0
  %702 = vmatpush1.xpose.msra.mxu0 0.0
  %703 = vmatprep.subr.mxu0 0.0
  %704 = vmatpush1.xpose.msra.mxu0 0.0
  %705 = vmatprep.subr.mxu0 0.0
  %706 = vmatpush1.xpose.msra.mxu0 0.0
  %707 = vmatprep.subr.mxu0 0.0
  %708 = vmatpush1.xpose.msra.mxu0 0.0
  %709 = vmatprep.subr.mxu0 0.0
  %710 = vmatpush1.xpose.msra.mxu0 0.0
  %711 = vmatprep.subr.mxu0 0.0
  %712 = vmatpush1.xpose.msra.mxu0 %v679
  %713 = vmatprep.subr.mxu0 0.0
  %714 = vmatpush2.xpose.msra.mxu0 0.0
  %715 = vmatprep.subr.mxu0 0.0
  %716 = vmatpush2.xpose.msra.mxu0 0.0
  %717 = vmatprep.subr.mxu0 0.0
  %718 = vmatpush2.xpose.msra.mxu0 0.0
  %719 = vmatprep.subr.mxu0 0.0
  %720 = vmatpush2.xpose.msra.mxu0 0.0
  %721 = vmatprep.subr.mxu0 0.0
  %722 = vmatpush2.xpose.msra.mxu0 0.0
  %723 = vmatprep.subr.mxu0 0.0
  %724 = vmatpush2.xpose.msra.mxu0 0.0
  %725 = vmatprep.subr.mxu0 0.0
  %726 = vmatpush2.xpose.msra.mxu0 0.0
  %727 = vmatprep.subr.mxu0 0.0
  %728 = vmatpush2.xpose.msra.mxu0 0.0
  %729 = vmatprep.subr.mxu0 0.0
  %730 = vmatpush2.xpose.msra.mxu0 0.0
  %731 = vmatprep.subr.mxu0 0.0
  %732 = vmatpush2.xpose.msra.mxu0 0.0
  %733 = vmatprep.subr.mxu0 0.0
  %734 = vmatpush2.xpose.msra.mxu0 0.0
  %735 = vmatprep.subr.mxu0 0.0
  %736 = vmatpush2.xpose.msra.mxu0 0.0
  %737 = vmatprep.subr.mxu0 0.0
  %738 = vmatpush2.xpose.msra.mxu0 0.0
  %739 = vmatprep.subr.mxu0 0.0
  %740 = vmatpush2.xpose.msra.mxu0 0.0
  %741 = vmatprep.subr.mxu0 0.0
  %742 = vmatpush2.xpose.msra.mxu0 0.0
  %743 = vmatprep.subr.mxu0 0.0
  %744 = vmatpush2.xpose.msra.mxu0 0.0
  %745 = vmatprep.mubr.f32.mxu0 0.0
  %746 = vmatmul.mubr.f32.gmra.mxu0 %v676
  %v747 = vpop.f32.mrf.mxu0
  %v748 = vadd.f32 %v17, %v747
  %v749 = vpop.f32.mrf.mxu0
  %750 = vdwg.mxu0
  %v752 = vsel %vm66, %v43, 0
  %v755 = vsel %vm66, %v59, 0
  %757 = vmatprep.subr.mxu0 0.0
  %758 = vmatpush1.xpose.msra.mxu0 0.0
  %759 = vmatprep.subr.mxu0 0.0
  %760 = vmatpush1.xpose.msra.mxu0 0.0
  %761 = vmatprep.subr.mxu0 0.0
  %762 = vmatpush1.xpose.msra.mxu0 0.0
  %763 = vmatprep.subr.mxu0 0.0
  %764 = vmatpush1.xpose.msra.mxu0 0.0
  %765 = vmatprep.subr.mxu0 0.0
  %766 = vmatpush1.xpose.msra.mxu0 0.0
  %767 = vmatprep.subr.mxu0 0.0
  %768 = vmatpush1.xpose.msra.mxu0 0.0
  %769 = vmatprep.subr.mxu0 0.0
  %770 = vmatpush1.xpose.msra.mxu0 0.0
  %771 = vmatprep.subr.mxu0 0.0
  %772 = vmatpush1.xpose.msra.mxu0 0.0
  %773 = vmatprep.subr.mxu0 0.0
  %774 = vmatpush1.xpose.msra.mxu0 0.0
  %775 = vmatprep.subr.mxu0 0.0
  %776 = vmatpush1.xpose.msra.mxu0 0.0
  %777 = vmatprep.subr.mxu0 0.0
  %778 = vmatpush1.xpose.msra.mxu0 0.0
  %779 = vmatprep.subr.mxu0 0.0
  %780 = vmatpush1.xpose.msra.mxu0 0.0
  %781 = vmatprep.subr.mxu0 0.0
  %782 = vmatpush1.xpose.msra.mxu0 0.0
  %783 = vmatprep.subr.mxu0 0.0
  %784 = vmatpush1.xpose.msra.mxu0 0.0
  %785 = vmatprep.subr.mxu0 0.0
  %786 = vmatpush1.xpose.msra.mxu0 0.0
  %787 = vmatprep.subr.mxu0 0.0
  %788 = vmatpush1.xpose.msra.mxu0 %v755
  %789 = vmatprep.subr.mxu0 0.0
  %790 = vmatpush2.xpose.msra.mxu0 0.0
  %791 = vmatprep.subr.mxu0 0.0
  %792 = vmatpush2.xpose.msra.mxu0 0.0
  %793 = vmatprep.subr.mxu0 0.0
  %794 = vmatpush2.xpose.msra.mxu0 0.0
  %795 = vmatprep.subr.mxu0 0.0
  %796 = vmatpush2.xpose.msra.mxu0 0.0
  %797 = vmatprep.subr.mxu0 0.0
  %798 = vmatpush2.xpose.msra.mxu0 0.0
  %799 = vmatprep.subr.mxu0 0.0
  %800 = vmatpush2.xpose.msra.mxu0 0.0
  %801 = vmatprep.subr.mxu0 0.0
  %802 = vmatpush2.xpose.msra.mxu0 0.0
  %803 = vmatprep.subr.mxu0 0.0
  %804 = vmatpush2.xpose.msra.mxu0 0.0
  %805 = vmatprep.subr.mxu0 0.0
  %806 = vmatpush2.xpose.msra.mxu0 0.0
  %807 = vmatprep.subr.mxu0 0.0
  %808 = vmatpush2.xpose.msra.mxu0 0.0
  %809 = vmatprep.subr.mxu0 0.0
  %810 = vmatpush2.xpose.msra.mxu0 0.0
  %811 = vmatprep.subr.mxu0 0.0
  %812 = vmatpush2.xpose.msra.mxu0 0.0
  %813 = vmatprep.subr.mxu0 0.0
  %814 = vmatpush2.xpose.msra.mxu0 0.0
  %815 = vmatprep.subr.mxu0 0.0
  %816 = vmatpush2.xpose.msra.mxu0 0.0
  %817 = vmatprep.subr.mxu0 0.0
  %818 = vmatpush2.xpose.msra.mxu0 0.0
  %819 = vmatprep.subr.mxu0 0.0
  %820 = vmatpush2.xpose.msra.mxu0 0.0
  %821 = vmatprep.mubr.f32.mxu0 0.0
  %822 = vmatmul.mubr.f32.gmra.mxu0 %v752
  %v823 = vpop.f32.mrf.mxu0
  %v824 = vadd.f32 %v17, %v823
  %v825 = vpop.f32.mrf.mxu0
  %826 = vdwg.mxu0
  %v828 = vsel %vm66, %v44, 0
  %v831 = vsel %vm66, %v60, 0
  %833 = vmatprep.subr.mxu0 0.0
  %834 = vmatpush1.xpose.msra.mxu0 0.0
  %835 = vmatprep.subr.mxu0 0.0
  %836 = vmatpush1.xpose.msra.mxu0 0.0
  %837 = vmatprep.subr.mxu0 0.0
  %838 = vmatpush1.xpose.msra.mxu0 0.0
  %839 = vmatprep.subr.mxu0 0.0
  %840 = vmatpush1.xpose.msra.mxu0 0.0
  %841 = vmatprep.subr.mxu0 0.0
  %842 = vmatpush1.xpose.msra.mxu0 0.0
  %843 = vmatprep.subr.mxu0 0.0
  %844 = vmatpush1.xpose.msra.mxu0 0.0
  %845 = vmatprep.subr.mxu0 0.0
  %846 = vmatpush1.xpose.msra.mxu0 0.0
  %847 = vmatprep.subr.mxu0 0.0
  %848 = vmatpush1.xpose.msra.mxu0 0.0
  %849 = vmatprep.subr.mxu0 0.0
  %850 = vmatpush1.xpose.msra.mxu0 0.0
  %851 = vmatprep.subr.mxu0 0.0
  %852 = vmatpush1.xpose.msra.mxu0 0.0
  %853 = vmatprep.subr.mxu0 0.0
  %854 = vmatpush1.xpose.msra.mxu0 0.0
  %855 = vmatprep.subr.mxu0 0.0
  %856 = vmatpush1.xpose.msra.mxu0 0.0
  %857 = vmatprep.subr.mxu0 0.0
  %858 = vmatpush1.xpose.msra.mxu0 0.0
  %859 = vmatprep.subr.mxu0 0.0
  %860 = vmatpush1.xpose.msra.mxu0 0.0
  %861 = vmatprep.subr.mxu0 0.0
  %862 = vmatpush1.xpose.msra.mxu0 0.0
  %863 = vmatprep.subr.mxu0 0.0
  %864 = vmatpush1.xpose.msra.mxu0 %v831
  %865 = vmatprep.subr.mxu0 0.0
  %866 = vmatpush2.xpose.msra.mxu0 0.0
  %867 = vmatprep.subr.mxu0 0.0
  %868 = vmatpush2.xpose.msra.mxu0 0.0
  %869 = vmatprep.subr.mxu0 0.0
  %870 = vmatpush2.xpose.msra.mxu0 0.0
  %871 = vmatprep.subr.mxu0 0.0
  %872 = vmatpush2.xpose.msra.mxu0 0.0
  %873 = vmatprep.subr.mxu0 0.0
  %874 = vmatpush2.xpose.msra.mxu0 0.0
  %875 = vmatprep.subr.mxu0 0.0
  %876 = vmatpush2.xpose.msra.mxu0 0.0
  %877 = vmatprep.subr.mxu0 0.0
  %878 = vmatpush2.xpose.msra.mxu0 0.0
  %879 = vmatprep.subr.mxu0 0.0
  %880 = vmatpush2.xpose.msra.mxu0 0.0
  %881 = vmatprep.subr.mxu0 0.0
  %882 = vmatpush2.xpose.msra.mxu0 0.0
  %883 = vmatprep.subr.mxu0 0.0
  %884 = vmatpush2.xpose.msra.mxu0 0.0
  %885 = vmatprep.subr.mxu0 0.0
  %886 = vmatpush2.xpose.msra.mxu0 0.0
  %887 = vmatprep.subr.mxu0 0.0
  %888 = vmatpush2.xpose.msra.mxu0 0.0
  %889 = vmatprep.subr.mxu0 0.0
  %890 = vmatpush2.xpose.msra.mxu0 0.0
  %891 = vmatprep.subr.mxu0 0.0
  %892 = vmatpush2.xpose.msra.mxu0 0.0
  %893 = vmatprep.subr.mxu0 0.0
  %894 = vmatpush2.xpose.msra.mxu0 0.0
  %895 = vmatprep.subr.mxu0 0.0
  %896 = vmatpush2.xpose.msra.mxu0 0.0
  %897 = vmatprep.mubr.f32.mxu0 0.0
  %898 = vmatmul.mubr.f32.gmra.mxu0 %v828
  %v899 = vpop.f32.mrf.mxu0
  %v900 = vadd.f32 %v17, %v899
  %v901 = vpop.f32.mrf.mxu0
  %902 = vdwg.mxu0
  %v904 = vsel %vm66, %v45, 0
  %v907 = vsel %vm66, %v61, 0
  %909 = vmatprep.subr.mxu0 0.0
  %910 = vmatpush1.xpose.msra.mxu0 0.0
  %911 = vmatprep.subr.mxu0 0.0
  %912 = vmatpush1.xpose.msra.mxu0 0.0
  %913 = vmatprep.subr.mxu0 0.0
  %914 = vmatpush1.xpose.msra.mxu0 0.0
  %915 = vmatprep.subr.mxu0 0.0
  %916 = vmatpush1.xpose.msra.mxu0 0.0
  %917 = vmatprep.subr.mxu0 0.0
  %918 = vmatpush1.xpose.msra.mxu0 0.0
  %919 = vmatprep.subr.mxu0 0.0
  %920 = vmatpush1.xpose.msra.mxu0 0.0
  %921 = vmatprep.subr.mxu0 0.0
  %922 = vmatpush1.xpose.msra.mxu0 0.0
  %923 = vmatprep.subr.mxu0 0.0
  %924 = vmatpush1.xpose.msra.mxu0 0.0
  %925 = vmatprep.subr.mxu0 0.0
  %926 = vmatpush1.xpose.msra.mxu0 0.0
  %927 = vmatprep.subr.mxu0 0.0
  %928 = vmatpush1.xpose.msra.mxu0 0.0
  %929 = vmatprep.subr.mxu0 0.0
  %930 = vmatpush1.xpose.msra.mxu0 0.0
  %931 = vmatprep.subr.mxu0 0.0
  %932 = vmatpush1.xpose.msra.mxu0 0.0
  %933 = vmatprep.subr.mxu0 0.0
  %934 = vmatpush1.xpose.msra.mxu0 0.0
  %935 = vmatprep.subr.mxu0 0.0
  %936 = vmatpush1.xpose.msra.mxu0 0.0
  %937 = vmatprep.subr.mxu0 0.0
  %938 = vmatpush1.xpose.msra.mxu0 0.0
  %939 = vmatprep.subr.mxu0 0.0
  %940 = vmatpush1.xpose.msra.mxu0 %v907
  %941 = vmatprep.subr.mxu0 0.0
  %942 = vmatpush2.xpose.msra.mxu0 0.0
  %943 = vmatprep.subr.mxu0 0.0
  %944 = vmatpush2.xpose.msra.mxu0 0.0
  %945 = vmatprep.subr.mxu0 0.0
  %946 = vmatpush2.xpose.msra.mxu0 0.0
  %947 = vmatprep.subr.mxu0 0.0
  %948 = vmatpush2.xpose.msra.mxu0 0.0
  %949 = vmatprep.subr.mxu0 0.0
  %950 = vmatpush2.xpose.msra.mxu0 0.0
  %951 = vmatprep.subr.mxu0 0.0
  %952 = vmatpush2.xpose.msra.mxu0 0.0
  %953 = vmatprep.subr.mxu0 0.0
  %954 = vmatpush2.xpose.msra.mxu0 0.0
  %955 = vmatprep.subr.mxu0 0.0
  %956 = vmatpush2.xpose.msra.mxu0 0.0
  %957 = vmatprep.subr.mxu0 0.0
  %958 = vmatpush2.xpose.msra.mxu0 0.0
  %959 = vmatprep.subr.mxu0 0.0
  %960 = vmatpush2.xpose.msra.mxu0 0.0
  %961 = vmatprep.subr.mxu0 0.0
  %962 = vmatpush2.xpose.msra.mxu0 0.0
  %963 = vmatprep.subr.mxu0 0.0
  %964 = vmatpush2.xpose.msra.mxu0 0.0
  %965 = vmatprep.subr.mxu0 0.0
  %966 = vmatpush2.xpose.msra.mxu0 0.0
  %967 = vmatprep.subr.mxu0 0.0
  %968 = vmatpush2.xpose.msra.mxu0 0.0
  %969 = vmatprep.subr.mxu0 0.0
  %970 = vmatpush2.xpose.msra.mxu0 0.0
  %971 = vmatprep.subr.mxu0 0.0
  %972 = vmatpush2.xpose.msra.mxu0 0.0
  %973 = vmatprep.mubr.f32.mxu0 0.0
  %974 = vmatmul.mubr.f32.gmra.mxu0 %v904
  %v975 = vpop.f32.mrf.mxu0
  %v976 = vadd.f32 %v17, %v975
  %v977 = vpop.f32.mrf.mxu0
  %978 = vdwg.mxu0
  %v980 = vsel %vm66, %v46, 0
  %v983 = vsel %vm66, %v62, 0
  %985 = vmatprep.subr.mxu0 0.0
  %986 = vmatpush1.xpose.msra.mxu0 0.0
  %987 = vmatprep.subr.mxu0 0.0
  %988 = vmatpush1.xpose.msra.mxu0 0.0
  %989 = vmatprep.subr.mxu0 0.0
  %990 = vmatpush1.xpose.msra.mxu0 0.0
  %991 = vmatprep.subr.mxu0 0.0
  %992 = vmatpush1.xpose.msra.mxu0 0.0
  %993 = vmatprep.subr.mxu0 0.0
  %994 = vmatpush1.xpose.msra.mxu0 0.0
  %995 = vmatprep.subr.mxu0 0.0
  %996 = vmatpush1.xpose.msra.mxu0 0.0
  %997 = vmatprep.subr.mxu0 0.0
  %998 = vmatpush1.xpose.msra.mxu0 0.0
  %999 = vmatprep.subr.mxu0 0.0
  %1000 = vmatpush1.xpose.msra.mxu0 0.0
  %1001 = vmatprep.subr.mxu0 0.0
  %1002 = vmatpush1.xpose.msra.mxu0 0.0
  %1003 = vmatprep.subr.mxu0 0.0
  %1004 = vmatpush1.xpose.msra.mxu0 0.0
  %1005 = vmatprep.subr.mxu0 0.0
  %1006 = vmatpush1.xpose.msra.mxu0 0.0
  %1007 = vmatprep.subr.mxu0 0.0
  %1008 = vmatpush1.xpose.msra.mxu0 0.0
  %1009 = vmatprep.subr.mxu0 0.0
  %1010 = vmatpush1.xpose.msra.mxu0 0.0
  %1011 = vmatprep.subr.mxu0 0.0
  %1012 = vmatpush1.xpose.msra.mxu0 0.0
  %1013 = vmatprep.subr.mxu0 0.0
  %1014 = vmatpush1.xpose.msra.mxu0 0.0
  %1015 = vmatprep.subr.mxu0 0.0
  %1016 = vmatpush1.xpose.msra.mxu0 %v983
  %1017 = vmatprep.subr.mxu0 0.0
  %1018 = vmatpush2.xpose.msra.mxu0 0.0
  %1019 = vmatprep.subr.mxu0 0.0
  %1020 = vmatpush2.xpose.msra.mxu0 0.0
  %1021 = vmatprep.subr.mxu0 0.0
  %1022 = vmatpush2.xpose.msra.mxu0 0.0
  %1023 = vmatprep.subr.mxu0 0.0
  %1024 = vmatpush2.xpose.msra.mxu0 0.0
  %1025 = vmatprep.subr.mxu0 0.0
  %1026 = vmatpush2.xpose.msra.mxu0 0.0
  %1027 = vmatprep.subr.mxu0 0.0
  %1028 = vmatpush2.xpose.msra.mxu0 0.0
  %1029 = vmatprep.subr.mxu0 0.0
  %1030 = vmatpush2.xpose.msra.mxu0 0.0
  %1031 = vmatprep.subr.mxu0 0.0
  %1032 = vmatpush2.xpose.msra.mxu0 0.0
  %1033 = vmatprep.subr.mxu0 0.0
  %1034 = vmatpush2.xpose.msra.mxu0 0.0
  %1035 = vmatprep.subr.mxu0 0.0
  %1036 = vmatpush2.xpose.msra.mxu0 0.0
  %1037 = vmatprep.subr.mxu0 0.0
  %1038 = vmatpush2.xpose.msra.mxu0 0.0
  %1039 = vmatprep.subr.mxu0 0.0
  %1040 = vmatpush2.xpose.msra.mxu0 0.0
  %1041 = vmatprep.subr.mxu0 0.0
  %1042 = vmatpush2.xpose.msra.mxu0 0.0
  %1043 = vmatprep.subr.mxu0 0.0
  %1044 = vmatpush2.xpose.msra.mxu0 0.0
  %1045 = vmatprep.subr.mxu0 0.0
  %1046 = vmatpush2.xpose.msra.mxu0 0.0
  %1047 = vmatprep.subr.mxu0 0.0
  %1048 = vmatpush2.xpose.msra.mxu0 0.0
  %1049 = vmatprep.mubr.f32.mxu0 0.0
  %1050 = vmatmul.mubr.f32.gmra.mxu0 %v980
  %v1051 = vpop.f32.mrf.mxu0
  %v1052 = vadd.f32 %v17, %v1051
  %v1053 = vpop.f32.mrf.mxu0
  %1054 = vdwg.mxu0
  %v1056 = vsel %vm66, %v47, 0
  %v1059 = vsel %vm66, %v63, 0
  %1061 = vmatprep.subr.mxu0 0.0
  %1062 = vmatpush1.xpose.msra.mxu0 0.0
  %1063 = vmatprep.subr.mxu0 0.0
  %1064 = vmatpush1.xpose.msra.mxu0 0.0
  %1065 = vmatprep.subr.mxu0 0.0
  %1066 = vmatpush1.xpose.msra.mxu0 0.0
  %1067 = vmatprep.subr.mxu0 0.0
  %1068 = vmatpush1.xpose.msra.mxu0 0.0
  %1069 = vmatprep.subr.mxu0 0.0
  %1070 = vmatpush1.xpose.msra.mxu0 0.0
  %1071 = vmatprep.subr.mxu0 0.0
  %1072 = vmatpush1.xpose.msra.mxu0 0.0
  %1073 = vmatprep.subr.mxu0 0.0
  %1074 = vmatpush1.xpose.msra.mxu0 0.0
  %1075 = vmatprep.subr.mxu0 0.0
  %1076 = vmatpush1.xpose.msra.mxu0 0.0
  %1077 = vmatprep.subr.mxu0 0.0
  %1078 = vmatpush1.xpose.msra.mxu0 0.0
  %1079 = vmatprep.subr.mxu0 0.0
  %1080 = vmatpush1.xpose.msra.mxu0 0.0
  %1081 = vmatprep.subr.mxu0 0.0
  %1082 = vmatpush1.xpose.msra.mxu0 0.0
  %1083 = vmatprep.subr.mxu0 0.0
  %1084 = vmatpush1.xpose.msra.mxu0 0.0
  %1085 = vmatprep.subr.mxu0 0.0
  %1086 = vmatpush1.xpose.msra.mxu0 0.0
  %1087 = vmatprep.subr.mxu0 0.0
  %1088 = vmatpush1.xpose.msra.mxu0 0.0
  %1089 = vmatprep.subr.mxu0 0.0
  %1090 = vmatpush1.xpose.msra.mxu0 0.0
  %1091 = vmatprep.subr.mxu0 0.0
  %1092 = vmatpush1.xpose.msra.mxu0 %v1059
  %1093 = vmatprep.subr.mxu0 0.0
  %1094 = vmatpush2.xpose.msra.mxu0 0.0
  %1095 = vmatprep.subr.mxu0 0.0
  %1096 = vmatpush2.xpose.msra.mxu0 0.0
  %1097 = vmatprep.subr.mxu0 0.0
  %1098 = vmatpush2.xpose.msra.mxu0 0.0
  %1099 = vmatprep.subr.mxu0 0.0
  %1100 = vmatpush2.xpose.msra.mxu0 0.0
  %1101 = vmatprep.subr.mxu0 0.0
  %1102 = vmatpush2.xpose.msra.mxu0 0.0
  %1103 = vmatprep.subr.mxu0 0.0
  %1104 = vmatpush2.xpose.msra.mxu0 0.0
  %1105 = vmatprep.subr.mxu0 0.0
  %1106 = vmatpush2.xpose.msra.mxu0 0.0
  %1107 = vmatprep.subr.mxu0 0.0
  %1108 = vmatpush2.xpose.msra.mxu0 0.0
  %1109 = vmatprep.subr.mxu0 0.0
  %1110 = vmatpush2.xpose.msra.mxu0 0.0
  %1111 = vmatprep.subr.mxu0 0.0
  %1112 = vmatpush2.xpose.msra.mxu0 0.0
  %1113 = vmatprep.subr.mxu0 0.0
  %1114 = vmatpush2.xpose.msra.mxu0 0.0
  %1115 = vmatprep.subr.mxu0 0.0
  %1116 = vmatpush2.xpose.msra.mxu0 0.0
  %1117 = vmatprep.subr.mxu0 0.0
  %1118 = vmatpush2.xpose.msra.mxu0 0.0
  %1119 = vmatprep.subr.mxu0 0.0
  %1120 = vmatpush2.xpose.msra.mxu0 0.0
  %1121 = vmatprep.subr.mxu0 0.0
  %1122 = vmatpush2.xpose.msra.mxu0 0.0
  %1123 = vmatprep.subr.mxu0 0.0
  %1124 = vmatpush2.xpose.msra.mxu0 0.0
  %1125 = vmatprep.mubr.f32.mxu0 0.0
  %1126 = vmatmul.mubr.f32.gmra.mxu0 %v1056
  %v1127 = vpop.f32.mrf.mxu0
  %v1128 = vadd.f32 %v17, %v1127
  %v1129 = vpop.f32.mrf.mxu0
  %1130 = vdwg.mxu0
  %v1132 = vsel %vm66, %v48, 0
  %v1135 = vsel %vm66, %v64, 0
  %1137 = vmatprep.subr.mxu0 0.0
  %1138 = vmatpush1.xpose.msra.mxu0 0.0
  %1139 = vmatprep.subr.mxu0 0.0
  %1140 = vmatpush1.xpose.msra.mxu0 0.0
  %1141 = vmatprep.subr.mxu0 0.0
  %1142 = vmatpush1.xpose.msra.mxu0 0.0
  %1143 = vmatprep.subr.mxu0 0.0
  %1144 = vmatpush1.xpose.msra.mxu0 0.0
  %1145 = vmatprep.subr.mxu0 0.0
  %1146 = vmatpush1.xpose.msra.mxu0 0.0
  %1147 = vmatprep.subr.mxu0 0.0
  %1148 = vmatpush1.xpose.msra.mxu0 0.0
  %1149 = vmatprep.subr.mxu0 0.0
  %1150 = vmatpush1.xpose.msra.mxu0 0.0
  %1151 = vmatprep.subr.mxu0 0.0
  %1152 = vmatpush1.xpose.msra.mxu0 0.0
  %1153 = vmatprep.subr.mxu0 0.0
  %1154 = vmatpush1.xpose.msra.mxu0 0.0
  %1155 = vmatprep.subr.mxu0 0.0
  %1156 = vmatpush1.xpose.msra.mxu0 0.0
  %1157 = vmatprep.subr.mxu0 0.0
  %1158 = vmatpush1.xpose.msra.mxu0 0.0
  %1159 = vmatprep.subr.mxu0 0.0
  %1160 = vmatpush1.xpose.msra.mxu0 0.0
  %1161 = vmatprep.subr.mxu0 0.0
  %1162 = vmatpush1.xpose.msra.mxu0 0.0
  %1163 = vmatprep.subr.mxu0 0.0
  %1164 = vmatpush1.xpose.msra.mxu0 0.0
  %1165 = vmatprep.subr.mxu0 0.0
  %1166 = vmatpush1.xpose.msra.mxu0 0.0
  %1167 = vmatprep.subr.mxu0 0.0
  %1168 = vmatpush1.xpose.msra.mxu0 %v1135
  %1169 = vmatprep.subr.mxu0 0.0
  %1170 = vmatpush2.xpose.msra.mxu0 0.0
  %1171 = vmatprep.subr.mxu0 0.0
  %1172 = vmatpush2.xpose.msra.mxu0 0.0
  %1173 = vmatprep.subr.mxu0 0.0
  %1174 = vmatpush2.xpose.msra.mxu0 0.0
  %1175 = vmatprep.subr.mxu0 0.0
  %1176 = vmatpush2.xpose.msra.mxu0 0.0
  %1177 = vmatprep.subr.mxu0 0.0
  %1178 = vmatpush2.xpose.msra.mxu0 0.0
  %1179 = vmatprep.subr.mxu0 0.0
  %1180 = vmatpush2.xpose.msra.mxu0 0.0
  %1181 = vmatprep.subr.mxu0 0.0
  %1182 = vmatpush2.xpose.msra.mxu0 0.0
  %1183 = vmatprep.subr.mxu0 0.0
  %1184 = vmatpush2.xpose.msra.mxu0 0.0
  %1185 = vmatprep.subr.mxu0 0.0
  %1186 = vmatpush2.xpose.msra.mxu0 0.0
  %1187 = vmatprep.subr.mxu0 0.0
  %1188 = vmatpush2.xpose.msra.mxu0 0.0
  %1189 = vmatprep.subr.mxu0 0.0
  %1190 = vmatpush2.xpose.msra.mxu0 0.0
  %1191 = vmatprep.subr.mxu0 0.0
  %1192 = vmatpush2.xpose.msra.mxu0 0.0
  %1193 = vmatprep.subr.mxu0 0.0
  %1194 = vmatpush2.xpose.msra.mxu0 0.0
  %1195 = vmatprep.subr.mxu0 0.0
  %1196 = vmatpush2.xpose.msra.mxu0 0.0
  %1197 = vmatprep.subr.mxu0 0.0
  %1198 = vmatpush2.xpose.msra.mxu0 0.0
  %1199 = vmatprep.subr.mxu0 0.0
  %1200 = vmatpush2.xpose.msra.mxu0 0.0
  %1201 = vmatprep.mubr.f32.mxu0 0.0
  %1202 = vmatmul.mubr.f32.gmra.mxu0 %v1132
  %v1203 = vpop.f32.mrf.mxu0
  %v1204 = vadd.f32 %v17, %v1203
  %v1205 = vpop.f32.mrf.mxu0
  %1206 = vdwg.mxu0
  %v1208 = vsel %vm66, %v49, 0
  %v1211 = vsel %vm66, %v65, 0
  %1213 = vmatprep.subr.mxu0 0.0
  %1214 = vmatpush1.xpose.msra.mxu0 0.0
  %1215 = vmatprep.subr.mxu0 0.0
  %1216 = vmatpush1.xpose.msra.mxu0 0.0
  %1217 = vmatprep.subr.mxu0 0.0
  %1218 = vmatpush1.xpose.msra.mxu0 0.0
  %1219 = vmatprep.subr.mxu0 0.0
  %1220 = vmatpush1.xpose.msra.mxu0 0.0
  %1221 = vmatprep.subr.mxu0 0.0
  %1222 = vmatpush1.xpose.msra.mxu0 0.0
  %1223 = vmatprep.subr.mxu0 0.0
  %1224 = vmatpush1.xpose.msra.mxu0 0.0
  %1225 = vmatprep.subr.mxu0 0.0
  %1226 = vmatpush1.xpose.msra.mxu0 0.0
  %1227 = vmatprep.subr.mxu0 0.0
  %1228 = vmatpush1.xpose.msra.mxu0 0.0
  %1229 = vmatprep.subr.mxu0 0.0
  %1230 = vmatpush1.xpose.msra.mxu0 0.0
  %1231 = vmatprep.subr.mxu0 0.0
  %1232 = vmatpush1.xpose.msra.mxu0 0.0
  %1233 = vmatprep.subr.mxu0 0.0
  %1234 = vmatpush1.xpose.msra.mxu0 0.0
  %1235 = vmatprep.subr.mxu0 0.0
  %1236 = vmatpush1.xpose.msra.mxu0 0.0
  %1237 = vmatprep.subr.mxu0 0.0
  %1238 = vmatpush1.xpose.msra.mxu0 0.0
  %1239 = vmatprep.subr.mxu0 0.0
  %1240 = vmatpush1.xpose.msra.mxu0 0.0
  %1241 = vmatprep.subr.mxu0 0.0
  %1242 = vmatpush1.xpose.msra.mxu0 0.0
  %1243 = vmatprep.subr.mxu0 0.0
  %1244 = vmatpush1.xpose.msra.mxu0 %v1211
  %1245 = vmatprep.subr.mxu0 0.0
  %1246 = vmatpush2.xpose.msra.mxu0 0.0
  %1247 = vmatprep.subr.mxu0 0.0
  %1248 = vmatpush2.xpose.msra.mxu0 0.0
  %1249 = vmatprep.subr.mxu0 0.0
  %1250 = vmatpush2.xpose.msra.mxu0 0.0
  %1251 = vmatprep.subr.mxu0 0.0
  %1252 = vmatpush2.xpose.msra.mxu0 0.0
  %1253 = vmatprep.subr.mxu0 0.0
  %1254 = vmatpush2.xpose.msra.mxu0 0.0
  %1255 = vmatprep.subr.mxu0 0.0
  %1256 = vmatpush2.xpose.msra.mxu0 0.0
  %1257 = vmatprep.subr.mxu0 0.0
  %1258 = vmatpush2.xpose.msra.mxu0 0.0
  %1259 = vmatprep.subr.mxu0 0.0
  %1260 = vmatpush2.xpose.msra.mxu0 0.0
  %1261 = vmatprep.subr.mxu0 0.0
  %1262 = vmatpush2.xpose.msra.mxu0 0.0
  %1263 = vmatprep.subr.mxu0 0.0
  %1264 = vmatpush2.xpose.msra.mxu0 0.0
  %1265 = vmatprep.subr.mxu0 0.0
  %1266 = vmatpush2.xpose.msra.mxu0 0.0
  %1267 = vmatprep.subr.mxu0 0.0
  %1268 = vmatpush2.xpose.msra.mxu0 0.0
  %1269 = vmatprep.subr.mxu0 0.0
  %1270 = vmatpush2.xpose.msra.mxu0 0.0
  %1271 = vmatprep.subr.mxu0 0.0
  %1272 = vmatpush2.xpose.msra.mxu0 0.0
  %1273 = vmatprep.subr.mxu0 0.0
  %1274 = vmatpush2.xpose.msra.mxu0 0.0
  %1275 = vmatprep.subr.mxu0 0.0
  %1276 = vmatpush2.xpose.msra.mxu0 0.0
  %1277 = vmatprep.mubr.f32.mxu0 0.0
  %1278 = vmatmul.mubr.f32.gmra.mxu0 %v1208
  %v1279 = vpop.f32.mrf.mxu0
  %v1280 = vadd.f32 %v17, %v1279
  %v1281 = vpop.f32.mrf.mxu0
  %1282 = vdwg.mxu0
  %v1283 = vsel %vm66, %v140, -inf
  %1284 = vmax.xlane.f32.xlu0 %v1283
  %v1285 = vpop.xlane.xlu0 %1284
  %v1286 = vsel %vm66, %v216, -inf
  %1287 = vmax.xlane.f32.xlu0 %v1286
  %v1288 = vpop.xlane.xlu0 %1287
  %v1289 = vsel %vm66, %v292, -inf
  %1290 = vmax.xlane.f32.xlu0 %v1289
  %v1291 = vpop.xlane.xlu0 %1290
  %v1292 = vsel %vm66, %v368, -inf
  %1293 = vmax.xlane.f32.xlu0 %v1292
  %v1294 = vpop.xlane.xlu0 %1293
  %v1295 = vsel %vm66, %v444, -inf
  %1296 = vmax.xlane.f32.xlu0 %v1295
  %v1297 = vpop.xlane.xlu0 %1296
  %v1298 = vsel %vm66, %v520, -inf
  %1299 = vmax.xlane.f32.xlu0 %v1298
  %v1300 = vpop.xlane.xlu0 %1299
  %v1301 = vsel %vm66, %v596, -inf
  %1302 = vmax.xlane.f32.xlu0 %v1301
  %v1303 = vpop.xlane.xlu0 %1302
  %v1304 = vsel %vm66, %v672, -inf
  %1305 = vmax.xlane.f32.xlu0 %v1304
  %v1306 = vpop.xlane.xlu0 %1305
  %v1307 = vsel %vm66, %v748, -inf
  %1308 = vmax.xlane.f32.xlu0 %v1307
  %v1309 = vpop.xlane.xlu0 %1308
  %v1310 = vsel %vm66, %v824, -inf
  %1311 = vmax.xlane.f32.xlu0 %v1310
  %v1312 = vpop.xlane.xlu0 %1311
  %v1313 = vsel %vm66, %v900, -inf
  %1314 = vmax.xlane.f32.xlu0 %v1313
  %v1315 = vpop.xlane.xlu0 %1314
  %v1316 = vsel %vm66, %v976, -inf
  %1317 = vmax.xlane.f32.xlu0 %v1316
  %v1318 = vpop.xlane.xlu0 %1317
  %v1319 = vsel %vm66, %v1052, -inf
  %1320 = vmax.xlane.f32.xlu0 %v1319
  %v1321 = vpop.xlane.xlu0 %1320
  %v1322 = vsel %vm66, %v1128, -inf
  %1323 = vmax.xlane.f32.xlu0 %v1322
  %v1324 = vpop.xlane.xlu0 %1323
  %v1325 = vsel %vm66, %v1204, -inf
  %1326 = vmax.xlane.f32.xlu0 %v1325
  %v1327 = vpop.xlane.xlu0 %1326
  %v1328 = vsel %vm66, %v1280, -inf
  %1329 = vmax.xlane.f32.xlu0 %v1328
  %v1330 = vpop.xlane.xlu0 %1329
  %v1331 = vsub.f32 %v140, %v1285
  %v1332 = vsub.f32 %v216, %v1288
  %v1333 = vsub.f32 %v292, %v1291
  %v1334 = vsub.f32 %v368, %v1294
  %v1335 = vsub.f32 %v444, %v1297
  %v1336 = vsub.f32 %v520, %v1300
  %v1337 = vsub.f32 %v596, %v1303
  %v1338 = vsub.f32 %v672, %v1306
  %v1339 = vsub.f32 %v748, %v1309
  %v1340 = vsub.f32 %v824, %v1312
  %v1341 = vsub.f32 %v900, %v1315
  %v1342 = vsub.f32 %v976, %v1318
  %v1343 = vsub.f32 %v1052, %v1321
  %v1344 = vsub.f32 %v1128, %v1324
  %v1345 = vsub.f32 %v1204, %v1327
  %v1346 = vsub.f32 %v1280, %v1330
  %v1347 = vmul.f32 %v1331, 1.442695
  %v1348 = vpow.pop %v1347
  %v1349 = vmul.f32 %v1332, 1.442695
  %v1350 = vpow.pop %v1349
  %v1351 = vmul.f32 %v1333, 1.442695
  %v1352 = vpow.pop %v1351
  %v1353 = vmul.f32 %v1334, 1.442695
  %v1354 = vpow.pop %v1353
  %v1355 = vmul.f32 %v1335, 1.442695
  %v1356 = vpow.pop %v1355
  %v1357 = vmul.f32 %v1336, 1.442695
  %v1358 = vpow.pop %v1357
  %v1359 = vmul.f32 %v1337, 1.442695
  %v1360 = vpow.pop %v1359
  %v1361 = vmul.f32 %v1338, 1.442695
  %v1362 = vpow.pop %v1361
  %v1363 = vmul.f32 %v1339, 1.442695
  %v1364 = vpow.pop %v1363
  %v1365 = vmul.f32 %v1340, 1.442695
  %v1366 = vpow.pop %v1365
  %v1367 = vmul.f32 %v1341, 1.442695
  %v1368 = vpow.pop %v1367
  %v1369 = vmul.f32 %v1342, 1.442695
  %v1370 = vpow.pop %v1369
  %v1371 = vmul.f32 %v1343, 1.442695
  %v1372 = vpow.pop %v1371
  %v1373 = vmul.f32 %v1344, 1.442695
  %v1374 = vpow.pop %v1373
  %v1375 = vmul.f32 %v1345, 1.442695
  %v1376 = vpow.pop %v1375
  %v1377 = vmul.f32 %v1346, 1.442695
  %v1378 = vpow.pop %v1377
  %v1379 = vsel %vm66, %v1348, 0.0
  %1380 = vadd.xlane.f32.xlu0 %v1379
  %v1381 = vpop.xlane.xlu0 %1380
  %v1382 = vsel %vm66, %v1350, 0.0
  %1383 = vadd.xlane.f32.xlu0 %v1382
  %v1384 = vpop.xlane.xlu0 %1383
  %v1385 = vsel %vm66, %v1352, 0.0
  %1386 = vadd.xlane.f32.xlu0 %v1385
  %v1387 = vpop.xlane.xlu0 %1386
  %v1388 = vsel %vm66, %v1354, 0.0
  %1389 = vadd.xlane.f32.xlu0 %v1388
  %v1390 = vpop.xlane.xlu0 %1389
  %v1391 = vsel %vm66, %v1356, 0.0
  %1392 = vadd.xlane.f32.xlu0 %v1391
  %v1393 = vpop.xlane.xlu0 %1392
  %v1394 = vsel %vm66, %v1358, 0.0
  %1395 = vadd.xlane.f32.xlu0 %v1394
  %v1396 = vpop.xlane.xlu0 %1395
  %v1397 = vsel %vm66, %v1360, 0.0
  %1398 = vadd.xlane.f32.xlu0 %v1397
  %v1399 = vpop.xlane.xlu0 %1398
  %v1400 = vsel %vm66, %v1362, 0.0
  %1401 = vadd.xlane.f32.xlu0 %v1400
  %v1402 = vpop.xlane.xlu0 %1401
  %v1403 = vsel %vm66, %v1364, 0.0
  %1404 = vadd.xlane.f32.xlu0 %v1403
  %v1405 = vpop.xlane.xlu0 %1404
  %v1406 = vsel %vm66, %v1366, 0.0
  %1407 = vadd.xlane.f32.xlu0 %v1406
  %v1408 = vpop.xlane.xlu0 %1407
  %v1409 = vsel %vm66, %v1368, 0.0
  %1410 = vadd.xlane.f32.xlu0 %v1409
  %v1411 = vpop.xlane.xlu0 %1410
  %v1412 = vsel %vm66, %v1370, 0.0
  %1413 = vadd.xlane.f32.xlu0 %v1412
  %v1414 = vpop.xlane.xlu0 %1413
  %v1415 = vsel %vm66, %v1372, 0.0
  %1416 = vadd.xlane.f32.xlu0 %v1415
  %v1417 = vpop.xlane.xlu0 %1416
  %v1418 = vsel %vm66, %v1374, 0.0
  %1419 = vadd.xlane.f32.xlu0 %v1418
  %v1420 = vpop.xlane.xlu0 %1419
  %v1421 = vsel %vm66, %v1376, 0.0
  %1422 = vadd.xlane.f32.xlu0 %v1421
  %v1423 = vpop.xlane.xlu0 %1422
  %v1424 = vsel %vm66, %v1378, 0.0
  %1425 = vadd.xlane.f32.xlu0 %v1424
  %v1426 = vpop.xlane.xlu0 %1425
  %v1427 = vrcp.pop %v1381
  %v1428 = vrcp.pop %v1384
  %v1429 = vrcp.pop %v1387
  %v1430 = vrcp.pop %v1390
  %v1431 = vrcp.pop %v1393
  %v1432 = vrcp.pop %v1396
  %v1433 = vrcp.pop %v1399
  %v1434 = vrcp.pop %v1402
  %v1435 = vrcp.pop %v1405
  %v1436 = vrcp.pop %v1408
  %v1437 = vrcp.pop %v1411
  %v1438 = vrcp.pop %v1414
  %v1439 = vrcp.pop %v1417
  %v1440 = vrcp.pop %v1420
  %v1441 = vrcp.pop %v1423
  %v1442 = vrcp.pop %v1426
  %v1443 = vmul.f32 %v1348, %v1427
  %v1444 = vmul.f32 %v1350, %v1428
  %v1445 = vmul.f32 %v1352, %v1429
  %v1446 = vmul.f32 %v1354, %v1430
  %v1447 = vmul.f32 %v1356, %v1431
  %v1448 = vmul.f32 %v1358, %v1432
  %v1449 = vmul.f32 %v1360, %v1433
  %v1450 = vmul.f32 %v1362, %v1434
  %v1451 = vmul.f32 %v1364, %v1435
  %v1452 = vmul.f32 %v1366, %v1436
  %v1453 = vmul.f32 %v1368, %v1437
  %v1454 = vmul.f32 %v1370, %v1438
  %v1455 = vmul.f32 %v1372, %v1439
  %v1456 = vmul.f32 %v1374, %v1440
  %v1457 = vmul.f32 %v1376, %v1441
  %v1458 = vmul.f32 %v1378, %v1442
  %v1459 = vld [vmem:[%s2] sm:$0xff]
  %v1460 = vld [vmem:[%s2 + $0x8] sm:$0xff]
  %v1461 = vld [vmem:[%s2 + $0x10] sm:$0xff]
  %v1462 = vld [vmem:[%s2 + $0x18] sm:$0xff]
  %v1463 = vld [vmem:[%s2 + $0x20] sm:$0xff]
  %v1464 = vld [vmem:[%s2 + $0x28] sm:$0xff]
  %v1465 = vld [vmem:[%s2 + $0x30] sm:$0xff]
  %v1466 = vld [vmem:[%s2 + $0x38] sm:$0xff]
  %v1467 = vld [vmem:[%s2 + $0x40] sm:$0xff]
  %v1468 = vld [vmem:[%s2 + $0x48] sm:$0xff]
  %v1469 = vld [vmem:[%s2 + $0x50] sm:$0xff]
  %v1470 = vld [vmem:[%s2 + $0x58] sm:$0xff]
  %v1471 = vld [vmem:[%s2 + $0x60] sm:$0xff]
  %v1472 = vld [vmem:[%s2 + $0x68] sm:$0xff]
  %v1473 = vld [vmem:[%s2 + $0x70] sm:$0xff]
  %v1474 = vld [vmem:[%s2 + $0x78] sm:$0xff]
  %v1476 = vsel %vm66, %v1443, 0
  %1478 = vmatprep.subr.mxu0 0.0
  %1479 = vmatpush1.msra.mxu0 0.0
  %1480 = vmatprep.subr.mxu0 0.0
  %1481 = vmatpush1.msra.mxu0 0.0
  %1482 = vmatprep.subr.mxu0 0.0
  %1483 = vmatpush1.msra.mxu0 0.0
  %1484 = vmatprep.subr.mxu0 0.0
  %1485 = vmatpush1.msra.mxu0 0.0
  %1486 = vmatprep.subr.mxu0 0.0
  %1487 = vmatpush1.msra.mxu0 0.0
  %1488 = vmatprep.subr.mxu0 0.0
  %1489 = vmatpush1.msra.mxu0 0.0
  %1490 = vmatprep.subr.mxu0 0.0
  %1491 = vmatpush1.msra.mxu0 0.0
  %1492 = vmatprep.subr.mxu0 0.0
  %1493 = vmatpush1.msra.mxu0 0.0
  %1494 = vmatprep.subr.mxu0 0.0
  %1495 = vmatpush1.msra.mxu0 0.0
  %1496 = vmatprep.subr.mxu0 0.0
  %1497 = vmatpush1.msra.mxu0 0.0
  %1498 = vmatprep.subr.mxu0 0.0
  %1499 = vmatpush1.msra.mxu0 0.0
  %1500 = vmatprep.subr.mxu0 0.0
  %1501 = vmatpush1.msra.mxu0 0.0
  %1502 = vmatprep.subr.mxu0 0.0
  %1503 = vmatpush1.msra.mxu0 0.0
  %1504 = vmatprep.subr.mxu0 0.0
  %1505 = vmatpush1.msra.mxu0 0.0
  %1506 = vmatprep.subr.mxu0 0.0
  %1507 = vmatpush1.msra.mxu0 0.0
  %1508 = vmatprep.subr.mxu0 0.0
  %1509 = vmatpush1.msra.mxu0 %v1459
  %1510 = vmatprep.subr.mxu0 0.0
  %1511 = vmatpush2.msra.mxu0 0.0
  %1512 = vmatprep.subr.mxu0 0.0
  %1513 = vmatpush2.msra.mxu0 0.0
  %1514 = vmatprep.subr.mxu0 0.0
  %1515 = vmatpush2.msra.mxu0 0.0
  %1516 = vmatprep.subr.mxu0 0.0
  %1517 = vmatpush2.msra.mxu0 0.0
  %1518 = vmatprep.subr.mxu0 0.0
  %1519 = vmatpush2.msra.mxu0 0.0
  %1520 = vmatprep.subr.mxu0 0.0
  %1521 = vmatpush2.msra.mxu0 0.0
  %1522 = vmatprep.subr.mxu0 0.0
  %1523 = vmatpush2.msra.mxu0 0.0
  %1524 = vmatprep.subr.mxu0 0.0
  %1525 = vmatpush2.msra.mxu0 0.0
  %1526 = vmatprep.subr.mxu0 0.0
  %1527 = vmatpush2.msra.mxu0 0.0
  %1528 = vmatprep.subr.mxu0 0.0
  %1529 = vmatpush2.msra.mxu0 0.0
  %1530 = vmatprep.subr.mxu0 0.0
  %1531 = vmatpush2.msra.mxu0 0.0
  %1532 = vmatprep.subr.mxu0 0.0
  %1533 = vmatpush2.msra.mxu0 0.0
  %1534 = vmatprep.subr.mxu0 0.0
  %1535 = vmatpush2.msra.mxu0 0.0
  %1536 = vmatprep.subr.mxu0 0.0
  %1537 = vmatpush2.msra.mxu0 0.0
  %1538 = vmatprep.subr.mxu0 0.0
  %1539 = vmatpush2.msra.mxu0 0.0
  %1540 = vmatprep.subr.mxu0 0.0
  %1541 = vmatpush2.msra.mxu0 0.0
  %1542 = vmatprep.mubr.f32.mxu0 0.0
  %1543 = vmatmul.mubr.f32.gmra.mxu0 %v1476
  %v1544 = vpop.f32.mrf.mxu0
  %v1545 = vadd.f32 0.0, %v1544
  %v1546 = vpop.f32.mrf.mxu0
  %1547 = vdwg.mxu0
  %v1549 = vsel %vm66, %v1444, 0
  %1551 = vmatprep.subr.mxu0 0.0
  %1552 = vmatpush1.msra.mxu0 0.0
  %1553 = vmatprep.subr.mxu0 0.0
  %1554 = vmatpush1.msra.mxu0 0.0
  %1555 = vmatprep.subr.mxu0 0.0
  %1556 = vmatpush1.msra.mxu0 0.0
  %1557 = vmatprep.subr.mxu0 0.0
  %1558 = vmatpush1.msra.mxu0 0.0
  %1559 = vmatprep.subr.mxu0 0.0
  %1560 = vmatpush1.msra.mxu0 0.0
  %1561 = vmatprep.subr.mxu0 0.0
  %1562 = vmatpush1.msra.mxu0 0.0
  %1563 = vmatprep.subr.mxu0 0.0
  %1564 = vmatpush1.msra.mxu0 0.0
  %1565 = vmatprep.subr.mxu0 0.0
  %1566 = vmatpush1.msra.mxu0 0.0
  %1567 = vmatprep.subr.mxu0 0.0
  %1568 = vmatpush1.msra.mxu0 0.0
  %1569 = vmatprep.subr.mxu0 0.0
  %1570 = vmatpush1.msra.mxu0 0.0
  %1571 = vmatprep.subr.mxu0 0.0
  %1572 = vmatpush1.msra.mxu0 0.0
  %1573 = vmatprep.subr.mxu0 0.0
  %1574 = vmatpush1.msra.mxu0 0.0
  %1575 = vmatprep.subr.mxu0 0.0
  %1576 = vmatpush1.msra.mxu0 0.0
  %1577 = vmatprep.subr.mxu0 0.0
  %1578 = vmatpush1.msra.mxu0 0.0
  %1579 = vmatprep.subr.mxu0 0.0
  %1580 = vmatpush1.msra.mxu0 0.0
  %1581 = vmatprep.subr.mxu0 0.0
  %1582 = vmatpush1.msra.mxu0 %v1460
  %1583 = vmatprep.subr.mxu0 0.0
  %1584 = vmatpush2.msra.mxu0 0.0
  %1585 = vmatprep.subr.mxu0 0.0
  %1586 = vmatpush2.msra.mxu0 0.0
  %1587 = vmatprep.subr.mxu0 0.0
  %1588 = vmatpush2.msra.mxu0 0.0
  %1589 = vmatprep.subr.mxu0 0.0
  %1590 = vmatpush2.msra.mxu0 0.0
  %1591 = vmatprep.subr.mxu0 0.0
  %1592 = vmatpush2.msra.mxu0 0.0
  %1593 = vmatprep.subr.mxu0 0.0
  %1594 = vmatpush2.msra.mxu0 0.0
  %1595 = vmatprep.subr.mxu0 0.0
  %1596 = vmatpush2.msra.mxu0 0.0
  %1597 = vmatprep.subr.mxu0 0.0
  %1598 = vmatpush2.msra.mxu0 0.0
  %1599 = vmatprep.subr.mxu0 0.0
  %1600 = vmatpush2.msra.mxu0 0.0
  %1601 = vmatprep.subr.mxu0 0.0
  %1602 = vmatpush2.msra.mxu0 0.0
  %1603 = vmatprep.subr.mxu0 0.0
  %1604 = vmatpush2.msra.mxu0 0.0
  %1605 = vmatprep.subr.mxu0 0.0
  %1606 = vmatpush2.msra.mxu0 0.0
  %1607 = vmatprep.subr.mxu0 0.0
  %1608 = vmatpush2.msra.mxu0 0.0
  %1609 = vmatprep.subr.mxu0 0.0
  %1610 = vmatpush2.msra.mxu0 0.0
  %1611 = vmatprep.subr.mxu0 0.0
  %1612 = vmatpush2.msra.mxu0 0.0
  %1613 = vmatprep.subr.mxu0 0.0
  %1614 = vmatpush2.msra.mxu0 0.0
  %1615 = vmatprep.mubr.f32.mxu0 0.0
  %1616 = vmatmul.mubr.f32.gmra.mxu0 %v1549
  %v1617 = vpop.f32.mrf.mxu0
  %v1618 = vadd.f32 0.0, %v1617
  %v1619 = vpop.f32.mrf.mxu0
  %1620 = vdwg.mxu0
  %v1622 = vsel %vm66, %v1445, 0
  %1624 = vmatprep.subr.mxu0 0.0
  %1625 = vmatpush1.msra.mxu0 0.0
  %1626 = vmatprep.subr.mxu0 0.0
  %1627 = vmatpush1.msra.mxu0 0.0
  %1628 = vmatprep.subr.mxu0 0.0
  %1629 = vmatpush1.msra.mxu0 0.0
  %1630 = vmatprep.subr.mxu0 0.0
  %1631 = vmatpush1.msra.mxu0 0.0
  %1632 = vmatprep.subr.mxu0 0.0
  %1633 = vmatpush1.msra.mxu0 0.0
  %1634 = vmatprep.subr.mxu0 0.0
  %1635 = vmatpush1.msra.mxu0 0.0
  %1636 = vmatprep.subr.mxu0 0.0
  %1637 = vmatpush1.msra.mxu0 0.0
  %1638 = vmatprep.subr.mxu0 0.0
  %1639 = vmatpush1.msra.mxu0 0.0
  %1640 = vmatprep.subr.mxu0 0.0
  %1641 = vmatpush1.msra.mxu0 0.0
  %1642 = vmatprep.subr.mxu0 0.0
  %1643 = vmatpush1.msra.mxu0 0.0
  %1644 = vmatprep.subr.mxu0 0.0
  %1645 = vmatpush1.msra.mxu0 0.0
  %1646 = vmatprep.subr.mxu0 0.0
  %1647 = vmatpush1.msra.mxu0 0.0
  %1648 = vmatprep.subr.mxu0 0.0
  %1649 = vmatpush1.msra.mxu0 0.0
  %1650 = vmatprep.subr.mxu0 0.0
  %1651 = vmatpush1.msra.mxu0 0.0
  %1652 = vmatprep.subr.mxu0 0.0
  %1653 = vmatpush1.msra.mxu0 0.0
  %1654 = vmatprep.subr.mxu0 0.0
  %1655 = vmatpush1.msra.mxu0 %v1461
  %1656 = vmatprep.subr.mxu0 0.0
  %1657 = vmatpush2.msra.mxu0 0.0
  %1658 = vmatprep.subr.mxu0 0.0
  %1659 = vmatpush2.msra.mxu0 0.0
  %1660 = vmatprep.subr.mxu0 0.0
  %1661 = vmatpush2.msra.mxu0 0.0
  %1662 = vmatprep.subr.mxu0 0.0
  %1663 = vmatpush2.msra.mxu0 0.0
  %1664 = vmatprep.subr.mxu0 0.0
  %1665 = vmatpush2.msra.mxu0 0.0
  %1666 = vmatprep.subr.mxu0 0.0
  %1667 = vmatpush2.msra.mxu0 0.0
  %1668 = vmatprep.subr.mxu0 0.0
  %1669 = vmatpush2.msra.mxu0 0.0
  %1670 = vmatprep.subr.mxu0 0.0
  %1671 = vmatpush2.msra.mxu0 0.0
  %1672 = vmatprep.subr.mxu0 0.0
  %1673 = vmatpush2.msra.mxu0 0.0
  %1674 = vmatprep.subr.mxu0 0.0
  %1675 = vmatpush2.msra.mxu0 0.0
  %1676 = vmatprep.subr.mxu0 0.0
  %1677 = vmatpush2.msra.mxu0 0.0
  %1678 = vmatprep.subr.mxu0 0.0
  %1679 = vmatpush2.msra.mxu0 0.0
  %1680 = vmatprep.subr.mxu0 0.0
  %1681 = vmatpush2.msra.mxu0 0.0
  %1682 = vmatprep.subr.mxu0 0.0
  %1683 = vmatpush2.msra.mxu0 0.0
  %1684 = vmatprep.subr.mxu0 0.0
  %1685 = vmatpush2.msra.mxu0 0.0
  %1686 = vmatprep.subr.mxu0 0.0
  %1687 = vmatpush2.msra.mxu0 0.0
  %1688 = vmatprep.mubr.f32.mxu0 0.0
  %1689 = vmatmul.mubr.f32.gmra.mxu0 %v1622
  %v1690 = vpop.f32.mrf.mxu0
  %v1691 = vadd.f32 0.0, %v1690
  %v1692 = vpop.f32.mrf.mxu0
  %1693 = vdwg.mxu0
  %v1695 = vsel %vm66, %v1446, 0
  %1697 = vmatprep.subr.mxu0 0.0
  %1698 = vmatpush1.msra.mxu0 0.0
  %1699 = vmatprep.subr.mxu0 0.0
  %1700 = vmatpush1.msra.mxu0 0.0
  %1701 = vmatprep.subr.mxu0 0.0
  %1702 = vmatpush1.msra.mxu0 0.0
  %1703 = vmatprep.subr.mxu0 0.0
  %1704 = vmatpush1.msra.mxu0 0.0
  %1705 = vmatprep.subr.mxu0 0.0
  %1706 = vmatpush1.msra.mxu0 0.0
  %1707 = vmatprep.subr.mxu0 0.0
  %1708 = vmatpush1.msra.mxu0 0.0
  %1709 = vmatprep.subr.mxu0 0.0
  %1710 = vmatpush1.msra.mxu0 0.0
  %1711 = vmatprep.subr.mxu0 0.0
  %1712 = vmatpush1.msra.mxu0 0.0
  %1713 = vmatprep.subr.mxu0 0.0
  %1714 = vmatpush1.msra.mxu0 0.0
  %1715 = vmatprep.subr.mxu0 0.0
  %1716 = vmatpush1.msra.mxu0 0.0
  %1717 = vmatprep.subr.mxu0 0.0
  %1718 = vmatpush1.msra.mxu0 0.0
  %1719 = vmatprep.subr.mxu0 0.0
  %1720 = vmatpush1.msra.mxu0 0.0
  %1721 = vmatprep.subr.mxu0 0.0
  %1722 = vmatpush1.msra.mxu0 0.0
  %1723 = vmatprep.subr.mxu0 0.0
  %1724 = vmatpush1.msra.mxu0 0.0
  %1725 = vmatprep.subr.mxu0 0.0
  %1726 = vmatpush1.msra.mxu0 0.0
  %1727 = vmatprep.subr.mxu0 0.0
  %1728 = vmatpush1.msra.mxu0 %v1462
  %1729 = vmatprep.subr.mxu0 0.0
  %1730 = vmatpush2.msra.mxu0 0.0
  %1731 = vmatprep.subr.mxu0 0.0
  %1732 = vmatpush2.msra.mxu0 0.0
  %1733 = vmatprep.subr.mxu0 0.0
  %1734 = vmatpush2.msra.mxu0 0.0
  %1735 = vmatprep.subr.mxu0 0.0
  %1736 = vmatpush2.msra.mxu0 0.0
  %1737 = vmatprep.subr.mxu0 0.0
  %1738 = vmatpush2.msra.mxu0 0.0
  %1739 = vmatprep.subr.mxu0 0.0
  %1740 = vmatpush2.msra.mxu0 0.0
  %1741 = vmatprep.subr.mxu0 0.0
  %1742 = vmatpush2.msra.mxu0 0.0
  %1743 = vmatprep.subr.mxu0 0.0
  %1744 = vmatpush2.msra.mxu0 0.0
  %1745 = vmatprep.subr.mxu0 0.0
  %1746 = vmatpush2.msra.mxu0 0.0
  %1747 = vmatprep.subr.mxu0 0.0
  %1748 = vmatpush2.msra.mxu0 0.0
  %1749 = vmatprep.subr.mxu0 0.0
  %1750 = vmatpush2.msra.mxu0 0.0
  %1751 = vmatprep.subr.mxu0 0.0
  %1752 = vmatpush2.msra.mxu0 0.0
  %1753 = vmatprep.subr.mxu0 0.0
  %1754 = vmatpush2.msra.mxu0 0.0
  %1755 = vmatprep.subr.mxu0 0.0
  %1756 = vmatpush2.msra.mxu0 0.0
  %1757 = vmatprep.subr.mxu0 0.0
  %1758 = vmatpush2.msra.mxu0 0.0
  %1759 = vmatprep.subr.mxu0 0.0
  %1760 = vmatpush2.msra.mxu0 0.0
  %1761 = vmatprep.mubr.f32.mxu0 0.0
  %1762 = vmatmul.mubr.f32.gmra.mxu0 %v1695
  %v1763 = vpop.f32.mrf.mxu0
  %v1764 = vadd.f32 0.0, %v1763
  %v1765 = vpop.f32.mrf.mxu0
  %1766 = vdwg.mxu0
  %v1768 = vsel %vm66, %v1447, 0
  %1770 = vmatprep.subr.mxu0 0.0
  %1771 = vmatpush1.msra.mxu0 0.0
  %1772 = vmatprep.subr.mxu0 0.0
  %1773 = vmatpush1.msra.mxu0 0.0
  %1774 = vmatprep.subr.mxu0 0.0
  %1775 = vmatpush1.msra.mxu0 0.0
  %1776 = vmatprep.subr.mxu0 0.0
  %1777 = vmatpush1.msra.mxu0 0.0
  %1778 = vmatprep.subr.mxu0 0.0
  %1779 = vmatpush1.msra.mxu0 0.0
  %1780 = vmatprep.subr.mxu0 0.0
  %1781 = vmatpush1.msra.mxu0 0.0
  %1782 = vmatprep.subr.mxu0 0.0
  %1783 = vmatpush1.msra.mxu0 0.0
  %1784 = vmatprep.subr.mxu0 0.0
  %1785 = vmatpush1.msra.mxu0 0.0
  %1786 = vmatprep.subr.mxu0 0.0
  %1787 = vmatpush1.msra.mxu0 0.0
  %1788 = vmatprep.subr.mxu0 0.0
  %1789 = vmatpush1.msra.mxu0 0.0
  %1790 = vmatprep.subr.mxu0 0.0
  %1791 = vmatpush1.msra.mxu0 0.0
  %1792 = vmatprep.subr.mxu0 0.0
  %1793 = vmatpush1.msra.mxu0 0.0
  %1794 = vmatprep.subr.mxu0 0.0
  %1795 = vmatpush1.msra.mxu0 0.0
  %1796 = vmatprep.subr.mxu0 0.0
  %1797 = vmatpush1.msra.mxu0 0.0
  %1798 = vmatprep.subr.mxu0 0.0
  %1799 = vmatpush1.msra.mxu0 0.0
  %1800 = vmatprep.subr.mxu0 0.0
  %1801 = vmatpush1.msra.mxu0 %v1463
  %1802 = vmatprep.subr.mxu0 0.0
  %1803 = vmatpush2.msra.mxu0 0.0
  %1804 = vmatprep.subr.mxu0 0.0
  %1805 = vmatpush2.msra.mxu0 0.0
  %1806 = vmatprep.subr.mxu0 0.0
  %1807 = vmatpush2.msra.mxu0 0.0
  %1808 = vmatprep.subr.mxu0 0.0
  %1809 = vmatpush2.msra.mxu0 0.0
  %1810 = vmatprep.subr.mxu0 0.0
  %1811 = vmatpush2.msra.mxu0 0.0
  %1812 = vmatprep.subr.mxu0 0.0
  %1813 = vmatpush2.msra.mxu0 0.0
  %1814 = vmatprep.subr.mxu0 0.0
  %1815 = vmatpush2.msra.mxu0 0.0
  %1816 = vmatprep.subr.mxu0 0.0
  %1817 = vmatpush2.msra.mxu0 0.0
  %1818 = vmatprep.subr.mxu0 0.0
  %1819 = vmatpush2.msra.mxu0 0.0
  %1820 = vmatprep.subr.mxu0 0.0
  %1821 = vmatpush2.msra.mxu0 0.0
  %1822 = vmatprep.subr.mxu0 0.0
  %1823 = vmatpush2.msra.mxu0 0.0
  %1824 = vmatprep.subr.mxu0 0.0
  %1825 = vmatpush2.msra.mxu0 0.0
  %1826 = vmatprep.subr.mxu0 0.0
  %1827 = vmatpush2.msra.mxu0 0.0
  %1828 = vmatprep.subr.mxu0 0.0
  %1829 = vmatpush2.msra.mxu0 0.0
  %1830 = vmatprep.subr.mxu0 0.0
  %1831 = vmatpush2.msra.mxu0 0.0
  %1832 = vmatprep.subr.mxu0 0.0
  %1833 = vmatpush2.msra.mxu0 0.0
  %1834 = vmatprep.mubr.f32.mxu0 0.0
  %1835 = vmatmul.mubr.f32.gmra.mxu0 %v1768
  %v1836 = vpop.f32.mrf.mxu0
  %v1837 = vadd.f32 0.0, %v1836
  %v1838 = vpop.f32.mrf.mxu0
  %1839 = vdwg.mxu0
  %v1841 = vsel %vm66, %v1448, 0
  %1843 = vmatprep.subr.mxu0 0.0
  %1844 = vmatpush1.msra.mxu0 0.0
  %1845 = vmatprep.subr.mxu0 0.0
  %1846 = vmatpush1.msra.mxu0 0.0
  %1847 = vmatprep.subr.mxu0 0.0
  %1848 = vmatpush1.msra.mxu0 0.0
  %1849 = vmatprep.subr.mxu0 0.0
  %1850 = vmatpush1.msra.mxu0 0.0
  %1851 = vmatprep.subr.mxu0 0.0
  %1852 = vmatpush1.msra.mxu0 0.0
  %1853 = vmatprep.subr.mxu0 0.0
  %1854 = vmatpush1.msra.mxu0 0.0
  %1855 = vmatprep.subr.mxu0 0.0
  %1856 = vmatpush1.msra.mxu0 0.0
  %1857 = vmatprep.subr.mxu0 0.0
  %1858 = vmatpush1.msra.mxu0 0.0
  %1859 = vmatprep.subr.mxu0 0.0
  %1860 = vmatpush1.msra.mxu0 0.0
  %1861 = vmatprep.subr.mxu0 0.0
  %1862 = vmatpush1.msra.mxu0 0.0
  %1863 = vmatprep.subr.mxu0 0.0
  %1864 = vmatpush1.msra.mxu0 0.0
  %1865 = vmatprep.subr.mxu0 0.0
  %1866 = vmatpush1.msra.mxu0 0.0
  %1867 = vmatprep.subr.mxu0 0.0
  %1868 = vmatpush1.msra.mxu0 0.0
  %1869 = vmatprep.subr.mxu0 0.0
  %1870 = vmatpush1.msra.mxu0 0.0
  %1871 = vmatprep.subr.mxu0 0.0
  %1872 = vmatpush1.msra.mxu0 0.0
  %1873 = vmatprep.subr.mxu0 0.0
  %1874 = vmatpush1.msra.mxu0 %v1464
  %1875 = vmatprep.subr.mxu0 0.0
  %1876 = vmatpush2.msra.mxu0 0.0
  %1877 = vmatprep.subr.mxu0 0.0
  %1878 = vmatpush2.msra.mxu0 0.0
  %1879 = vmatprep.subr.mxu0 0.0
  %1880 = vmatpush2.msra.mxu0 0.0
  %1881 = vmatprep.subr.mxu0 0.0
  %1882 = vmatpush2.msra.mxu0 0.0
  %1883 = vmatprep.subr.mxu0 0.0
  %1884 = vmatpush2.msra.mxu0 0.0
  %1885 = vmatprep.subr.mxu0 0.0
  %1886 = vmatpush2.msra.mxu0 0.0
  %1887 = vmatprep.subr.mxu0 0.0
  %1888 = vmatpush2.msra.mxu0 0.0
  %1889 = vmatprep.subr.mxu0 0.0
  %1890 = vmatpush2.msra.mxu0 0.0
  %1891 = vmatprep.subr.mxu0 0.0
  %1892 = vmatpush2.msra.mxu0 0.0
  %1893 = vmatprep.subr.mxu0 0.0
  %1894 = vmatpush2.msra.mxu0 0.0
  %1895 = vmatprep.subr.mxu0 0.0
  %1896 = vmatpush2.msra.mxu0 0.0
  %1897 = vmatprep.subr.mxu0 0.0
  %1898 = vmatpush2.msra.mxu0 0.0
  %1899 = vmatprep.subr.mxu0 0.0
  %1900 = vmatpush2.msra.mxu0 0.0
  %1901 = vmatprep.subr.mxu0 0.0
  %1902 = vmatpush2.msra.mxu0 0.0
  %1903 = vmatprep.subr.mxu0 0.0
  %1904 = vmatpush2.msra.mxu0 0.0
  %1905 = vmatprep.subr.mxu0 0.0
  %1906 = vmatpush2.msra.mxu0 0.0
  %1907 = vmatprep.mubr.f32.mxu0 0.0
  %1908 = vmatmul.mubr.f32.gmra.mxu0 %v1841
  %v1909 = vpop.f32.mrf.mxu0
  %v1910 = vadd.f32 0.0, %v1909
  %v1911 = vpop.f32.mrf.mxu0
  %1912 = vdwg.mxu0
  %v1914 = vsel %vm66, %v1449, 0
  %1916 = vmatprep.subr.mxu0 0.0
  %1917 = vmatpush1.msra.mxu0 0.0
  %1918 = vmatprep.subr.mxu0 0.0
  %1919 = vmatpush1.msra.mxu0 0.0
  %1920 = vmatprep.subr.mxu0 0.0
  %1921 = vmatpush1.msra.mxu0 0.0
  %1922 = vmatprep.subr.mxu0 0.0
  %1923 = vmatpush1.msra.mxu0 0.0
  %1924 = vmatprep.subr.mxu0 0.0
  %1925 = vmatpush1.msra.mxu0 0.0
  %1926 = vmatprep.subr.mxu0 0.0
  %1927 = vmatpush1.msra.mxu0 0.0
  %1928 = vmatprep.subr.mxu0 0.0
  %1929 = vmatpush1.msra.mxu0 0.0
  %1930 = vmatprep.subr.mxu0 0.0
  %1931 = vmatpush1.msra.mxu0 0.0
  %1932 = vmatprep.subr.mxu0 0.0
  %1933 = vmatpush1.msra.mxu0 0.0
  %1934 = vmatprep.subr.mxu0 0.0
  %1935 = vmatpush1.msra.mxu0 0.0
  %1936 = vmatprep.subr.mxu0 0.0
  %1937 = vmatpush1.msra.mxu0 0.0
  %1938 = vmatprep.subr.mxu0 0.0
  %1939 = vmatpush1.msra.mxu0 0.0
  %1940 = vmatprep.subr.mxu0 0.0
  %1941 = vmatpush1.msra.mxu0 0.0
  %1942 = vmatprep.subr.mxu0 0.0
  %1943 = vmatpush1.msra.mxu0 0.0
  %1944 = vmatprep.subr.mxu0 0.0
  %1945 = vmatpush1.msra.mxu0 0.0
  %1946 = vmatprep.subr.mxu0 0.0
  %1947 = vmatpush1.msra.mxu0 %v1465
  %1948 = vmatprep.subr.mxu0 0.0
  %1949 = vmatpush2.msra.mxu0 0.0
  %1950 = vmatprep.subr.mxu0 0.0
  %1951 = vmatpush2.msra.mxu0 0.0
  %1952 = vmatprep.subr.mxu0 0.0
  %1953 = vmatpush2.msra.mxu0 0.0
  %1954 = vmatprep.subr.mxu0 0.0
  %1955 = vmatpush2.msra.mxu0 0.0
  %1956 = vmatprep.subr.mxu0 0.0
  %1957 = vmatpush2.msra.mxu0 0.0
  %1958 = vmatprep.subr.mxu0 0.0
  %1959 = vmatpush2.msra.mxu0 0.0
  %1960 = vmatprep.subr.mxu0 0.0
  %1961 = vmatpush2.msra.mxu0 0.0
  %1962 = vmatprep.subr.mxu0 0.0
  %1963 = vmatpush2.msra.mxu0 0.0
  %1964 = vmatprep.subr.mxu0 0.0
  %1965 = vmatpush2.msra.mxu0 0.0
  %1966 = vmatprep.subr.mxu0 0.0
  %1967 = vmatpush2.msra.mxu0 0.0
  %1968 = vmatprep.subr.mxu0 0.0
  %1969 = vmatpush2.msra.mxu0 0.0
  %1970 = vmatprep.subr.mxu0 0.0
  %1971 = vmatpush2.msra.mxu0 0.0
  %1972 = vmatprep.subr.mxu0 0.0
  %1973 = vmatpush2.msra.mxu0 0.0
  %1974 = vmatprep.subr.mxu0 0.0
  %1975 = vmatpush2.msra.mxu0 0.0
  %1976 = vmatprep.subr.mxu0 0.0
  %1977 = vmatpush2.msra.mxu0 0.0
  %1978 = vmatprep.subr.mxu0 0.0
  %1979 = vmatpush2.msra.mxu0 0.0
  %1980 = vmatprep.mubr.f32.mxu0 0.0
  %1981 = vmatmul.mubr.f32.gmra.mxu0 %v1914
  %v1982 = vpop.f32.mrf.mxu0
  %v1983 = vadd.f32 0.0, %v1982
  %v1984 = vpop.f32.mrf.mxu0
  %1985 = vdwg.mxu0
  %v1987 = vsel %vm66, %v1450, 0
  %1989 = vmatprep.subr.mxu0 0.0
  %1990 = vmatpush1.msra.mxu0 0.0
  %1991 = vmatprep.subr.mxu0 0.0
  %1992 = vmatpush1.msra.mxu0 0.0
  %1993 = vmatprep.subr.mxu0 0.0
  %1994 = vmatpush1.msra.mxu0 0.0
  %1995 = vmatprep.subr.mxu0 0.0
  %1996 = vmatpush1.msra.mxu0 0.0
  %1997 = vmatprep.subr.mxu0 0.0
  %1998 = vmatpush1.msra.mxu0 0.0
  %1999 = vmatprep.subr.mxu0 0.0
  %2000 = vmatpush1.msra.mxu0 0.0
  %2001 = vmatprep.subr.mxu0 0.0
  %2002 = vmatpush1.msra.mxu0 0.0
  %2003 = vmatprep.subr.mxu0 0.0
  %2004 = vmatpush1.msra.mxu0 0.0
  %2005 = vmatprep.subr.mxu0 0.0
  %2006 = vmatpush1.msra.mxu0 0.0
  %2007 = vmatprep.subr.mxu0 0.0
  %2008 = vmatpush1.msra.mxu0 0.0
  %2009 = vmatprep.subr.mxu0 0.0
  %2010 = vmatpush1.msra.mxu0 0.0
  %2011 = vmatprep.subr.mxu0 0.0
  %2012 = vmatpush1.msra.mxu0 0.0
  %2013 = vmatprep.subr.mxu0 0.0
  %2014 = vmatpush1.msra.mxu0 0.0
  %2015 = vmatprep.subr.mxu0 0.0
  %2016 = vmatpush1.msra.mxu0 0.0
  %2017 = vmatprep.subr.mxu0 0.0
  %2018 = vmatpush1.msra.mxu0 0.0
  %2019 = vmatprep.subr.mxu0 0.0
  %2020 = vmatpush1.msra.mxu0 %v1466
  %2021 = vmatprep.subr.mxu0 0.0
  %2022 = vmatpush2.msra.mxu0 0.0
  %2023 = vmatprep.subr.mxu0 0.0
  %2024 = vmatpush2.msra.mxu0 0.0
  %2025 = vmatprep.subr.mxu0 0.0
  %2026 = vmatpush2.msra.mxu0 0.0
  %2027 = vmatprep.subr.mxu0 0.0
  %2028 = vmatpush2.msra.mxu0 0.0
  %2029 = vmatprep.subr.mxu0 0.0
  %2030 = vmatpush2.msra.mxu0 0.0
  %2031 = vmatprep.subr.mxu0 0.0
  %2032 = vmatpush2.msra.mxu0 0.0
  %2033 = vmatprep.subr.mxu0 0.0
  %2034 = vmatpush2.msra.mxu0 0.0
  %2035 = vmatprep.subr.mxu0 0.0
  %2036 = vmatpush2.msra.mxu0 0.0
  %2037 = vmatprep.subr.mxu0 0.0
  %2038 = vmatpush2.msra.mxu0 0.0
  %2039 = vmatprep.subr.mxu0 0.0
  %2040 = vmatpush2.msra.mxu0 0.0
  %2041 = vmatprep.subr.mxu0 0.0
  %2042 = vmatpush2.msra.mxu0 0.0
  %2043 = vmatprep.subr.mxu0 0.0
  %2044 = vmatpush2.msra.mxu0 0.0
  %2045 = vmatprep.subr.mxu0 0.0
  %2046 = vmatpush2.msra.mxu0 0.0
  %2047 = vmatprep.subr.mxu0 0.0
  %2048 = vmatpush2.msra.mxu0 0.0
  %2049 = vmatprep.subr.mxu0 0.0
  %2050 = vmatpush2.msra.mxu0 0.0
  %2051 = vmatprep.subr.mxu0 0.0
  %2052 = vmatpush2.msra.mxu0 0.0
  %2053 = vmatprep.mubr.f32.mxu0 0.0
  %2054 = vmatmul.mubr.f32.gmra.mxu0 %v1987
  %v2055 = vpop.f32.mrf.mxu0
  %v2056 = vadd.f32 0.0, %v2055
  %v2057 = vpop.f32.mrf.mxu0
  %2058 = vdwg.mxu0
  %v2060 = vsel %vm66, %v1451, 0
  %2062 = vmatprep.subr.mxu0 0.0
  %2063 = vmatpush1.msra.mxu0 0.0
  %2064 = vmatprep.subr.mxu0 0.0
  %2065 = vmatpush1.msra.mxu0 0.0
  %2066 = vmatprep.subr.mxu0 0.0
  %2067 = vmatpush1.msra.mxu0 0.0
  %2068 = vmatprep.subr.mxu0 0.0
  %2069 = vmatpush1.msra.mxu0 0.0
  %2070 = vmatprep.subr.mxu0 0.0
  %2071 = vmatpush1.msra.mxu0 0.0
  %2072 = vmatprep.subr.mxu0 0.0
  %2073 = vmatpush1.msra.mxu0 0.0
  %2074 = vmatprep.subr.mxu0 0.0
  %2075 = vmatpush1.msra.mxu0 0.0
  %2076 = vmatprep.subr.mxu0 0.0
  %2077 = vmatpush1.msra.mxu0 0.0
  %2078 = vmatprep.subr.mxu0 0.0
  %2079 = vmatpush1.msra.mxu0 0.0
  %2080 = vmatprep.subr.mxu0 0.0
  %2081 = vmatpush1.msra.mxu0 0.0
  %2082 = vmatprep.subr.mxu0 0.0
  %2083 = vmatpush1.msra.mxu0 0.0
  %2084 = vmatprep.subr.mxu0 0.0
  %2085 = vmatpush1.msra.mxu0 0.0
  %2086 = vmatprep.subr.mxu0 0.0
  %2087 = vmatpush1.msra.mxu0 0.0
  %2088 = vmatprep.subr.mxu0 0.0
  %2089 = vmatpush1.msra.mxu0 0.0
  %2090 = vmatprep.subr.mxu0 0.0
  %2091 = vmatpush1.msra.mxu0 0.0
  %2092 = vmatprep.subr.mxu0 0.0
  %2093 = vmatpush1.msra.mxu0 %v1467
  %2094 = vmatprep.subr.mxu0 0.0
  %2095 = vmatpush2.msra.mxu0 0.0
  %2096 = vmatprep.subr.mxu0 0.0
  %2097 = vmatpush2.msra.mxu0 0.0
  %2098 = vmatprep.subr.mxu0 0.0
  %2099 = vmatpush2.msra.mxu0 0.0
  %2100 = vmatprep.subr.mxu0 0.0
  %2101 = vmatpush2.msra.mxu0 0.0
  %2102 = vmatprep.subr.mxu0 0.0
  %2103 = vmatpush2.msra.mxu0 0.0
  %2104 = vmatprep.subr.mxu0 0.0
  %2105 = vmatpush2.msra.mxu0 0.0
  %2106 = vmatprep.subr.mxu0 0.0
  %2107 = vmatpush2.msra.mxu0 0.0
  %2108 = vmatprep.subr.mxu0 0.0
  %2109 = vmatpush2.msra.mxu0 0.0
  %2110 = vmatprep.subr.mxu0 0.0
  %2111 = vmatpush2.msra.mxu0 0.0
  %2112 = vmatprep.subr.mxu0 0.0
  %2113 = vmatpush2.msra.mxu0 0.0
  %2114 = vmatprep.subr.mxu0 0.0
  %2115 = vmatpush2.msra.mxu0 0.0
  %2116 = vmatprep.subr.mxu0 0.0
  %2117 = vmatpush2.msra.mxu0 0.0
  %2118 = vmatprep.subr.mxu0 0.0
  %2119 = vmatpush2.msra.mxu0 0.0
  %2120 = vmatprep.subr.mxu0 0.0
  %2121 = vmatpush2.msra.mxu0 0.0
  %2122 = vmatprep.subr.mxu0 0.0
  %2123 = vmatpush2.msra.mxu0 0.0
  %2124 = vmatprep.subr.mxu0 0.0
  %2125 = vmatpush2.msra.mxu0 0.0
  %2126 = vmatprep.mubr.f32.mxu0 0.0
  %2127 = vmatmul.mubr.f32.gmra.mxu0 %v2060
  %v2128 = vpop.f32.mrf.mxu0
  %v2129 = vadd.f32 0.0, %v2128
  %v2130 = vpop.f32.mrf.mxu0
  %2131 = vdwg.mxu0
  %v2133 = vsel %vm66, %v1452, 0
  %2135 = vmatprep.subr.mxu0 0.0
  %2136 = vmatpush1.msra.mxu0 0.0
  %2137 = vmatprep.subr.mxu0 0.0
  %2138 = vmatpush1.msra.mxu0 0.0
  %2139 = vmatprep.subr.mxu0 0.0
  %2140 = vmatpush1.msra.mxu0 0.0
  %2141 = vmatprep.subr.mxu0 0.0
  %2142 = vmatpush1.msra.mxu0 0.0
  %2143 = vmatprep.subr.mxu0 0.0
  %2144 = vmatpush1.msra.mxu0 0.0
  %2145 = vmatprep.subr.mxu0 0.0
  %2146 = vmatpush1.msra.mxu0 0.0
  %2147 = vmatprep.subr.mxu0 0.0
  %2148 = vmatpush1.msra.mxu0 0.0
  %2149 = vmatprep.subr.mxu0 0.0
  %2150 = vmatpush1.msra.mxu0 0.0
  %2151 = vmatprep.subr.mxu0 0.0
  %2152 = vmatpush1.msra.mxu0 0.0
  %2153 = vmatprep.subr.mxu0 0.0
  %2154 = vmatpush1.msra.mxu0 0.0
  %2155 = vmatprep.subr.mxu0 0.0
  %2156 = vmatpush1.msra.mxu0 0.0
  %2157 = vmatprep.subr.mxu0 0.0
  %2158 = vmatpush1.msra.mxu0 0.0
  %2159 = vmatprep.subr.mxu0 0.0
  %2160 = vmatpush1.msra.mxu0 0.0
  %2161 = vmatprep.subr.mxu0 0.0
  %2162 = vmatpush1.msra.mxu0 0.0
  %2163 = vmatprep.subr.mxu0 0.0
  %2164 = vmatpush1.msra.mxu0 0.0
  %2165 = vmatprep.subr.mxu0 0.0
  %2166 = vmatpush1.msra.mxu0 %v1468
  %2167 = vmatprep.subr.mxu0 0.0
  %2168 = vmatpush2.msra.mxu0 0.0
  %2169 = vmatprep.subr.mxu0 0.0
  %2170 = vmatpush2.msra.mxu0 0.0
  %2171 = vmatprep.subr.mxu0 0.0
  %2172 = vmatpush2.msra.mxu0 0.0
  %2173 = vmatprep.subr.mxu0 0.0
  %2174 = vmatpush2.msra.mxu0 0.0
  %2175 = vmatprep.subr.mxu0 0.0
  %2176 = vmatpush2.msra.mxu0 0.0
  %2177 = vmatprep.subr.mxu0 0.0
  %2178 = vmatpush2.msra.mxu0 0.0
  %2179 = vmatprep.subr.mxu0 0.0
  %2180 = vmatpush2.msra.mxu0 0.0
  %2181 = vmatprep.subr.mxu0 0.0
  %2182 = vmatpush2.msra.mxu0 0.0
  %2183 = vmatprep.subr.mxu0 0.0
  %2184 = vmatpush2.msra.mxu0 0.0
  %2185 = vmatprep.subr.mxu0 0.0
  %2186 = vmatpush2.msra.mxu0 0.0
  %2187 = vmatprep.subr.mxu0 0.0
  %2188 = vmatpush2.msra.mxu0 0.0
  %2189 = vmatprep.subr.mxu0 0.0
  %2190 = vmatpush2.msra.mxu0 0.0
  %2191 = vmatprep.subr.mxu0 0.0
  %2192 = vmatpush2.msra.mxu0 0.0
  %2193 = vmatprep.subr.mxu0 0.0
  %2194 = vmatpush2.msra.mxu0 0.0
  %2195 = vmatprep.subr.mxu0 0.0
  %2196 = vmatpush2.msra.mxu0 0.0
  %2197 = vmatprep.subr.mxu0 0.0
  %2198 = vmatpush2.msra.mxu0 0.0
  %2199 = vmatprep.mubr.f32.mxu0 0.0
  %2200 = vmatmul.mubr.f32.gmra.mxu0 %v2133
  %v2201 = vpop.f32.mrf.mxu0
  %v2202 = vadd.f32 0.0, %v2201
  %v2203 = vpop.f32.mrf.mxu0
  %2204 = vdwg.mxu0
  %v2206 = vsel %vm66, %v1453, 0
  %2208 = vmatprep.subr.mxu0 0.0
  %2209 = vmatpush1.msra.mxu0 0.0
  %2210 = vmatprep.subr.mxu0 0.0
  %2211 = vmatpush1.msra.mxu0 0.0
  %2212 = vmatprep.subr.mxu0 0.0
  %2213 = vmatpush1.msra.mxu0 0.0
  %2214 = vmatprep.subr.mxu0 0.0
  %2215 = vmatpush1.msra.mxu0 0.0
  %2216 = vmatprep.subr.mxu0 0.0
  %2217 = vmatpush1.msra.mxu0 0.0
  %2218 = vmatprep.subr.mxu0 0.0
  %2219 = vmatpush1.msra.mxu0 0.0
  %2220 = vmatprep.subr.mxu0 0.0
  %2221 = vmatpush1.msra.mxu0 0.0
  %2222 = vmatprep.subr.mxu0 0.0
  %2223 = vmatpush1.msra.mxu0 0.0
  %2224 = vmatprep.subr.mxu0 0.0
  %2225 = vmatpush1.msra.mxu0 0.0
  %2226 = vmatprep.subr.mxu0 0.0
  %2227 = vmatpush1.msra.mxu0 0.0
  %2228 = vmatprep.subr.mxu0 0.0
  %2229 = vmatpush1.msra.mxu0 0.0
  %2230 = vmatprep.subr.mxu0 0.0
  %2231 = vmatpush1.msra.mxu0 0.0
  %2232 = vmatprep.subr.mxu0 0.0
  %2233 = vmatpush1.msra.mxu0 0.0
  %2234 = vmatprep.subr.mxu0 0.0
  %2235 = vmatpush1.msra.mxu0 0.0
  %2236 = vmatprep.subr.mxu0 0.0
  %2237 = vmatpush1.msra.mxu0 0.0
  %2238 = vmatprep.subr.mxu0 0.0
  %2239 = vmatpush1.msra.mxu0 %v1469
  %2240 = vmatprep.subr.mxu0 0.0
  %2241 = vmatpush2.msra.mxu0 0.0
  %2242 = vmatprep.subr.mxu0 0.0
  %2243 = vmatpush2.msra.mxu0 0.0
  %2244 = vmatprep.subr.mxu0 0.0
  %2245 = vmatpush2.msra.mxu0 0.0
  %2246 = vmatprep.subr.mxu0 0.0
  %2247 = vmatpush2.msra.mxu0 0.0
  %2248 = vmatprep.subr.mxu0 0.0
  %2249 = vmatpush2.msra.mxu0 0.0
  %2250 = vmatprep.subr.mxu0 0.0
  %2251 = vmatpush2.msra.mxu0 0.0
  %2252 = vmatprep.subr.mxu0 0.0
  %2253 = vmatpush2.msra.mxu0 0.0
  %2254 = vmatprep.subr.mxu0 0.0
  %2255 = vmatpush2.msra.mxu0 0.0
  %2256 = vmatprep.subr.mxu0 0.0
  %2257 = vmatpush2.msra.mxu0 0.0
  %2258 = vmatprep.subr.mxu0 0.0
  %2259 = vmatpush2.msra.mxu0 0.0
  %2260 = vmatprep.subr.mxu0 0.0
  %2261 = vmatpush2.msra.mxu0 0.0
  %2262 = vmatprep.subr.mxu0 0.0
  %2263 = vmatpush2.msra.mxu0 0.0
  %2264 = vmatprep.subr.mxu0 0.0
  %2265 = vmatpush2.msra.mxu0 0.0
  %2266 = vmatprep.subr.mxu0 0.0
  %2267 = vmatpush2.msra.mxu0 0.0
  %2268 = vmatprep.subr.mxu0 0.0
  %2269 = vmatpush2.msra.mxu0 0.0
  %2270 = vmatprep.subr.mxu0 0.0
  %2271 = vmatpush2.msra.mxu0 0.0
  %2272 = vmatprep.mubr.f32.mxu0 0.0
  %2273 = vmatmul.mubr.f32.gmra.mxu0 %v2206
  %v2274 = vpop.f32.mrf.mxu0
  %v2275 = vadd.f32 0.0, %v2274
  %v2276 = vpop.f32.mrf.mxu0
  %2277 = vdwg.mxu0
  %v2279 = vsel %vm66, %v1454, 0
  %2281 = vmatprep.subr.mxu0 0.0
  %2282 = vmatpush1.msra.mxu0 0.0
  %2283 = vmatprep.subr.mxu0 0.0
  %2284 = vmatpush1.msra.mxu0 0.0
  %2285 = vmatprep.subr.mxu0 0.0
  %2286 = vmatpush1.msra.mxu0 0.0
  %2287 = vmatprep.subr.mxu0 0.0
  %2288 = vmatpush1.msra.mxu0 0.0
  %2289 = vmatprep.subr.mxu0 0.0
  %2290 = vmatpush1.msra.mxu0 0.0
  %2291 = vmatprep.subr.mxu0 0.0
  %2292 = vmatpush1.msra.mxu0 0.0
  %2293 = vmatprep.subr.mxu0 0.0
  %2294 = vmatpush1.msra.mxu0 0.0
  %2295 = vmatprep.subr.mxu0 0.0
  %2296 = vmatpush1.msra.mxu0 0.0
  %2297 = vmatprep.subr.mxu0 0.0
  %2298 = vmatpush1.msra.mxu0 0.0
  %2299 = vmatprep.subr.mxu0 0.0
  %2300 = vmatpush1.msra.mxu0 0.0
  %2301 = vmatprep.subr.mxu0 0.0
  %2302 = vmatpush1.msra.mxu0 0.0
  %2303 = vmatprep.subr.mxu0 0.0
  %2304 = vmatpush1.msra.mxu0 0.0
  %2305 = vmatprep.subr.mxu0 0.0
  %2306 = vmatpush1.msra.mxu0 0.0
  %2307 = vmatprep.subr.mxu0 0.0
  %2308 = vmatpush1.msra.mxu0 0.0
  %2309 = vmatprep.subr.mxu0 0.0
  %2310 = vmatpush1.msra.mxu0 0.0
  %2311 = vmatprep.subr.mxu0 0.0
  %2312 = vmatpush1.msra.mxu0 %v1470
  %2313 = vmatprep.subr.mxu0 0.0
  %2314 = vmatpush2.msra.mxu0 0.0
  %2315 = vmatprep.subr.mxu0 0.0
  %2316 = vmatpush2.msra.mxu0 0.0
  %2317 = vmatprep.subr.mxu0 0.0
  %2318 = vmatpush2.msra.mxu0 0.0
  %2319 = vmatprep.subr.mxu0 0.0
  %2320 = vmatpush2.msra.mxu0 0.0
  %2321 = vmatprep.subr.mxu0 0.0
  %2322 = vmatpush2.msra.mxu0 0.0
  %2323 = vmatprep.subr.mxu0 0.0
  %2324 = vmatpush2.msra.mxu0 0.0
  %2325 = vmatprep.subr.mxu0 0.0
  %2326 = vmatpush2.msra.mxu0 0.0
  %2327 = vmatprep.subr.mxu0 0.0
  %2328 = vmatpush2.msra.mxu0 0.0
  %2329 = vmatprep.subr.mxu0 0.0
  %2330 = vmatpush2.msra.mxu0 0.0
  %2331 = vmatprep.subr.mxu0 0.0
  %2332 = vmatpush2.msra.mxu0 0.0
  %2333 = vmatprep.subr.mxu0 0.0
  %2334 = vmatpush2.msra.mxu0 0.0
  %2335 = vmatprep.subr.mxu0 0.0
  %2336 = vmatpush2.msra.mxu0 0.0
  %2337 = vmatprep.subr.mxu0 0.0
  %2338 = vmatpush2.msra.mxu0 0.0
  %2339 = vmatprep.subr.mxu0 0.0
  %2340 = vmatpush2.msra.mxu0 0.0
  %2341 = vmatprep.subr.mxu0 0.0
  %2342 = vmatpush2.msra.mxu0 0.0
  %2343 = vmatprep.subr.mxu0 0.0
  %2344 = vmatpush2.msra.mxu0 0.0
  %2345 = vmatprep.mubr.f32.mxu0 0.0
  %2346 = vmatmul.mubr.f32.gmra.mxu0 %v2279
  %v2347 = vpop.f32.mrf.mxu0
  %v2348 = vadd.f32 0.0, %v2347
  %v2349 = vpop.f32.mrf.mxu0
  %2350 = vdwg.mxu0
  %v2352 = vsel %vm66, %v1455, 0
  %2354 = vmatprep.subr.mxu0 0.0
  %2355 = vmatpush1.msra.mxu0 0.0
  %2356 = vmatprep.subr.mxu0 0.0
  %2357 = vmatpush1.msra.mxu0 0.0
  %2358 = vmatprep.subr.mxu0 0.0
  %2359 = vmatpush1.msra.mxu0 0.0
  %2360 = vmatprep.subr.mxu0 0.0
  %2361 = vmatpush1.msra.mxu0 0.0
  %2362 = vmatprep.subr.mxu0 0.0
  %2363 = vmatpush1.msra.mxu0 0.0
  %2364 = vmatprep.subr.mxu0 0.0
  %2365 = vmatpush1.msra.mxu0 0.0
  %2366 = vmatprep.subr.mxu0 0.0
  %2367 = vmatpush1.msra.mxu0 0.0
  %2368 = vmatprep.subr.mxu0 0.0
  %2369 = vmatpush1.msra.mxu0 0.0
  %2370 = vmatprep.subr.mxu0 0.0
  %2371 = vmatpush1.msra.mxu0 0.0
  %2372 = vmatprep.subr.mxu0 0.0
  %2373 = vmatpush1.msra.mxu0 0.0
  %2374 = vmatprep.subr.mxu0 0.0
  %2375 = vmatpush1.msra.mxu0 0.0
  %2376 = vmatprep.subr.mxu0 0.0
  %2377 = vmatpush1.msra.mxu0 0.0
  %2378 = vmatprep.subr.mxu0 0.0
  %2379 = vmatpush1.msra.mxu0 0.0
  %2380 = vmatprep.subr.mxu0 0.0
  %2381 = vmatpush1.msra.mxu0 0.0
  %2382 = vmatprep.subr.mxu0 0.0
  %2383 = vmatpush1.msra.mxu0 0.0
  %2384 = vmatprep.subr.mxu0 0.0
  %2385 = vmatpush1.msra.mxu0 %v1471
  %2386 = vmatprep.subr.mxu0 0.0
  %2387 = vmatpush2.msra.mxu0 0.0
  %2388 = vmatprep.subr.mxu0 0.0
  %2389 = vmatpush2.msra.mxu0 0.0
  %2390 = vmatprep.subr.mxu0 0.0
  %2391 = vmatpush2.msra.mxu0 0.0
  %2392 = vmatprep.subr.mxu0 0.0
  %2393 = vmatpush2.msra.mxu0 0.0
  %2394 = vmatprep.subr.mxu0 0.0
  %2395 = vmatpush2.msra.mxu0 0.0
  %2396 = vmatprep.subr.mxu0 0.0
  %2397 = vmatpush2.msra.mxu0 0.0
  %2398 = vmatprep.subr.mxu0 0.0
  %2399 = vmatpush2.msra.mxu0 0.0
  %2400 = vmatprep.subr.mxu0 0.0
  %2401 = vmatpush2.msra.mxu0 0.0
  %2402 = vmatprep.subr.mxu0 0.0
  %2403 = vmatpush2.msra.mxu0 0.0
  %2404 = vmatprep.subr.mxu0 0.0
  %2405 = vmatpush2.msra.mxu0 0.0
  %2406 = vmatprep.subr.mxu0 0.0
  %2407 = vmatpush2.msra.mxu0 0.0
  %2408 = vmatprep.subr.mxu0 0.0
  %2409 = vmatpush2.msra.mxu0 0.0
  %2410 = vmatprep.subr.mxu0 0.0
  %2411 = vmatpush2.msra.mxu0 0.0
  %2412 = vmatprep.subr.mxu0 0.0
  %2413 = vmatpush2.msra.mxu0 0.0
  %2414 = vmatprep.subr.mxu0 0.0
  %2415 = vmatpush2.msra.mxu0 0.0
  %2416 = vmatprep.subr.mxu0 0.0
  %2417 = vmatpush2.msra.mxu0 0.0
  %2418 = vmatprep.mubr.f32.mxu0 0.0
  %2419 = vmatmul.mubr.f32.gmra.mxu0 %v2352
  %v2420 = vpop.f32.mrf.mxu0
  %v2421 = vadd.f32 0.0, %v2420
  %v2422 = vpop.f32.mrf.mxu0
  %2423 = vdwg.mxu0
  %v2425 = vsel %vm66, %v1456, 0
  %2427 = vmatprep.subr.mxu0 0.0
  %2428 = vmatpush1.msra.mxu0 0.0
  %2429 = vmatprep.subr.mxu0 0.0
  %2430 = vmatpush1.msra.mxu0 0.0
  %2431 = vmatprep.subr.mxu0 0.0
  %2432 = vmatpush1.msra.mxu0 0.0
  %2433 = vmatprep.subr.mxu0 0.0
  %2434 = vmatpush1.msra.mxu0 0.0
  %2435 = vmatprep.subr.mxu0 0.0
  %2436 = vmatpush1.msra.mxu0 0.0
  %2437 = vmatprep.subr.mxu0 0.0
  %2438 = vmatpush1.msra.mxu0 0.0
  %2439 = vmatprep.subr.mxu0 0.0
  %2440 = vmatpush1.msra.mxu0 0.0
  %2441 = vmatprep.subr.mxu0 0.0
  %2442 = vmatpush1.msra.mxu0 0.0
  %2443 = vmatprep.subr.mxu0 0.0
  %2444 = vmatpush1.msra.mxu0 0.0
  %2445 = vmatprep.subr.mxu0 0.0
  %2446 = vmatpush1.msra.mxu0 0.0
  %2447 = vmatprep.subr.mxu0 0.0
  %2448 = vmatpush1.msra.mxu0 0.0
  %2449 = vmatprep.subr.mxu0 0.0
  %2450 = vmatpush1.msra.mxu0 0.0
  %2451 = vmatprep.subr.mxu0 0.0
  %2452 = vmatpush1.msra.mxu0 0.0
  %2453 = vmatprep.subr.mxu0 0.0
  %2454 = vmatpush1.msra.mxu0 0.0
  %2455 = vmatprep.subr.mxu0 0.0
  %2456 = vmatpush1.msra.mxu0 0.0
  %2457 = vmatprep.subr.mxu0 0.0
  %2458 = vmatpush1.msra.mxu0 %v1472
  %2459 = vmatprep.subr.mxu0 0.0
  %2460 = vmatpush2.msra.mxu0 0.0
  %2461 = vmatprep.subr.mxu0 0.0
  %2462 = vmatpush2.msra.mxu0 0.0
  %2463 = vmatprep.subr.mxu0 0.0
  %2464 = vmatpush2.msra.mxu0 0.0
  %2465 = vmatprep.subr.mxu0 0.0
  %2466 = vmatpush2.msra.mxu0 0.0
  %2467 = vmatprep.subr.mxu0 0.0
  %2468 = vmatpush2.msra.mxu0 0.0
  %2469 = vmatprep.subr.mxu0 0.0
  %2470 = vmatpush2.msra.mxu0 0.0
  %2471 = vmatprep.subr.mxu0 0.0
  %2472 = vmatpush2.msra.mxu0 0.0
  %2473 = vmatprep.subr.mxu0 0.0
  %2474 = vmatpush2.msra.mxu0 0.0
  %2475 = vmatprep.subr.mxu0 0.0
  %2476 = vmatpush2.msra.mxu0 0.0
  %2477 = vmatprep.subr.mxu0 0.0
  %2478 = vmatpush2.msra.mxu0 0.0
  %2479 = vmatprep.subr.mxu0 0.0
  %2480 = vmatpush2.msra.mxu0 0.0
  %2481 = vmatprep.subr.mxu0 0.0
  %2482 = vmatpush2.msra.mxu0 0.0
  %2483 = vmatprep.subr.mxu0 0.0
  %2484 = vmatpush2.msra.mxu0 0.0
  %2485 = vmatprep.subr.mxu0 0.0
  %2486 = vmatpush2.msra.mxu0 0.0
  %2487 = vmatprep.subr.mxu0 0.0
  %2488 = vmatpush2.msra.mxu0 0.0
  %2489 = vmatprep.subr.mxu0 0.0
  %2490 = vmatpush2.msra.mxu0 0.0
  %2491 = vmatprep.mubr.f32.mxu0 0.0
  %2492 = vmatmul.mubr.f32.gmra.mxu0 %v2425
  %v2493 = vpop.f32.mrf.mxu0
  %v2494 = vadd.f32 0.0, %v2493
  %v2495 = vpop.f32.mrf.mxu0
  %2496 = vdwg.mxu0
  %v2498 = vsel %vm66, %v1457, 0
  %2500 = vmatprep.subr.mxu0 0.0
  %2501 = vmatpush1.msra.mxu0 0.0
  %2502 = vmatprep.subr.mxu0 0.0
  %2503 = vmatpush1.msra.mxu0 0.0
  %2504 = vmatprep.subr.mxu0 0.0
  %2505 = vmatpush1.msra.mxu0 0.0
  %2506 = vmatprep.subr.mxu0 0.0
  %2507 = vmatpush1.msra.mxu0 0.0
  %2508 = vmatprep.subr.mxu0 0.0
  %2509 = vmatpush1.msra.mxu0 0.0
  %2510 = vmatprep.subr.mxu0 0.0
  %2511 = vmatpush1.msra.mxu0 0.0
  %2512 = vmatprep.subr.mxu0 0.0
  %2513 = vmatpush1.msra.mxu0 0.0
  %2514 = vmatprep.subr.mxu0 0.0
  %2515 = vmatpush1.msra.mxu0 0.0
  %2516 = vmatprep.subr.mxu0 0.0
  %2517 = vmatpush1.msra.mxu0 0.0
  %2518 = vmatprep.subr.mxu0 0.0
  %2519 = vmatpush1.msra.mxu0 0.0
  %2520 = vmatprep.subr.mxu0 0.0
  %2521 = vmatpush1.msra.mxu0 0.0
  %2522 = vmatprep.subr.mxu0 0.0
  %2523 = vmatpush1.msra.mxu0 0.0
  %2524 = vmatprep.subr.mxu0 0.0
  %2525 = vmatpush1.msra.mxu0 0.0
  %2526 = vmatprep.subr.mxu0 0.0
  %2527 = vmatpush1.msra.mxu0 0.0
  %2528 = vmatprep.subr.mxu0 0.0
  %2529 = vmatpush1.msra.mxu0 0.0
  %2530 = vmatprep.subr.mxu0 0.0
  %2531 = vmatpush1.msra.mxu0 %v1473
  %2532 = vmatprep.subr.mxu0 0.0
  %2533 = vmatpush2.msra.mxu0 0.0
  %2534 = vmatprep.subr.mxu0 0.0
  %2535 = vmatpush2.msra.mxu0 0.0
  %2536 = vmatprep.subr.mxu0 0.0
  %2537 = vmatpush2.msra.mxu0 0.0
  %2538 = vmatprep.subr.mxu0 0.0
  %2539 = vmatpush2.msra.mxu0 0.0
  %2540 = vmatprep.subr.mxu0 0.0
  %2541 = vmatpush2.msra.mxu0 0.0
  %2542 = vmatprep.subr.mxu0 0.0
  %2543 = vmatpush2.msra.mxu0 0.0
  %2544 = vmatprep.subr.mxu0 0.0
  %2545 = vmatpush2.msra.mxu0 0.0
  %2546 = vmatprep.subr.mxu0 0.0
  %2547 = vmatpush2.msra.mxu0 0.0
  %2548 = vmatprep.subr.mxu0 0.0
  %2549 = vmatpush2.msra.mxu0 0.0
  %2550 = vmatprep.subr.mxu0 0.0
  %2551 = vmatpush2.msra.mxu0 0.0
  %2552 = vmatprep.subr.mxu0 0.0
  %2553 = vmatpush2.msra.mxu0 0.0
  %2554 = vmatprep.subr.mxu0 0.0
  %2555 = vmatpush2.msra.mxu0 0.0
  %2556 = vmatprep.subr.mxu0 0.0
  %2557 = vmatpush2.msra.mxu0 0.0
  %2558 = vmatprep.subr.mxu0 0.0
  %2559 = vmatpush2.msra.mxu0 0.0
  %2560 = vmatprep.subr.mxu0 0.0
  %2561 = vmatpush2.msra.mxu0 0.0
  %2562 = vmatprep.subr.mxu0 0.0
  %2563 = vmatpush2.msra.mxu0 0.0
  %2564 = vmatprep.mubr.f32.mxu0 0.0
  %2565 = vmatmul.mubr.f32.gmra.mxu0 %v2498
  %v2566 = vpop.f32.mrf.mxu0
  %v2567 = vadd.f32 0.0, %v2566
  %v2568 = vpop.f32.mrf.mxu0
  %2569 = vdwg.mxu0
  %v2571 = vsel %vm66, %v1458, 0
  %2573 = vmatprep.subr.mxu0 0.0
  %2574 = vmatpush1.msra.mxu0 0.0
  %2575 = vmatprep.subr.mxu0 0.0
  %2576 = vmatpush1.msra.mxu0 0.0
  %2577 = vmatprep.subr.mxu0 0.0
  %2578 = vmatpush1.msra.mxu0 0.0
  %2579 = vmatprep.subr.mxu0 0.0
  %2580 = vmatpush1.msra.mxu0 0.0
  %2581 = vmatprep.subr.mxu0 0.0
  %2582 = vmatpush1.msra.mxu0 0.0
  %2583 = vmatprep.subr.mxu0 0.0
  %2584 = vmatpush1.msra.mxu0 0.0
  %2585 = vmatprep.subr.mxu0 0.0
  %2586 = vmatpush1.msra.mxu0 0.0
  %2587 = vmatprep.subr.mxu0 0.0
  %2588 = vmatpush1.msra.mxu0 0.0
  %2589 = vmatprep.subr.mxu0 0.0
  %2590 = vmatpush1.msra.mxu0 0.0
  %2591 = vmatprep.subr.mxu0 0.0
  %2592 = vmatpush1.msra.mxu0 0.0
  %2593 = vmatprep.subr.mxu0 0.0
  %2594 = vmatpush1.msra.mxu0 0.0
  %2595 = vmatprep.subr.mxu0 0.0
  %2596 = vmatpush1.msra.mxu0 0.0
  %2597 = vmatprep.subr.mxu0 0.0
  %2598 = vmatpush1.msra.mxu0 0.0
  %2599 = vmatprep.subr.mxu0 0.0
  %2600 = vmatpush1.msra.mxu0 0.0
  %2601 = vmatprep.subr.mxu0 0.0
  %2602 = vmatpush1.msra.mxu0 0.0
  %2603 = vmatprep.subr.mxu0 0.0
  %2604 = vmatpush1.msra.mxu0 %v1474
  %2605 = vmatprep.subr.mxu0 0.0
  %2606 = vmatpush2.msra.mxu0 0.0
  %2607 = vmatprep.subr.mxu0 0.0
  %2608 = vmatpush2.msra.mxu0 0.0
  %2609 = vmatprep.subr.mxu0 0.0
  %2610 = vmatpush2.msra.mxu0 0.0
  %2611 = vmatprep.subr.mxu0 0.0
  %2612 = vmatpush2.msra.mxu0 0.0
  %2613 = vmatprep.subr.mxu0 0.0
  %2614 = vmatpush2.msra.mxu0 0.0
  %2615 = vmatprep.subr.mxu0 0.0
  %2616 = vmatpush2.msra.mxu0 0.0
  %2617 = vmatprep.subr.mxu0 0.0
  %2618 = vmatpush2.msra.mxu0 0.0
  %2619 = vmatprep.subr.mxu0 0.0
  %2620 = vmatpush2.msra.mxu0 0.0
  %2621 = vmatprep.subr.mxu0 0.0
  %2622 = vmatpush2.msra.mxu0 0.0
  %2623 = vmatprep.subr.mxu0 0.0
  %2624 = vmatpush2.msra.mxu0 0.0
  %2625 = vmatprep.subr.mxu0 0.0
  %2626 = vmatpush2.msra.mxu0 0.0
  %2627 = vmatprep.subr.mxu0 0.0
  %2628 = vmatpush2.msra.mxu0 0.0
  %2629 = vmatprep.subr.mxu0 0.0
  %2630 = vmatpush2.msra.mxu0 0.0
  %2631 = vmatprep.subr.mxu0 0.0
  %2632 = vmatpush2.msra.mxu0 0.0
  %2633 = vmatprep.subr.mxu0 0.0
  %2634 = vmatpush2.msra.mxu0 0.0
  %2635 = vmatprep.subr.mxu0 0.0
  %2636 = vmatpush2.msra.mxu0 0.0
  %2637 = vmatprep.mubr.f32.mxu0 0.0
  %2638 = vmatmul.mubr.f32.gmra.mxu0 %v2571
  %v2639 = vpop.f32.mrf.mxu0
  %v2640 = vadd.f32 0.0, %v2639
  %v2641 = vpop.f32.mrf.mxu0
  %2642 = vdwg.mxu0
  %s2643 = scalar_lea.vmem %s0, 128
  %v2644 = vld [vmem:[%s2643] sm:$0xff]
  %v2645 = vld [vmem:[%s2643 + $0x8] sm:$0xff]
  %v2646 = vld [vmem:[%s2643 + $0x10] sm:$0xff]
  %v2647 = vld [vmem:[%s2643 + $0x18] sm:$0xff]
  %v2648 = vld [vmem:[%s2643 + $0x20] sm:$0xff]
  %v2649 = vld [vmem:[%s2643 + $0x28] sm:$0xff]
  %v2650 = vld [vmem:[%s2643 + $0x30] sm:$0xff]
  %v2651 = vld [vmem:[%s2643 + $0x38] sm:$0xff]
  %v2652 = vld [vmem:[%s2643 + $0x40] sm:$0xff]
  %v2653 = vld [vmem:[%s2643 + $0x48] sm:$0xff]
  %v2654 = vld [vmem:[%s2643 + $0x50] sm:$0xff]
  %v2655 = vld [vmem:[%s2643 + $0x58] sm:$0xff]
  %v2656 = vld [vmem:[%s2643 + $0x60] sm:$0xff]
  %v2657 = vld [vmem:[%s2643 + $0x68] sm:$0xff]
  %v2658 = vld [vmem:[%s2643 + $0x70] sm:$0xff]
  %v2659 = vld [vmem:[%s2643 + $0x78] sm:$0xff]
  %v2660 = vmul.f32 %v2644, 0.35355338
  %v2661 = vmul.f32 %v2645, 0.35355338
  %v2662 = vmul.f32 %v2646, 0.35355338
  %v2663 = vmul.f32 %v2647, 0.35355338
  %v2664 = vmul.f32 %v2648, 0.35355338
  %v2665 = vmul.f32 %v2649, 0.35355338
  %v2666 = vmul.f32 %v2650, 0.35355338
  %v2667 = vmul.f32 %v2651, 0.35355338
  %v2668 = vmul.f32 %v2652, 0.35355338
  %v2669 = vmul.f32 %v2653, 0.35355338
  %v2670 = vmul.f32 %v2654, 0.35355338
  %v2671 = vmul.f32 %v2655, 0.35355338
  %v2672 = vmul.f32 %v2656, 0.35355338
  %v2673 = vmul.f32 %v2657, 0.35355338
  %v2674 = vmul.f32 %v2658, 0.35355338
  %v2675 = vmul.f32 %v2659, 0.35355338
  %s2676 = scalar_lea.vmem %s1, 128
  %v2677 = vld [vmem:[%s2676] sm:$0xff]
  %v2678 = vld [vmem:[%s2676 + $0x8] sm:$0xff]
  %v2679 = vld [vmem:[%s2676 + $0x10] sm:$0xff]
  %v2680 = vld [vmem:[%s2676 + $0x18] sm:$0xff]
  %v2681 = vld [vmem:[%s2676 + $0x20] sm:$0xff]
  %v2682 = vld [vmem:[%s2676 + $0x28] sm:$0xff]
  %v2683 = vld [vmem:[%s2676 + $0x30] sm:$0xff]
  %v2684 = vld [vmem:[%s2676 + $0x38] sm:$0xff]
  %v2685 = vld [vmem:[%s2676 + $0x40] sm:$0xff]
  %v2686 = vld [vmem:[%s2676 + $0x48] sm:$0xff]
  %v2687 = vld [vmem:[%s2676 + $0x50] sm:$0xff]
  %v2688 = vld [vmem:[%s2676 + $0x58] sm:$0xff]
  %v2689 = vld [vmem:[%s2676 + $0x60] sm:$0xff]
  %v2690 = vld [vmem:[%s2676 + $0x68] sm:$0xff]
  %v2691 = vld [vmem:[%s2676 + $0x70] sm:$0xff]
  %v2692 = vld [vmem:[%s2676 + $0x78] sm:$0xff]
  %v2694 = vsel %vm66, %v2660, 0
  %v2697 = vsel %vm66, %v2677, 0
  %2699 = vmatprep.subr.mxu0 0.0
  %2700 = vmatpush1.xpose.msra.mxu0 0.0
  %2701 = vmatprep.subr.mxu0 0.0
  %2702 = vmatpush1.xpose.msra.mxu0 0.0
  %2703 = vmatprep.subr.mxu0 0.0
  %2704 = vmatpush1.xpose.msra.mxu0 0.0
  %2705 = vmatprep.subr.mxu0 0.0
  %2706 = vmatpush1.xpose.msra.mxu0 0.0
  %2707 = vmatprep.subr.mxu0 0.0
  %2708 = vmatpush1.xpose.msra.mxu0 0.0
  %2709 = vmatprep.subr.mxu0 0.0
  %2710 = vmatpush1.xpose.msra.mxu0 0.0
  %2711 = vmatprep.subr.mxu0 0.0
  %2712 = vmatpush1.xpose.msra.mxu0 0.0
  %2713 = vmatprep.subr.mxu0 0.0
  %2714 = vmatpush1.xpose.msra.mxu0 0.0
  %2715 = vmatprep.subr.mxu0 0.0
  %2716 = vmatpush1.xpose.msra.mxu0 0.0
  %2717 = vmatprep.subr.mxu0 0.0
  %2718 = vmatpush1.xpose.msra.mxu0 0.0
  %2719 = vmatprep.subr.mxu0 0.0
  %2720 = vmatpush1.xpose.msra.mxu0 0.0
  %2721 = vmatprep.subr.mxu0 0.0
  %2722 = vmatpush1.xpose.msra.mxu0 0.0
  %2723 = vmatprep.subr.mxu0 0.0
  %2724 = vmatpush1.xpose.msra.mxu0 0.0
  %2725 = vmatprep.subr.mxu0 0.0
  %2726 = vmatpush1.xpose.msra.mxu0 0.0
  %2727 = vmatprep.subr.mxu0 0.0
  %2728 = vmatpush1.xpose.msra.mxu0 0.0
  %2729 = vmatprep.subr.mxu0 0.0
  %2730 = vmatpush1.xpose.msra.mxu0 %v2697
  %2731 = vmatprep.subr.mxu0 0.0
  %2732 = vmatpush2.xpose.msra.mxu0 0.0
  %2733 = vmatprep.subr.mxu0 0.0
  %2734 = vmatpush2.xpose.msra.mxu0 0.0
  %2735 = vmatprep.subr.mxu0 0.0
  %2736 = vmatpush2.xpose.msra.mxu0 0.0
  %2737 = vmatprep.subr.mxu0 0.0
  %2738 = vmatpush2.xpose.msra.mxu0 0.0
  %2739 = vmatprep.subr.mxu0 0.0
  %2740 = vmatpush2.xpose.msra.mxu0 0.0
  %2741 = vmatprep.subr.mxu0 0.0
  %2742 = vmatpush2.xpose.msra.mxu0 0.0
  %2743 = vmatprep.subr.mxu0 0.0
  %2744 = vmatpush2.xpose.msra.mxu0 0.0
  %2745 = vmatprep.subr.mxu0 0.0
  %2746 = vmatpush2.xpose.msra.mxu0 0.0
  %2747 = vmatprep.subr.mxu0 0.0
  %2748 = vmatpush2.xpose.msra.mxu0 0.0
  %2749 = vmatprep.subr.mxu0 0.0
  %2750 = vmatpush2.xpose.msra.mxu0 0.0
  %2751 = vmatprep.subr.mxu0 0.0
  %2752 = vmatpush2.xpose.msra.mxu0 0.0
  %2753 = vmatprep.subr.mxu0 0.0
  %2754 = vmatpush2.xpose.msra.mxu0 0.0
  %2755 = vmatprep.subr.mxu0 0.0
  %2756 = vmatpush2.xpose.msra.mxu0 0.0
  %2757 = vmatprep.subr.mxu0 0.0
  %2758 = vmatpush2.xpose.msra.mxu0 0.0
  %2759 = vmatprep.subr.mxu0 0.0
  %2760 = vmatpush2.xpose.msra.mxu0 0.0
  %2761 = vmatprep.subr.mxu0 0.0
  %2762 = vmatpush2.xpose.msra.mxu0 0.0
  %2763 = vmatprep.mubr.f32.mxu0 0.0
  %2764 = vmatmul.mubr.f32.gmra.mxu0 %v2694
  %v2765 = vpop.f32.mrf.mxu0
  %v2766 = vadd.f32 %v17, %v2765
  %v2767 = vpop.f32.mrf.mxu0
  %2768 = vdwg.mxu0
  %v2770 = vsel %vm66, %v2661, 0
  %v2773 = vsel %vm66, %v2678, 0
  %2775 = vmatprep.subr.mxu0 0.0
  %2776 = vmatpush1.xpose.msra.mxu0 0.0
  %2777 = vmatprep.subr.mxu0 0.0
  %2778 = vmatpush1.xpose.msra.mxu0 0.0
  %2779 = vmatprep.subr.mxu0 0.0
  %2780 = vmatpush1.xpose.msra.mxu0 0.0
  %2781 = vmatprep.subr.mxu0 0.0
  %2782 = vmatpush1.xpose.msra.mxu0 0.0
  %2783 = vmatprep.subr.mxu0 0.0
  %2784 = vmatpush1.xpose.msra.mxu0 0.0
  %2785 = vmatprep.subr.mxu0 0.0
  %2786 = vmatpush1.xpose.msra.mxu0 0.0
  %2787 = vmatprep.subr.mxu0 0.0
  %2788 = vmatpush1.xpose.msra.mxu0 0.0
  %2789 = vmatprep.subr.mxu0 0.0
  %2790 = vmatpush1.xpose.msra.mxu0 0.0
  %2791 = vmatprep.subr.mxu0 0.0
  %2792 = vmatpush1.xpose.msra.mxu0 0.0
  %2793 = vmatprep.subr.mxu0 0.0
  %2794 = vmatpush1.xpose.msra.mxu0 0.0
  %2795 = vmatprep.subr.mxu0 0.0
  %2796 = vmatpush1.xpose.msra.mxu0 0.0
  %2797 = vmatprep.subr.mxu0 0.0
  %2798 = vmatpush1.xpose.msra.mxu0 0.0
  %2799 = vmatprep.subr.mxu0 0.0
  %2800 = vmatpush1.xpose.msra.mxu0 0.0
  %2801 = vmatprep.subr.mxu0 0.0
  %2802 = vmatpush1.xpose.msra.mxu0 0.0
  %2803 = vmatprep.subr.mxu0 0.0
  %2804 = vmatpush1.xpose.msra.mxu0 0.0
  %2805 = vmatprep.subr.mxu0 0.0
  %2806 = vmatpush1.xpose.msra.mxu0 %v2773
  %2807 = vmatprep.subr.mxu0 0.0
  %2808 = vmatpush2.xpose.msra.mxu0 0.0
  %2809 = vmatprep.subr.mxu0 0.0
  %2810 = vmatpush2.xpose.msra.mxu0 0.0
  %2811 = vmatprep.subr.mxu0 0.0
  %2812 = vmatpush2.xpose.msra.mxu0 0.0
  %2813 = vmatprep.subr.mxu0 0.0
  %2814 = vmatpush2.xpose.msra.mxu0 0.0
  %2815 = vmatprep.subr.mxu0 0.0
  %2816 = vmatpush2.xpose.msra.mxu0 0.0
  %2817 = vmatprep.subr.mxu0 0.0
  %2818 = vmatpush2.xpose.msra.mxu0 0.0
  %2819 = vmatprep.subr.mxu0 0.0
  %2820 = vmatpush2.xpose.msra.mxu0 0.0
  %2821 = vmatprep.subr.mxu0 0.0
  %2822 = vmatpush2.xpose.msra.mxu0 0.0
  %2823 = vmatprep.subr.mxu0 0.0
  %2824 = vmatpush2.xpose.msra.mxu0 0.0
  %2825 = vmatprep.subr.mxu0 0.0
  %2826 = vmatpush2.xpose.msra.mxu0 0.0
  %2827 = vmatprep.subr.mxu0 0.0
  %2828 = vmatpush2.xpose.msra.mxu0 0.0
  %2829 = vmatprep.subr.mxu0 0.0
  %2830 = vmatpush2.xpose.msra.mxu0 0.0
  %2831 = vmatprep.subr.mxu0 0.0
  %2832 = vmatpush2.xpose.msra.mxu0 0.0
  %2833 = vmatprep.subr.mxu0 0.0
  %2834 = vmatpush2.xpose.msra.mxu0 0.0
  %2835 = vmatprep.subr.mxu0 0.0
  %2836 = vmatpush2.xpose.msra.mxu0 0.0
  %2837 = vmatprep.subr.mxu0 0.0
  %2838 = vmatpush2.xpose.msra.mxu0 0.0
  %2839 = vmatprep.mubr.f32.mxu0 0.0
  %2840 = vmatmul.mubr.f32.gmra.mxu0 %v2770
  %v2841 = vpop.f32.mrf.mxu0
  %v2842 = vadd.f32 %v17, %v2841
  %v2843 = vpop.f32.mrf.mxu0
  %2844 = vdwg.mxu0
  %v2846 = vsel %vm66, %v2662, 0
  %v2849 = vsel %vm66, %v2679, 0
  %2851 = vmatprep.subr.mxu0 0.0
  %2852 = vmatpush1.xpose.msra.mxu0 0.0
  %2853 = vmatprep.subr.mxu0 0.0
  %2854 = vmatpush1.xpose.msra.mxu0 0.0
  %2855 = vmatprep.subr.mxu0 0.0
  %2856 = vmatpush1.xpose.msra.mxu0 0.0
  %2857 = vmatprep.subr.mxu0 0.0
  %2858 = vmatpush1.xpose.msra.mxu0 0.0
  %2859 = vmatprep.subr.mxu0 0.0
  %2860 = vmatpush1.xpose.msra.mxu0 0.0
  %2861 = vmatprep.subr.mxu0 0.0
  %2862 = vmatpush1.xpose.msra.mxu0 0.0
  %2863 = vmatprep.subr.mxu0 0.0
  %2864 = vmatpush1.xpose.msra.mxu0 0.0
  %2865 = vmatprep.subr.mxu0 0.0
  %2866 = vmatpush1.xpose.msra.mxu0 0.0
  %2867 = vmatprep.subr.mxu0 0.0
  %2868 = vmatpush1.xpose.msra.mxu0 0.0
  %2869 = vmatprep.subr.mxu0 0.0
  %2870 = vmatpush1.xpose.msra.mxu0 0.0
  %2871 = vmatprep.subr.mxu0 0.0
  %2872 = vmatpush1.xpose.msra.mxu0 0.0
  %2873 = vmatprep.subr.mxu0 0.0
  %2874 = vmatpush1.xpose.msra.mxu0 0.0
  %2875 = vmatprep.subr.mxu0 0.0
  %2876 = vmatpush1.xpose.msra.mxu0 0.0
  %2877 = vmatprep.subr.mxu0 0.0
  %2878 = vmatpush1.xpose.msra.mxu0 0.0
  %2879 = vmatprep.subr.mxu0 0.0
  %2880 = vmatpush1.xpose.msra.mxu0 0.0
  %2881 = vmatprep.subr.mxu0 0.0
  %2882 = vmatpush1.xpose.msra.mxu0 %v2849
  %2883 = vmatprep.subr.mxu0 0.0
  %2884 = vmatpush2.xpose.msra.mxu0 0.0
  %2885 = vmatprep.subr.mxu0 0.0
  %2886 = vmatpush2.xpose.msra.mxu0 0.0
  %2887 = vmatprep.subr.mxu0 0.0
  %2888 = vmatpush2.xpose.msra.mxu0 0.0
  %2889 = vmatprep.subr.mxu0 0.0
  %2890 = vmatpush2.xpose.msra.mxu0 0.0
  %2891 = vmatprep.subr.mxu0 0.0
  %2892 = vmatpush2.xpose.msra.mxu0 0.0
  %2893 = vmatprep.subr.mxu0 0.0
  %2894 = vmatpush2.xpose.msra.mxu0 0.0
  %2895 = vmatprep.subr.mxu0 0.0
  %2896 = vmatpush2.xpose.msra.mxu0 0.0
  %2897 = vmatprep.subr.mxu0 0.0
  %2898 = vmatpush2.xpose.msra.mxu0 0.0
  %2899 = vmatprep.subr.mxu0 0.0
  %2900 = vmatpush2.xpose.msra.mxu0 0.0
  %2901 = vmatprep.subr.mxu0 0.0
  %2902 = vmatpush2.xpose.msra.mxu0 0.0
  %2903 = vmatprep.subr.mxu0 0.0
  %2904 = vmatpush2.xpose.msra.mxu0 0.0
  %2905 = vmatprep.subr.mxu0 0.0
  %2906 = vmatpush2.xpose.msra.mxu0 0.0
  %2907 = vmatprep.subr.mxu0 0.0
  %2908 = vmatpush2.xpose.msra.mxu0 0.0
  %2909 = vmatprep.subr.mxu0 0.0
  %2910 = vmatpush2.xpose.msra.mxu0 0.0
  %2911 = vmatprep.subr.mxu0 0.0
  %2912 = vmatpush2.xpose.msra.mxu0 0.0
  %2913 = vmatprep.subr.mxu0 0.0
  %2914 = vmatpush2.xpose.msra.mxu0 0.0
  %2915 = vmatprep.mubr.f32.mxu0 0.0
  %2916 = vmatmul.mubr.f32.gmra.mxu0 %v2846
  %v2917 = vpop.f32.mrf.mxu0
  %v2918 = vadd.f32 %v17, %v2917
  %v2919 = vpop.f32.mrf.mxu0
  %2920 = vdwg.mxu0
  %v2922 = vsel %vm66, %v2663, 0
  %v2925 = vsel %vm66, %v2680, 0
  %2927 = vmatprep.subr.mxu0 0.0
  %2928 = vmatpush1.xpose.msra.mxu0 0.0
  %2929 = vmatprep.subr.mxu0 0.0
  %2930 = vmatpush1.xpose.msra.mxu0 0.0
  %2931 = vmatprep.subr.mxu0 0.0
  %2932 = vmatpush1.xpose.msra.mxu0 0.0
  %2933 = vmatprep.subr.mxu0 0.0
  %2934 = vmatpush1.xpose.msra.mxu0 0.0
  %2935 = vmatprep.subr.mxu0 0.0
  %2936 = vmatpush1.xpose.msra.mxu0 0.0
  %2937 = vmatprep.subr.mxu0 0.0
  %2938 = vmatpush1.xpose.msra.mxu0 0.0
  %2939 = vmatprep.subr.mxu0 0.0
  %2940 = vmatpush1.xpose.msra.mxu0 0.0
  %2941 = vmatprep.subr.mxu0 0.0
  %2942 = vmatpush1.xpose.msra.mxu0 0.0
  %2943 = vmatprep.subr.mxu0 0.0
  %2944 = vmatpush1.xpose.msra.mxu0 0.0
  %2945 = vmatprep.subr.mxu0 0.0
  %2946 = vmatpush1.xpose.msra.mxu0 0.0
  %2947 = vmatprep.subr.mxu0 0.0
  %2948 = vmatpush1.xpose.msra.mxu0 0.0
  %2949 = vmatprep.subr.mxu0 0.0
  %2950 = vmatpush1.xpose.msra.mxu0 0.0
  %2951 = vmatprep.subr.mxu0 0.0
  %2952 = vmatpush1.xpose.msra.mxu0 0.0
  %2953 = vmatprep.subr.mxu0 0.0
  %2954 = vmatpush1.xpose.msra.mxu0 0.0
  %2955 = vmatprep.subr.mxu0 0.0
  %2956 = vmatpush1.xpose.msra.mxu0 0.0
  %2957 = vmatprep.subr.mxu0 0.0
  %2958 = vmatpush1.xpose.msra.mxu0 %v2925
  %2959 = vmatprep.subr.mxu0 0.0
  %2960 = vmatpush2.xpose.msra.mxu0 0.0
  %2961 = vmatprep.subr.mxu0 0.0
  %2962 = vmatpush2.xpose.msra.mxu0 0.0
  %2963 = vmatprep.subr.mxu0 0.0
  %2964 = vmatpush2.xpose.msra.mxu0 0.0
  %2965 = vmatprep.subr.mxu0 0.0
  %2966 = vmatpush2.xpose.msra.mxu0 0.0
  %2967 = vmatprep.subr.mxu0 0.0
  %2968 = vmatpush2.xpose.msra.mxu0 0.0
  %2969 = vmatprep.subr.mxu0 0.0
  %2970 = vmatpush2.xpose.msra.mxu0 0.0
  %2971 = vmatprep.subr.mxu0 0.0
  %2972 = vmatpush2.xpose.msra.mxu0 0.0
  %2973 = vmatprep.subr.mxu0 0.0
  %2974 = vmatpush2.xpose.msra.mxu0 0.0
  %2975 = vmatprep.subr.mxu0 0.0
  %2976 = vmatpush2.xpose.msra.mxu0 0.0
  %2977 = vmatprep.subr.mxu0 0.0
  %2978 = vmatpush2.xpose.msra.mxu0 0.0
  %2979 = vmatprep.subr.mxu0 0.0
  %2980 = vmatpush2.xpose.msra.mxu0 0.0
  %2981 = vmatprep.subr.mxu0 0.0
  %2982 = vmatpush2.xpose.msra.mxu0 0.0
  %2983 = vmatprep.subr.mxu0 0.0
  %2984 = vmatpush2.xpose.msra.mxu0 0.0
  %2985 = vmatprep.subr.mxu0 0.0
  %2986 = vmatpush2.xpose.msra.mxu0 0.0
  %2987 = vmatprep.subr.mxu0 0.0
  %2988 = vmatpush2.xpose.msra.mxu0 0.0
  %2989 = vmatprep.subr.mxu0 0.0
  %2990 = vmatpush2.xpose.msra.mxu0 0.0
  %2991 = vmatprep.mubr.f32.mxu0 0.0
  %2992 = vmatmul.mubr.f32.gmra.mxu0 %v2922
  %v2993 = vpop.f32.mrf.mxu0
  %v2994 = vadd.f32 %v17, %v2993
  %v2995 = vpop.f32.mrf.mxu0
  %2996 = vdwg.mxu0
  %v2998 = vsel %vm66, %v2664, 0
  %v3001 = vsel %vm66, %v2681, 0
  %3003 = vmatprep.subr.mxu0 0.0
  %3004 = vmatpush1.xpose.msra.mxu0 0.0
  %3005 = vmatprep.subr.mxu0 0.0
  %3006 = vmatpush1.xpose.msra.mxu0 0.0
  %3007 = vmatprep.subr.mxu0 0.0
  %3008 = vmatpush1.xpose.msra.mxu0 0.0
  %3009 = vmatprep.subr.mxu0 0.0
  %3010 = vmatpush1.xpose.msra.mxu0 0.0
  %3011 = vmatprep.subr.mxu0 0.0
  %3012 = vmatpush1.xpose.msra.mxu0 0.0
  %3013 = vmatprep.subr.mxu0 0.0
  %3014 = vmatpush1.xpose.msra.mxu0 0.0
  %3015 = vmatprep.subr.mxu0 0.0
  %3016 = vmatpush1.xpose.msra.mxu0 0.0
  %3017 = vmatprep.subr.mxu0 0.0
  %3018 = vmatpush1.xpose.msra.mxu0 0.0
  %3019 = vmatprep.subr.mxu0 0.0
  %3020 = vmatpush1.xpose.msra.mxu0 0.0
  %3021 = vmatprep.subr.mxu0 0.0
  %3022 = vmatpush1.xpose.msra.mxu0 0.0
  %3023 = vmatprep.subr.mxu0 0.0
  %3024 = vmatpush1.xpose.msra.mxu0 0.0
  %3025 = vmatprep.subr.mxu0 0.0
  %3026 = vmatpush1.xpose.msra.mxu0 0.0
  %3027 = vmatprep.subr.mxu0 0.0
  %3028 = vmatpush1.xpose.msra.mxu0 0.0
  %3029 = vmatprep.subr.mxu0 0.0
  %3030 = vmatpush1.xpose.msra.mxu0 0.0
  %3031 = vmatprep.subr.mxu0 0.0
  %3032 = vmatpush1.xpose.msra.mxu0 0.0
  %3033 = vmatprep.subr.mxu0 0.0
  %3034 = vmatpush1.xpose.msra.mxu0 %v3001
  %3035 = vmatprep.subr.mxu0 0.0
  %3036 = vmatpush2.xpose.msra.mxu0 0.0
  %3037 = vmatprep.subr.mxu0 0.0
  %3038 = vmatpush2.xpose.msra.mxu0 0.0
  %3039 = vmatprep.subr.mxu0 0.0
  %3040 = vmatpush2.xpose.msra.mxu0 0.0
  %3041 = vmatprep.subr.mxu0 0.0
  %3042 = vmatpush2.xpose.msra.mxu0 0.0
  %3043 = vmatprep.subr.mxu0 0.0
  %3044 = vmatpush2.xpose.msra.mxu0 0.0
  %3045 = vmatprep.subr.mxu0 0.0
  %3046 = vmatpush2.xpose.msra.mxu0 0.0
  %3047 = vmatprep.subr.mxu0 0.0
  %3048 = vmatpush2.xpose.msra.mxu0 0.0
  %3049 = vmatprep.subr.mxu0 0.0
  %3050 = vmatpush2.xpose.msra.mxu0 0.0
  %3051 = vmatprep.subr.mxu0 0.0
  %3052 = vmatpush2.xpose.msra.mxu0 0.0
  %3053 = vmatprep.subr.mxu0 0.0
  %3054 = vmatpush2.xpose.msra.mxu0 0.0
  %3055 = vmatprep.subr.mxu0 0.0
  %3056 = vmatpush2.xpose.msra.mxu0 0.0
  %3057 = vmatprep.subr.mxu0 0.0
  %3058 = vmatpush2.xpose.msra.mxu0 0.0
  %3059 = vmatprep.subr.mxu0 0.0
  %3060 = vmatpush2.xpose.msra.mxu0 0.0
  %3061 = vmatprep.subr.mxu0 0.0
  %3062 = vmatpush2.xpose.msra.mxu0 0.0
  %3063 = vmatprep.subr.mxu0 0.0
  %3064 = vmatpush2.xpose.msra.mxu0 0.0
  %3065 = vmatprep.subr.mxu0 0.0
  %3066 = vmatpush2.xpose.msra.mxu0 0.0
  %3067 = vmatprep.mubr.f32.mxu0 0.0
  %3068 = vmatmul.mubr.f32.gmra.mxu0 %v2998
  %v3069 = vpop.f32.mrf.mxu0
  %v3070 = vadd.f32 %v17, %v3069
  %v3071 = vpop.f32.mrf.mxu0
  %3072 = vdwg.mxu0
  %v3074 = vsel %vm66, %v2665, 0
  %v3077 = vsel %vm66, %v2682, 0
  %3079 = vmatprep.subr.mxu0 0.0
  %3080 = vmatpush1.xpose.msra.mxu0 0.0
  %3081 = vmatprep.subr.mxu0 0.0
  %3082 = vmatpush1.xpose.msra.mxu0 0.0
  %3083 = vmatprep.subr.mxu0 0.0
  %3084 = vmatpush1.xpose.msra.mxu0 0.0
  %3085 = vmatprep.subr.mxu0 0.0
  %3086 = vmatpush1.xpose.msra.mxu0 0.0
  %3087 = vmatprep.subr.mxu0 0.0
  %3088 = vmatpush1.xpose.msra.mxu0 0.0
  %3089 = vmatprep.subr.mxu0 0.0
  %3090 = vmatpush1.xpose.msra.mxu0 0.0
  %3091 = vmatprep.subr.mxu0 0.0
  %3092 = vmatpush1.xpose.msra.mxu0 0.0
  %3093 = vmatprep.subr.mxu0 0.0
  %3094 = vmatpush1.xpose.msra.mxu0 0.0
  %3095 = vmatprep.subr.mxu0 0.0
  %3096 = vmatpush1.xpose.msra.mxu0 0.0
  %3097 = vmatprep.subr.mxu0 0.0
  %3098 = vmatpush1.xpose.msra.mxu0 0.0
  %3099 = vmatprep.subr.mxu0 0.0
  %3100 = vmatpush1.xpose.msra.mxu0 0.0
  %3101 = vmatprep.subr.mxu0 0.0
  %3102 = vmatpush1.xpose.msra.mxu0 0.0
  %3103 = vmatprep.subr.mxu0 0.0
  %3104 = vmatpush1.xpose.msra.mxu0 0.0
  %3105 = vmatprep.subr.mxu0 0.0
  %3106 = vmatpush1.xpose.msra.mxu0 0.0
  %3107 = vmatprep.subr.mxu0 0.0
  %3108 = vmatpush1.xpose.msra.mxu0 0.0
  %3109 = vmatprep.subr.mxu0 0.0
  %3110 = vmatpush1.xpose.msra.mxu0 %v3077
  %3111 = vmatprep.subr.mxu0 0.0
  %3112 = vmatpush2.xpose.msra.mxu0 0.0
  %3113 = vmatprep.subr.mxu0 0.0
  %3114 = vmatpush2.xpose.msra.mxu0 0.0
  %3115 = vmatprep.subr.mxu0 0.0
  %3116 = vmatpush2.xpose.msra.mxu0 0.0
  %3117 = vmatprep.subr.mxu0 0.0
  %3118 = vmatpush2.xpose.msra.mxu0 0.0
  %3119 = vmatprep.subr.mxu0 0.0
  %3120 = vmatpush2.xpose.msra.mxu0 0.0
  %3121 = vmatprep.subr.mxu0 0.0
  %3122 = vmatpush2.xpose.msra.mxu0 0.0
  %3123 = vmatprep.subr.mxu0 0.0
  %3124 = vmatpush2.xpose.msra.mxu0 0.0
  %3125 = vmatprep.subr.mxu0 0.0
  %3126 = vmatpush2.xpose.msra.mxu0 0.0
  %3127 = vmatprep.subr.mxu0 0.0
  %3128 = vmatpush2.xpose.msra.mxu0 0.0
  %3129 = vmatprep.subr.mxu0 0.0
  %3130 = vmatpush2.xpose.msra.mxu0 0.0
  %3131 = vmatprep.subr.mxu0 0.0
  %3132 = vmatpush2.xpose.msra.mxu0 0.0
  %3133 = vmatprep.subr.mxu0 0.0
  %3134 = vmatpush2.xpose.msra.mxu0 0.0
  %3135 = vmatprep.subr.mxu0 0.0
  %3136 = vmatpush2.xpose.msra.mxu0 0.0
  %3137 = vmatprep.subr.mxu0 0.0
  %3138 = vmatpush2.xpose.msra.mxu0 0.0
  %3139 = vmatprep.subr.mxu0 0.0
  %3140 = vmatpush2.xpose.msra.mxu0 0.0
  %3141 = vmatprep.subr.mxu0 0.0
  %3142 = vmatpush2.xpose.msra.mxu0 0.0
  %3143 = vmatprep.mubr.f32.mxu0 0.0
  %3144 = vmatmul.mubr.f32.gmra.mxu0 %v3074
  %v3145 = vpop.f32.mrf.mxu0
  %v3146 = vadd.f32 %v17, %v3145
  %v3147 = vpop.f32.mrf.mxu0
  %3148 = vdwg.mxu0
  %v3150 = vsel %vm66, %v2666, 0
  %v3153 = vsel %vm66, %v2683, 0
  %3155 = vmatprep.subr.mxu0 0.0
  %3156 = vmatpush1.xpose.msra.mxu0 0.0
  %3157 = vmatprep.subr.mxu0 0.0
  %3158 = vmatpush1.xpose.msra.mxu0 0.0
  %3159 = vmatprep.subr.mxu0 0.0
  %3160 = vmatpush1.xpose.msra.mxu0 0.0
  %3161 = vmatprep.subr.mxu0 0.0
  %3162 = vmatpush1.xpose.msra.mxu0 0.0
  %3163 = vmatprep.subr.mxu0 0.0
  %3164 = vmatpush1.xpose.msra.mxu0 0.0
  %3165 = vmatprep.subr.mxu0 0.0
  %3166 = vmatpush1.xpose.msra.mxu0 0.0
  %3167 = vmatprep.subr.mxu0 0.0
  %3168 = vmatpush1.xpose.msra.mxu0 0.0
  %3169 = vmatprep.subr.mxu0 0.0
  %3170 = vmatpush1.xpose.msra.mxu0 0.0
  %3171 = vmatprep.subr.mxu0 0.0
  %3172 = vmatpush1.xpose.msra.mxu0 0.0
  %3173 = vmatprep.subr.mxu0 0.0
  %3174 = vmatpush1.xpose.msra.mxu0 0.0
  %3175 = vmatprep.subr.mxu0 0.0
  %3176 = vmatpush1.xpose.msra.mxu0 0.0
  %3177 = vmatprep.subr.mxu0 0.0
  %3178 = vmatpush1.xpose.msra.mxu0 0.0
  %3179 = vmatprep.subr.mxu0 0.0
  %3180 = vmatpush1.xpose.msra.mxu0 0.0
  %3181 = vmatprep.subr.mxu0 0.0
  %3182 = vmatpush1.xpose.msra.mxu0 0.0
  %3183 = vmatprep.subr.mxu0 0.0
  %3184 = vmatpush1.xpose.msra.mxu0 0.0
  %3185 = vmatprep.subr.mxu0 0.0
  %3186 = vmatpush1.xpose.msra.mxu0 %v3153
  %3187 = vmatprep.subr.mxu0 0.0
  %3188 = vmatpush2.xpose.msra.mxu0 0.0
  %3189 = vmatprep.subr.mxu0 0.0
  %3190 = vmatpush2.xpose.msra.mxu0 0.0
  %3191 = vmatprep.subr.mxu0 0.0
  %3192 = vmatpush2.xpose.msra.mxu0 0.0
  %3193 = vmatprep.subr.mxu0 0.0
  %3194 = vmatpush2.xpose.msra.mxu0 0.0
  %3195 = vmatprep.subr.mxu0 0.0
  %3196 = vmatpush2.xpose.msra.mxu0 0.0
  %3197 = vmatprep.subr.mxu0 0.0
  %3198 = vmatpush2.xpose.msra.mxu0 0.0
  %3199 = vmatprep.subr.mxu0 0.0
  %3200 = vmatpush2.xpose.msra.mxu0 0.0
  %3201 = vmatprep.subr.mxu0 0.0
  %3202 = vmatpush2.xpose.msra.mxu0 0.0
  %3203 = vmatprep.subr.mxu0 0.0
  %3204 = vmatpush2.xpose.msra.mxu0 0.0
  %3205 = vmatprep.subr.mxu0 0.0
  %3206 = vmatpush2.xpose.msra.mxu0 0.0
  %3207 = vmatprep.subr.mxu0 0.0
  %3208 = vmatpush2.xpose.msra.mxu0 0.0
  %3209 = vmatprep.subr.mxu0 0.0
  %3210 = vmatpush2.xpose.msra.mxu0 0.0
  %3211 = vmatprep.subr.mxu0 0.0
  %3212 = vmatpush2.xpose.msra.mxu0 0.0
  %3213 = vmatprep.subr.mxu0 0.0
  %3214 = vmatpush2.xpose.msra.mxu0 0.0
  %3215 = vmatprep.subr.mxu0 0.0
  %3216 = vmatpush2.xpose.msra.mxu0 0.0
  %3217 = vmatprep.subr.mxu0 0.0
  %3218 = vmatpush2.xpose.msra.mxu0 0.0
  %3219 = vmatprep.mubr.f32.mxu0 0.0
  %3220 = vmatmul.mubr.f32.gmra.mxu0 %v3150
  %v3221 = vpop.f32.mrf.mxu0
  %v3222 = vadd.f32 %v17, %v3221
  %v3223 = vpop.f32.mrf.mxu0
  %3224 = vdwg.mxu0
  %v3226 = vsel %vm66, %v2667, 0
  %v3229 = vsel %vm66, %v2684, 0
  %3231 = vmatprep.subr.mxu0 0.0
  %3232 = vmatpush1.xpose.msra.mxu0 0.0
  %3233 = vmatprep.subr.mxu0 0.0
  %3234 = vmatpush1.xpose.msra.mxu0 0.0
  %3235 = vmatprep.subr.mxu0 0.0
  %3236 = vmatpush1.xpose.msra.mxu0 0.0
  %3237 = vmatprep.subr.mxu0 0.0
  %3238 = vmatpush1.xpose.msra.mxu0 0.0
  %3239 = vmatprep.subr.mxu0 0.0
  %3240 = vmatpush1.xpose.msra.mxu0 0.0
  %3241 = vmatprep.subr.mxu0 0.0
  %3242 = vmatpush1.xpose.msra.mxu0 0.0
  %3243 = vmatprep.subr.mxu0 0.0
  %3244 = vmatpush1.xpose.msra.mxu0 0.0
  %3245 = vmatprep.subr.mxu0 0.0
  %3246 = vmatpush1.xpose.msra.mxu0 0.0
  %3247 = vmatprep.subr.mxu0 0.0
  %3248 = vmatpush1.xpose.msra.mxu0 0.0
  %3249 = vmatprep.subr.mxu0 0.0
  %3250 = vmatpush1.xpose.msra.mxu0 0.0
  %3251 = vmatprep.subr.mxu0 0.0
  %3252 = vmatpush1.xpose.msra.mxu0 0.0
  %3253 = vmatprep.subr.mxu0 0.0
  %3254 = vmatpush1.xpose.msra.mxu0 0.0
  %3255 = vmatprep.subr.mxu0 0.0
  %3256 = vmatpush1.xpose.msra.mxu0 0.0
  %3257 = vmatprep.subr.mxu0 0.0
  %3258 = vmatpush1.xpose.msra.mxu0 0.0
  %3259 = vmatprep.subr.mxu0 0.0
  %3260 = vmatpush1.xpose.msra.mxu0 0.0
  %3261 = vmatprep.subr.mxu0 0.0
  %3262 = vmatpush1.xpose.msra.mxu0 %v3229
  %3263 = vmatprep.subr.mxu0 0.0
  %3264 = vmatpush2.xpose.msra.mxu0 0.0
  %3265 = vmatprep.subr.mxu0 0.0
  %3266 = vmatpush2.xpose.msra.mxu0 0.0
  %3267 = vmatprep.subr.mxu0 0.0
  %3268 = vmatpush2.xpose.msra.mxu0 0.0
  %3269 = vmatprep.subr.mxu0 0.0
  %3270 = vmatpush2.xpose.msra.mxu0 0.0
  %3271 = vmatprep.subr.mxu0 0.0
  %3272 = vmatpush2.xpose.msra.mxu0 0.0
  %3273 = vmatprep.subr.mxu0 0.0
  %3274 = vmatpush2.xpose.msra.mxu0 0.0
  %3275 = vmatprep.subr.mxu0 0.0
  %3276 = vmatpush2.xpose.msra.mxu0 0.0
  %3277 = vmatprep.subr.mxu0 0.0
  %3278 = vmatpush2.xpose.msra.mxu0 0.0
  %3279 = vmatprep.subr.mxu0 0.0
  %3280 = vmatpush2.xpose.msra.mxu0 0.0
  %3281 = vmatprep.subr.mxu0 0.0
  %3282 = vmatpush2.xpose.msra.mxu0 0.0
  %3283 = vmatprep.subr.mxu0 0.0
  %3284 = vmatpush2.xpose.msra.mxu0 0.0
  %3285 = vmatprep.subr.mxu0 0.0
  %3286 = vmatpush2.xpose.msra.mxu0 0.0
  %3287 = vmatprep.subr.mxu0 0.0
  %3288 = vmatpush2.xpose.msra.mxu0 0.0
  %3289 = vmatprep.subr.mxu0 0.0
  %3290 = vmatpush2.xpose.msra.mxu0 0.0
  %3291 = vmatprep.subr.mxu0 0.0
  %3292 = vmatpush2.xpose.msra.mxu0 0.0
  %3293 = vmatprep.subr.mxu0 0.0
  %3294 = vmatpush2.xpose.msra.mxu0 0.0
  %3295 = vmatprep.mubr.f32.mxu0 0.0
  %3296 = vmatmul.mubr.f32.gmra.mxu0 %v3226
  %v3297 = vpop.f32.mrf.mxu0
  %v3298 = vadd.f32 %v17, %v3297
  %v3299 = vpop.f32.mrf.mxu0
  %3300 = vdwg.mxu0
  %v3302 = vsel %vm66, %v2668, 0
  %v3305 = vsel %vm66, %v2685, 0
  %3307 = vmatprep.subr.mxu0 0.0
  %3308 = vmatpush1.xpose.msra.mxu0 0.0
  %3309 = vmatprep.subr.mxu0 0.0
  %3310 = vmatpush1.xpose.msra.mxu0 0.0
  %3311 = vmatprep.subr.mxu0 0.0
  %3312 = vmatpush1.xpose.msra.mxu0 0.0
  %3313 = vmatprep.subr.mxu0 0.0
  %3314 = vmatpush1.xpose.msra.mxu0 0.0
  %3315 = vmatprep.subr.mxu0 0.0
  %3316 = vmatpush1.xpose.msra.mxu0 0.0
  %3317 = vmatprep.subr.mxu0 0.0
  %3318 = vmatpush1.xpose.msra.mxu0 0.0
  %3319 = vmatprep.subr.mxu0 0.0
  %3320 = vmatpush1.xpose.msra.mxu0 0.0
  %3321 = vmatprep.subr.mxu0 0.0
  %3322 = vmatpush1.xpose.msra.mxu0 0.0
  %3323 = vmatprep.subr.mxu0 0.0
  %3324 = vmatpush1.xpose.msra.mxu0 0.0
  %3325 = vmatprep.subr.mxu0 0.0
  %3326 = vmatpush1.xpose.msra.mxu0 0.0
  %3327 = vmatprep.subr.mxu0 0.0
  %3328 = vmatpush1.xpose.msra.mxu0 0.0
  %3329 = vmatprep.subr.mxu0 0.0
  %3330 = vmatpush1.xpose.msra.mxu0 0.0
  %3331 = vmatprep.subr.mxu0 0.0
  %3332 = vmatpush1.xpose.msra.mxu0 0.0
  %3333 = vmatprep.subr.mxu0 0.0
  %3334 = vmatpush1.xpose.msra.mxu0 0.0
  %3335 = vmatprep.subr.mxu0 0.0
  %3336 = vmatpush1.xpose.msra.mxu0 0.0
  %3337 = vmatprep.subr.mxu0 0.0
  %3338 = vmatpush1.xpose.msra.mxu0 %v3305
  %3339 = vmatprep.subr.mxu0 0.0
  %3340 = vmatpush2.xpose.msra.mxu0 0.0
  %3341 = vmatprep.subr.mxu0 0.0
  %3342 = vmatpush2.xpose.msra.mxu0 0.0
  %3343 = vmatprep.subr.mxu0 0.0
  %3344 = vmatpush2.xpose.msra.mxu0 0.0
  %3345 = vmatprep.subr.mxu0 0.0
  %3346 = vmatpush2.xpose.msra.mxu0 0.0
  %3347 = vmatprep.subr.mxu0 0.0
  %3348 = vmatpush2.xpose.msra.mxu0 0.0
  %3349 = vmatprep.subr.mxu0 0.0
  %3350 = vmatpush2.xpose.msra.mxu0 0.0
  %3351 = vmatprep.subr.mxu0 0.0
  %3352 = vmatpush2.xpose.msra.mxu0 0.0
  %3353 = vmatprep.subr.mxu0 0.0
  %3354 = vmatpush2.xpose.msra.mxu0 0.0
  %3355 = vmatprep.subr.mxu0 0.0
  %3356 = vmatpush2.xpose.msra.mxu0 0.0
  %3357 = vmatprep.subr.mxu0 0.0
  %3358 = vmatpush2.xpose.msra.mxu0 0.0
  %3359 = vmatprep.subr.mxu0 0.0
  %3360 = vmatpush2.xpose.msra.mxu0 0.0
  %3361 = vmatprep.subr.mxu0 0.0
  %3362 = vmatpush2.xpose.msra.mxu0 0.0
  %3363 = vmatprep.subr.mxu0 0.0
  %3364 = vmatpush2.xpose.msra.mxu0 0.0
  %3365 = vmatprep.subr.mxu0 0.0
  %3366 = vmatpush2.xpose.msra.mxu0 0.0
  %3367 = vmatprep.subr.mxu0 0.0
  %3368 = vmatpush2.xpose.msra.mxu0 0.0
  %3369 = vmatprep.subr.mxu0 0.0
  %3370 = vmatpush2.xpose.msra.mxu0 0.0
  %3371 = vmatprep.mubr.f32.mxu0 0.0
  %3372 = vmatmul.mubr.f32.gmra.mxu0 %v3302
  %v3373 = vpop.f32.mrf.mxu0
  %v3374 = vadd.f32 %v17, %v3373
  %v3375 = vpop.f32.mrf.mxu0
  %3376 = vdwg.mxu0
  %v3378 = vsel %vm66, %v2669, 0
  %v3381 = vsel %vm66, %v2686, 0
  %3383 = vmatprep.subr.mxu0 0.0
  %3384 = vmatpush1.xpose.msra.mxu0 0.0
  %3385 = vmatprep.subr.mxu0 0.0
  %3386 = vmatpush1.xpose.msra.mxu0 0.0
  %3387 = vmatprep.subr.mxu0 0.0
  %3388 = vmatpush1.xpose.msra.mxu0 0.0
  %3389 = vmatprep.subr.mxu0 0.0
  %3390 = vmatpush1.xpose.msra.mxu0 0.0
  %3391 = vmatprep.subr.mxu0 0.0
  %3392 = vmatpush1.xpose.msra.mxu0 0.0
  %3393 = vmatprep.subr.mxu0 0.0
  %3394 = vmatpush1.xpose.msra.mxu0 0.0
  %3395 = vmatprep.subr.mxu0 0.0
  %3396 = vmatpush1.xpose.msra.mxu0 0.0
  %3397 = vmatprep.subr.mxu0 0.0
  %3398 = vmatpush1.xpose.msra.mxu0 0.0
  %3399 = vmatprep.subr.mxu0 0.0
  %3400 = vmatpush1.xpose.msra.mxu0 0.0
  %3401 = vmatprep.subr.mxu0 0.0
  %3402 = vmatpush1.xpose.msra.mxu0 0.0
  %3403 = vmatprep.subr.mxu0 0.0
  %3404 = vmatpush1.xpose.msra.mxu0 0.0
  %3405 = vmatprep.subr.mxu0 0.0
  %3406 = vmatpush1.xpose.msra.mxu0 0.0
  %3407 = vmatprep.subr.mxu0 0.0
  %3408 = vmatpush1.xpose.msra.mxu0 0.0
  %3409 = vmatprep.subr.mxu0 0.0
  %3410 = vmatpush1.xpose.msra.mxu0 0.0
  %3411 = vmatprep.subr.mxu0 0.0
  %3412 = vmatpush1.xpose.msra.mxu0 0.0
  %3413 = vmatprep.subr.mxu0 0.0
  %3414 = vmatpush1.xpose.msra.mxu0 %v3381
  %3415 = vmatprep.subr.mxu0 0.0
  %3416 = vmatpush2.xpose.msra.mxu0 0.0
  %3417 = vmatprep.subr.mxu0 0.0
  %3418 = vmatpush2.xpose.msra.mxu0 0.0
  %3419 = vmatprep.subr.mxu0 0.0
  %3420 = vmatpush2.xpose.msra.mxu0 0.0
  %3421 = vmatprep.subr.mxu0 0.0
  %3422 = vmatpush2.xpose.msra.mxu0 0.0
  %3423 = vmatprep.subr.mxu0 0.0
  %3424 = vmatpush2.xpose.msra.mxu0 0.0
  %3425 = vmatprep.subr.mxu0 0.0
  %3426 = vmatpush2.xpose.msra.mxu0 0.0
  %3427 = vmatprep.subr.mxu0 0.0
  %3428 = vmatpush2.xpose.msra.mxu0 0.0
  %3429 = vmatprep.subr.mxu0 0.0
  %3430 = vmatpush2.xpose.msra.mxu0 0.0
  %3431 = vmatprep.subr.mxu0 0.0
  %3432 = vmatpush2.xpose.msra.mxu0 0.0
  %3433 = vmatprep.subr.mxu0 0.0
  %3434 = vmatpush2.xpose.msra.mxu0 0.0
  %3435 = vmatprep.subr.mxu0 0.0
  %3436 = vmatpush2.xpose.msra.mxu0 0.0
  %3437 = vmatprep.subr.mxu0 0.0
  %3438 = vmatpush2.xpose.msra.mxu0 0.0
  %3439 = vmatprep.subr.mxu0 0.0
  %3440 = vmatpush2.xpose.msra.mxu0 0.0
  %3441 = vmatprep.subr.mxu0 0.0
  %3442 = vmatpush2.xpose.msra.mxu0 0.0
  %3443 = vmatprep.subr.mxu0 0.0
  %3444 = vmatpush2.xpose.msra.mxu0 0.0
  %3445 = vmatprep.subr.mxu0 0.0
  %3446 = vmatpush2.xpose.msra.mxu0 0.0
  %3447 = vmatprep.mubr.f32.mxu0 0.0
  %3448 = vmatmul.mubr.f32.gmra.mxu0 %v3378
  %v3449 = vpop.f32.mrf.mxu0
  %v3450 = vadd.f32 %v17, %v3449
  %v3451 = vpop.f32.mrf.mxu0
  %3452 = vdwg.mxu0
  %v3454 = vsel %vm66, %v2670, 0
  %v3457 = vsel %vm66, %v2687, 0
  %3459 = vmatprep.subr.mxu0 0.0
  %3460 = vmatpush1.xpose.msra.mxu0 0.0
  %3461 = vmatprep.subr.mxu0 0.0
  %3462 = vmatpush1.xpose.msra.mxu0 0.0
  %3463 = vmatprep.subr.mxu0 0.0
  %3464 = vmatpush1.xpose.msra.mxu0 0.0
  %3465 = vmatprep.subr.mxu0 0.0
  %3466 = vmatpush1.xpose.msra.mxu0 0.0
  %3467 = vmatprep.subr.mxu0 0.0
  %3468 = vmatpush1.xpose.msra.mxu0 0.0
  %3469 = vmatprep.subr.mxu0 0.0
  %3470 = vmatpush1.xpose.msra.mxu0 0.0
  %3471 = vmatprep.subr.mxu0 0.0
  %3472 = vmatpush1.xpose.msra.mxu0 0.0
  %3473 = vmatprep.subr.mxu0 0.0
  %3474 = vmatpush1.xpose.msra.mxu0 0.0
  %3475 = vmatprep.subr.mxu0 0.0
  %3476 = vmatpush1.xpose.msra.mxu0 0.0
  %3477 = vmatprep.subr.mxu0 0.0
  %3478 = vmatpush1.xpose.msra.mxu0 0.0
  %3479 = vmatprep.subr.mxu0 0.0
  %3480 = vmatpush1.xpose.msra.mxu0 0.0
  %3481 = vmatprep.subr.mxu0 0.0
  %3482 = vmatpush1.xpose.msra.mxu0 0.0
  %3483 = vmatprep.subr.mxu0 0.0
  %3484 = vmatpush1.xpose.msra.mxu0 0.0
  %3485 = vmatprep.subr.mxu0 0.0
  %3486 = vmatpush1.xpose.msra.mxu0 0.0
  %3487 = vmatprep.subr.mxu0 0.0
  %3488 = vmatpush1.xpose.msra.mxu0 0.0
  %3489 = vmatprep.subr.mxu0 0.0
  %3490 = vmatpush1.xpose.msra.mxu0 %v3457
  %3491 = vmatprep.subr.mxu0 0.0
  %3492 = vmatpush2.xpose.msra.mxu0 0.0
  %3493 = vmatprep.subr.mxu0 0.0
  %3494 = vmatpush2.xpose.msra.mxu0 0.0
  %3495 = vmatprep.subr.mxu0 0.0
  %3496 = vmatpush2.xpose.msra.mxu0 0.0
  %3497 = vmatprep.subr.mxu0 0.0
  %3498 = vmatpush2.xpose.msra.mxu0 0.0
  %3499 = vmatprep.subr.mxu0 0.0
  %3500 = vmatpush2.xpose.msra.mxu0 0.0
  %3501 = vmatprep.subr.mxu0 0.0
  %3502 = vmatpush2.xpose.msra.mxu0 0.0
  %3503 = vmatprep.subr.mxu0 0.0
  %3504 = vmatpush2.xpose.msra.mxu0 0.0
  %3505 = vmatprep.subr.mxu0 0.0
  %3506 = vmatpush2.xpose.msra.mxu0 0.0
  %3507 = vmatprep.subr.mxu0 0.0
  %3508 = vmatpush2.xpose.msra.mxu0 0.0
  %3509 = vmatprep.subr.mxu0 0.0
  %3510 = vmatpush2.xpose.msra.mxu0 0.0
  %3511 = vmatprep.subr.mxu0 0.0
  %3512 = vmatpush2.xpose.msra.mxu0 0.0
  %3513 = vmatprep.subr.mxu0 0.0
  %3514 = vmatpush2.xpose.msra.mxu0 0.0
  %3515 = vmatprep.subr.mxu0 0.0
  %3516 = vmatpush2.xpose.msra.mxu0 0.0
  %3517 = vmatprep.subr.mxu0 0.0
  %3518 = vmatpush2.xpose.msra.mxu0 0.0
  %3519 = vmatprep.subr.mxu0 0.0
  %3520 = vmatpush2.xpose.msra.mxu0 0.0
  %3521 = vmatprep.subr.mxu0 0.0
  %3522 = vmatpush2.xpose.msra.mxu0 0.0
  %3523 = vmatprep.mubr.f32.mxu0 0.0
  %3524 = vmatmul.mubr.f32.gmra.mxu0 %v3454
  %v3525 = vpop.f32.mrf.mxu0
  %v3526 = vadd.f32 %v17, %v3525
  %v3527 = vpop.f32.mrf.mxu0
  %3528 = vdwg.mxu0
  %v3530 = vsel %vm66, %v2671, 0
  %v3533 = vsel %vm66, %v2688, 0
  %3535 = vmatprep.subr.mxu0 0.0
  %3536 = vmatpush1.xpose.msra.mxu0 0.0
  %3537 = vmatprep.subr.mxu0 0.0
  %3538 = vmatpush1.xpose.msra.mxu0 0.0
  %3539 = vmatprep.subr.mxu0 0.0
  %3540 = vmatpush1.xpose.msra.mxu0 0.0
  %3541 = vmatprep.subr.mxu0 0.0
  %3542 = vmatpush1.xpose.msra.mxu0 0.0
  %3543 = vmatprep.subr.mxu0 0.0
  %3544 = vmatpush1.xpose.msra.mxu0 0.0
  %3545 = vmatprep.subr.mxu0 0.0
  %3546 = vmatpush1.xpose.msra.mxu0 0.0
  %3547 = vmatprep.subr.mxu0 0.0
  %3548 = vmatpush1.xpose.msra.mxu0 0.0
  %3549 = vmatprep.subr.mxu0 0.0
  %3550 = vmatpush1.xpose.msra.mxu0 0.0
  %3551 = vmatprep.subr.mxu0 0.0
  %3552 = vmatpush1.xpose.msra.mxu0 0.0
  %3553 = vmatprep.subr.mxu0 0.0
  %3554 = vmatpush1.xpose.msra.mxu0 0.0
  %3555 = vmatprep.subr.mxu0 0.0
  %3556 = vmatpush1.xpose.msra.mxu0 0.0
  %3557 = vmatprep.subr.mxu0 0.0
  %3558 = vmatpush1.xpose.msra.mxu0 0.0
  %3559 = vmatprep.subr.mxu0 0.0
  %3560 = vmatpush1.xpose.msra.mxu0 0.0
  %3561 = vmatprep.subr.mxu0 0.0
  %3562 = vmatpush1.xpose.msra.mxu0 0.0
  %3563 = vmatprep.subr.mxu0 0.0
  %3564 = vmatpush1.xpose.msra.mxu0 0.0
  %3565 = vmatprep.subr.mxu0 0.0
  %3566 = vmatpush1.xpose.msra.mxu0 %v3533
  %3567 = vmatprep.subr.mxu0 0.0
  %3568 = vmatpush2.xpose.msra.mxu0 0.0
  %3569 = vmatprep.subr.mxu0 0.0
  %3570 = vmatpush2.xpose.msra.mxu0 0.0
  %3571 = vmatprep.subr.mxu0 0.0
  %3572 = vmatpush2.xpose.msra.mxu0 0.0
  %3573 = vmatprep.subr.mxu0 0.0
  %3574 = vmatpush2.xpose.msra.mxu0 0.0
  %3575 = vmatprep.subr.mxu0 0.0
  %3576 = vmatpush2.xpose.msra.mxu0 0.0
  %3577 = vmatprep.subr.mxu0 0.0
  %3578 = vmatpush2.xpose.msra.mxu0 0.0
  %3579 = vmatprep.subr.mxu0 0.0
  %3580 = vmatpush2.xpose.msra.mxu0 0.0
  %3581 = vmatprep.subr.mxu0 0.0
  %3582 = vmatpush2.xpose.msra.mxu0 0.0
  %3583 = vmatprep.subr.mxu0 0.0
  %3584 = vmatpush2.xpose.msra.mxu0 0.0
  %3585 = vmatprep.subr.mxu0 0.0
  %3586 = vmatpush2.xpose.msra.mxu0 0.0
  %3587 = vmatprep.subr.mxu0 0.0
  %3588 = vmatpush2.xpose.msra.mxu0 0.0
  %3589 = vmatprep.subr.mxu0 0.0
  %3590 = vmatpush2.xpose.msra.mxu0 0.0
  %3591 = vmatprep.subr.mxu0 0.0
  %3592 = vmatpush2.xpose.msra.mxu0 0.0
  %3593 = vmatprep.subr.mxu0 0.0
  %3594 = vmatpush2.xpose.msra.mxu0 0.0
  %3595 = vmatprep.subr.mxu0 0.0
  %3596 = vmatpush2.xpose.msra.mxu0 0.0
  %3597 = vmatprep.subr.mxu0 0.0
  %3598 = vmatpush2.xpose.msra.mxu0 0.0
  %3599 = vmatprep.mubr.f32.mxu0 0.0
  %3600 = vmatmul.mubr.f32.gmra.mxu0 %v3530
  %v3601 = vpop.f32.mrf.mxu0
  %v3602 = vadd.f32 %v17, %v3601
  %v3603 = vpop.f32.mrf.mxu0
  %3604 = vdwg.mxu0
  %v3606 = vsel %vm66, %v2672, 0
  %v3609 = vsel %vm66, %v2689, 0
  %3611 = vmatprep.subr.mxu0 0.0
  %3612 = vmatpush1.xpose.msra.mxu0 0.0
  %3613 = vmatprep.subr.mxu0 0.0
  %3614 = vmatpush1.xpose.msra.mxu0 0.0
  %3615 = vmatprep.subr.mxu0 0.0
  %3616 = vmatpush1.xpose.msra.mxu0 0.0
  %3617 = vmatprep.subr.mxu0 0.0
  %3618 = vmatpush1.xpose.msra.mxu0 0.0
  %3619 = vmatprep.subr.mxu0 0.0
  %3620 = vmatpush1.xpose.msra.mxu0 0.0
  %3621 = vmatprep.subr.mxu0 0.0
  %3622 = vmatpush1.xpose.msra.mxu0 0.0
  %3623 = vmatprep.subr.mxu0 0.0
  %3624 = vmatpush1.xpose.msra.mxu0 0.0
  %3625 = vmatprep.subr.mxu0 0.0
  %3626 = vmatpush1.xpose.msra.mxu0 0.0
  %3627 = vmatprep.subr.mxu0 0.0
  %3628 = vmatpush1.xpose.msra.mxu0 0.0
  %3629 = vmatprep.subr.mxu0 0.0
  %3630 = vmatpush1.xpose.msra.mxu0 0.0
  %3631 = vmatprep.subr.mxu0 0.0
  %3632 = vmatpush1.xpose.msra.mxu0 0.0
  %3633 = vmatprep.subr.mxu0 0.0
  %3634 = vmatpush1.xpose.msra.mxu0 0.0
  %3635 = vmatprep.subr.mxu0 0.0
  %3636 = vmatpush1.xpose.msra.mxu0 0.0
  %3637 = vmatprep.subr.mxu0 0.0
  %3638 = vmatpush1.xpose.msra.mxu0 0.0
  %3639 = vmatprep.subr.mxu0 0.0
  %3640 = vmatpush1.xpose.msra.mxu0 0.0
  %3641 = vmatprep.subr.mxu0 0.0
  %3642 = vmatpush1.xpose.msra.mxu0 %v3609
  %3643 = vmatprep.subr.mxu0 0.0
  %3644 = vmatpush2.xpose.msra.mxu0 0.0
  %3645 = vmatprep.subr.mxu0 0.0
  %3646 = vmatpush2.xpose.msra.mxu0 0.0
  %3647 = vmatprep.subr.mxu0 0.0
  %3648 = vmatpush2.xpose.msra.mxu0 0.0
  %3649 = vmatprep.subr.mxu0 0.0
  %3650 = vmatpush2.xpose.msra.mxu0 0.0
  %3651 = vmatprep.subr.mxu0 0.0
  %3652 = vmatpush2.xpose.msra.mxu0 0.0
  %3653 = vmatprep.subr.mxu0 0.0
  %3654 = vmatpush2.xpose.msra.mxu0 0.0
  %3655 = vmatprep.subr.mxu0 0.0
  %3656 = vmatpush2.xpose.msra.mxu0 0.0
  %3657 = vmatprep.subr.mxu0 0.0
  %3658 = vmatpush2.xpose.msra.mxu0 0.0
  %3659 = vmatprep.subr.mxu0 0.0
  %3660 = vmatpush2.xpose.msra.mxu0 0.0
  %3661 = vmatprep.subr.mxu0 0.0
  %3662 = vmatpush2.xpose.msra.mxu0 0.0
  %3663 = vmatprep.subr.mxu0 0.0
  %3664 = vmatpush2.xpose.msra.mxu0 0.0
  %3665 = vmatprep.subr.mxu0 0.0
  %3666 = vmatpush2.xpose.msra.mxu0 0.0
  %3667 = vmatprep.subr.mxu0 0.0
  %3668 = vmatpush2.xpose.msra.mxu0 0.0
  %3669 = vmatprep.subr.mxu0 0.0
  %3670 = vmatpush2.xpose.msra.mxu0 0.0
  %3671 = vmatprep.subr.mxu0 0.0
  %3672 = vmatpush2.xpose.msra.mxu0 0.0
  %3673 = vmatprep.subr.mxu0 0.0
  %3674 = vmatpush2.xpose.msra.mxu0 0.0
  %3675 = vmatprep.mubr.f32.mxu0 0.0
  %3676 = vmatmul.mubr.f32.gmra.mxu0 %v3606
  %v3677 = vpop.f32.mrf.mxu0
  %v3678 = vadd.f32 %v17, %v3677
  %v3679 = vpop.f32.mrf.mxu0
  %3680 = vdwg.mxu0
  %v3682 = vsel %vm66, %v2673, 0
  %v3685 = vsel %vm66, %v2690, 0
  %3687 = vmatprep.subr.mxu0 0.0
  %3688 = vmatpush1.xpose.msra.mxu0 0.0
  %3689 = vmatprep.subr.mxu0 0.0
  %3690 = vmatpush1.xpose.msra.mxu0 0.0
  %3691 = vmatprep.subr.mxu0 0.0
  %3692 = vmatpush1.xpose.msra.mxu0 0.0
  %3693 = vmatprep.subr.mxu0 0.0
  %3694 = vmatpush1.xpose.msra.mxu0 0.0
  %3695 = vmatprep.subr.mxu0 0.0
  %3696 = vmatpush1.xpose.msra.mxu0 0.0
  %3697 = vmatprep.subr.mxu0 0.0
  %3698 = vmatpush1.xpose.msra.mxu0 0.0
  %3699 = vmatprep.subr.mxu0 0.0
  %3700 = vmatpush1.xpose.msra.mxu0 0.0
  %3701 = vmatprep.subr.mxu0 0.0
  %3702 = vmatpush1.xpose.msra.mxu0 0.0
  %3703 = vmatprep.subr.mxu0 0.0
  %3704 = vmatpush1.xpose.msra.mxu0 0.0
  %3705 = vmatprep.subr.mxu0 0.0
  %3706 = vmatpush1.xpose.msra.mxu0 0.0
  %3707 = vmatprep.subr.mxu0 0.0
  %3708 = vmatpush1.xpose.msra.mxu0 0.0
  %3709 = vmatprep.subr.mxu0 0.0
  %3710 = vmatpush1.xpose.msra.mxu0 0.0
  %3711 = vmatprep.subr.mxu0 0.0
  %3712 = vmatpush1.xpose.msra.mxu0 0.0
  %3713 = vmatprep.subr.mxu0 0.0
  %3714 = vmatpush1.xpose.msra.mxu0 0.0
  %3715 = vmatprep.subr.mxu0 0.0
  %3716 = vmatpush1.xpose.msra.mxu0 0.0
  %3717 = vmatprep.subr.mxu0 0.0
  %3718 = vmatpush1.xpose.msra.mxu0 %v3685
  %3719 = vmatprep.subr.mxu0 0.0
  %3720 = vmatpush2.xpose.msra.mxu0 0.0
  %3721 = vmatprep.subr.mxu0 0.0
  %3722 = vmatpush2.xpose.msra.mxu0 0.0
  %3723 = vmatprep.subr.mxu0 0.0
  %3724 = vmatpush2.xpose.msra.mxu0 0.0
  %3725 = vmatprep.subr.mxu0 0.0
  %3726 = vmatpush2.xpose.msra.mxu0 0.0
  %3727 = vmatprep.subr.mxu0 0.0
  %3728 = vmatpush2.xpose.msra.mxu0 0.0
  %3729 = vmatprep.subr.mxu0 0.0
  %3730 = vmatpush2.xpose.msra.mxu0 0.0
  %3731 = vmatprep.subr.mxu0 0.0
  %3732 = vmatpush2.xpose.msra.mxu0 0.0
  %3733 = vmatprep.subr.mxu0 0.0
  %3734 = vmatpush2.xpose.msra.mxu0 0.0
  %3735 = vmatprep.subr.mxu0 0.0
  %3736 = vmatpush2.xpose.msra.mxu0 0.0
  %3737 = vmatprep.subr.mxu0 0.0
  %3738 = vmatpush2.xpose.msra.mxu0 0.0
  %3739 = vmatprep.subr.mxu0 0.0
  %3740 = vmatpush2.xpose.msra.mxu0 0.0
  %3741 = vmatprep.subr.mxu0 0.0
  %3742 = vmatpush2.xpose.msra.mxu0 0.0
  %3743 = vmatprep.subr.mxu0 0.0
  %3744 = vmatpush2.xpose.msra.mxu0 0.0
  %3745 = vmatprep.subr.mxu0 0.0
  %3746 = vmatpush2.xpose.msra.mxu0 0.0
  %3747 = vmatprep.subr.mxu0 0.0
  %3748 = vmatpush2.xpose.msra.mxu0 0.0
  %3749 = vmatprep.subr.mxu0 0.0
  %3750 = vmatpush2.xpose.msra.mxu0 0.0
  %3751 = vmatprep.mubr.f32.mxu0 0.0
  %3752 = vmatmul.mubr.f32.gmra.mxu0 %v3682
  %v3753 = vpop.f32.mrf.mxu0
  %v3754 = vadd.f32 %v17, %v3753
  %v3755 = vpop.f32.mrf.mxu0
  %3756 = vdwg.mxu0
  %v3758 = vsel %vm66, %v2674, 0
  %v3761 = vsel %vm66, %v2691, 0
  %3763 = vmatprep.subr.mxu0 0.0
  %3764 = vmatpush1.xpose.msra.mxu0 0.0
  %3765 = vmatprep.subr.mxu0 0.0
  %3766 = vmatpush1.xpose.msra.mxu0 0.0
  %3767 = vmatprep.subr.mxu0 0.0
  %3768 = vmatpush1.xpose.msra.mxu0 0.0
  %3769 = vmatprep.subr.mxu0 0.0
  %3770 = vmatpush1.xpose.msra.mxu0 0.0
  %3771 = vmatprep.subr.mxu0 0.0
  %3772 = vmatpush1.xpose.msra.mxu0 0.0
  %3773 = vmatprep.subr.mxu0 0.0
  %3774 = vmatpush1.xpose.msra.mxu0 0.0
  %3775 = vmatprep.subr.mxu0 0.0
  %3776 = vmatpush1.xpose.msra.mxu0 0.0
  %3777 = vmatprep.subr.mxu0 0.0
  %3778 = vmatpush1.xpose.msra.mxu0 0.0
  %3779 = vmatprep.subr.mxu0 0.0
  %3780 = vmatpush1.xpose.msra.mxu0 0.0
  %3781 = vmatprep.subr.mxu0 0.0
  %3782 = vmatpush1.xpose.msra.mxu0 0.0
  %3783 = vmatprep.subr.mxu0 0.0
  %3784 = vmatpush1.xpose.msra.mxu0 0.0
  %3785 = vmatprep.subr.mxu0 0.0
  %3786 = vmatpush1.xpose.msra.mxu0 0.0
  %3787 = vmatprep.subr.mxu0 0.0
  %3788 = vmatpush1.xpose.msra.mxu0 0.0
  %3789 = vmatprep.subr.mxu0 0.0
  %3790 = vmatpush1.xpose.msra.mxu0 0.0
  %3791 = vmatprep.subr.mxu0 0.0
  %3792 = vmatpush1.xpose.msra.mxu0 0.0
  %3793 = vmatprep.subr.mxu0 0.0
  %3794 = vmatpush1.xpose.msra.mxu0 %v3761
  %3795 = vmatprep.subr.mxu0 0.0
  %3796 = vmatpush2.xpose.msra.mxu0 0.0
  %3797 = vmatprep.subr.mxu0 0.0
  %3798 = vmatpush2.xpose.msra.mxu0 0.0
  %3799 = vmatprep.subr.mxu0 0.0
  %3800 = vmatpush2.xpose.msra.mxu0 0.0
  %3801 = vmatprep.subr.mxu0 0.0
  %3802 = vmatpush2.xpose.msra.mxu0 0.0
  %3803 = vmatprep.subr.mxu0 0.0
  %3804 = vmatpush2.xpose.msra.mxu0 0.0
  %3805 = vmatprep.subr.mxu0 0.0
  %3806 = vmatpush2.xpose.msra.mxu0 0.0
  %3807 = vmatprep.subr.mxu0 0.0
  %3808 = vmatpush2.xpose.msra.mxu0 0.0
  %3809 = vmatprep.subr.mxu0 0.0
  %3810 = vmatpush2.xpose.msra.mxu0 0.0
  %3811 = vmatprep.subr.mxu0 0.0
  %3812 = vmatpush2.xpose.msra.mxu0 0.0
  %3813 = vmatprep.subr.mxu0 0.0
  %3814 = vmatpush2.xpose.msra.mxu0 0.0
  %3815 = vmatprep.subr.mxu0 0.0
  %3816 = vmatpush2.xpose.msra.mxu0 0.0
  %3817 = vmatprep.subr.mxu0 0.0
  %3818 = vmatpush2.xpose.msra.mxu0 0.0
  %3819 = vmatprep.subr.mxu0 0.0
  %3820 = vmatpush2.xpose.msra.mxu0 0.0
  %3821 = vmatprep.subr.mxu0 0.0
  %3822 = vmatpush2.xpose.msra.mxu0 0.0
  %3823 = vmatprep.subr.mxu0 0.0
  %3824 = vmatpush2.xpose.msra.mxu0 0.0
  %3825 = vmatprep.subr.mxu0 0.0
  %3826 = vmatpush2.xpose.msra.mxu0 0.0
  %3827 = vmatprep.mubr.f32.mxu0 0.0
  %3828 = vmatmul.mubr.f32.gmra.mxu0 %v3758
  %v3829 = vpop.f32.mrf.mxu0
  %v3830 = vadd.f32 %v17, %v3829
  %v3831 = vpop.f32.mrf.mxu0
  %3832 = vdwg.mxu0
  %v3834 = vsel %vm66, %v2675, 0
  %v3837 = vsel %vm66, %v2692, 0
  %3839 = vmatprep.subr.mxu0 0.0
  %3840 = vmatpush1.xpose.msra.mxu0 0.0
  %3841 = vmatprep.subr.mxu0 0.0
  %3842 = vmatpush1.xpose.msra.mxu0 0.0
  %3843 = vmatprep.subr.mxu0 0.0
  %3844 = vmatpush1.xpose.msra.mxu0 0.0
  %3845 = vmatprep.subr.mxu0 0.0
  %3846 = vmatpush1.xpose.msra.mxu0 0.0
  %3847 = vmatprep.subr.mxu0 0.0
  %3848 = vmatpush1.xpose.msra.mxu0 0.0
  %3849 = vmatprep.subr.mxu0 0.0
  %3850 = vmatpush1.xpose.msra.mxu0 0.0
  %3851 = vmatprep.subr.mxu0 0.0
  %3852 = vmatpush1.xpose.msra.mxu0 0.0
  %3853 = vmatprep.subr.mxu0 0.0
  %3854 = vmatpush1.xpose.msra.mxu0 0.0
  %3855 = vmatprep.subr.mxu0 0.0
  %3856 = vmatpush1.xpose.msra.mxu0 0.0
  %3857 = vmatprep.subr.mxu0 0.0
  %3858 = vmatpush1.xpose.msra.mxu0 0.0
  %3859 = vmatprep.subr.mxu0 0.0
  %3860 = vmatpush1.xpose.msra.mxu0 0.0
  %3861 = vmatprep.subr.mxu0 0.0
  %3862 = vmatpush1.xpose.msra.mxu0 0.0
  %3863 = vmatprep.subr.mxu0 0.0
  %3864 = vmatpush1.xpose.msra.mxu0 0.0
  %3865 = vmatprep.subr.mxu0 0.0
  %3866 = vmatpush1.xpose.msra.mxu0 0.0
  %3867 = vmatprep.subr.mxu0 0.0
  %3868 = vmatpush1.xpose.msra.mxu0 0.0
  %3869 = vmatprep.subr.mxu0 0.0
  %3870 = vmatpush1.xpose.msra.mxu0 %v3837
  %3871 = vmatprep.subr.mxu0 0.0
  %3872 = vmatpush2.xpose.msra.mxu0 0.0
  %3873 = vmatprep.subr.mxu0 0.0
  %3874 = vmatpush2.xpose.msra.mxu0 0.0
  %3875 = vmatprep.subr.mxu0 0.0
  %3876 = vmatpush2.xpose.msra.mxu0 0.0
  %3877 = vmatprep.subr.mxu0 0.0
  %3878 = vmatpush2.xpose.msra.mxu0 0.0
  %3879 = vmatprep.subr.mxu0 0.0
  %3880 = vmatpush2.xpose.msra.mxu0 0.0
  %3881 = vmatprep.subr.mxu0 0.0
  %3882 = vmatpush2.xpose.msra.mxu0 0.0
  %3883 = vmatprep.subr.mxu0 0.0
  %3884 = vmatpush2.xpose.msra.mxu0 0.0
  %3885 = vmatprep.subr.mxu0 0.0
  %3886 = vmatpush2.xpose.msra.mxu0 0.0
  %3887 = vmatprep.subr.mxu0 0.0
  %3888 = vmatpush2.xpose.msra.mxu0 0.0
  %3889 = vmatprep.subr.mxu0 0.0
  %3890 = vmatpush2.xpose.msra.mxu0 0.0
  %3891 = vmatprep.subr.mxu0 0.0
  %3892 = vmatpush2.xpose.msra.mxu0 0.0
  %3893 = vmatprep.subr.mxu0 0.0
  %3894 = vmatpush2.xpose.msra.mxu0 0.0
  %3895 = vmatprep.subr.mxu0 0.0
  %3896 = vmatpush2.xpose.msra.mxu0 0.0
  %3897 = vmatprep.subr.mxu0 0.0
  %3898 = vmatpush2.xpose.msra.mxu0 0.0
  %3899 = vmatprep.subr.mxu0 0.0
  %3900 = vmatpush2.xpose.msra.mxu0 0.0
  %3901 = vmatprep.subr.mxu0 0.0
  %3902 = vmatpush2.xpose.msra.mxu0 0.0
  %3903 = vmatprep.mubr.f32.mxu0 0.0
  %3904 = vmatmul.mubr.f32.gmra.mxu0 %v3834
  %v3905 = vpop.f32.mrf.mxu0
  %v3906 = vadd.f32 %v17, %v3905
  %v3907 = vpop.f32.mrf.mxu0
  %3908 = vdwg.mxu0
  %v3909 = vsel %vm66, %v2766, -inf
  %3910 = vmax.xlane.f32.xlu0 %v3909
  %v3911 = vpop.xlane.xlu0 %3910
  %v3912 = vsel %vm66, %v2842, -inf
  %3913 = vmax.xlane.f32.xlu0 %v3912
  %v3914 = vpop.xlane.xlu0 %3913
  %v3915 = vsel %vm66, %v2918, -inf
  %3916 = vmax.xlane.f32.xlu0 %v3915
  %v3917 = vpop.xlane.xlu0 %3916
  %v3918 = vsel %vm66, %v2994, -inf
  %3919 = vmax.xlane.f32.xlu0 %v3918
  %v3920 = vpop.xlane.xlu0 %3919
  %v3921 = vsel %vm66, %v3070, -inf
  %3922 = vmax.xlane.f32.xlu0 %v3921
  %v3923 = vpop.xlane.xlu0 %3922
  %v3924 = vsel %vm66, %v3146, -inf
  %3925 = vmax.xlane.f32.xlu0 %v3924
  %v3926 = vpop.xlane.xlu0 %3925
  %v3927 = vsel %vm66, %v3222, -inf
  %3928 = vmax.xlane.f32.xlu0 %v3927
  %v3929 = vpop.xlane.xlu0 %3928
  %v3930 = vsel %vm66, %v3298, -inf
  %3931 = vmax.xlane.f32.xlu0 %v3930
  %v3932 = vpop.xlane.xlu0 %3931
  %v3933 = vsel %vm66, %v3374, -inf
  %3934 = vmax.xlane.f32.xlu0 %v3933
  %v3935 = vpop.xlane.xlu0 %3934
  %v3936 = vsel %vm66, %v3450, -inf
  %3937 = vmax.xlane.f32.xlu0 %v3936
  %v3938 = vpop.xlane.xlu0 %3937
  %v3939 = vsel %vm66, %v3526, -inf
  %3940 = vmax.xlane.f32.xlu0 %v3939
  %v3941 = vpop.xlane.xlu0 %3940
  %v3942 = vsel %vm66, %v3602, -inf
  %3943 = vmax.xlane.f32.xlu0 %v3942
  %v3944 = vpop.xlane.xlu0 %3943
  %v3945 = vsel %vm66, %v3678, -inf
  %3946 = vmax.xlane.f32.xlu0 %v3945
  %v3947 = vpop.xlane.xlu0 %3946
  %v3948 = vsel %vm66, %v3754, -inf
  %3949 = vmax.xlane.f32.xlu0 %v3948
  %v3950 = vpop.xlane.xlu0 %3949
  %v3951 = vsel %vm66, %v3830, -inf
  %3952 = vmax.xlane.f32.xlu0 %v3951
  %v3953 = vpop.xlane.xlu0 %3952
  %v3954 = vsel %vm66, %v3906, -inf
  %3955 = vmax.xlane.f32.xlu0 %v3954
  %v3956 = vpop.xlane.xlu0 %3955
  %v3957 = vsub.f32 %v2766, %v3911
  %v3958 = vsub.f32 %v2842, %v3914
  %v3959 = vsub.f32 %v2918, %v3917
  %v3960 = vsub.f32 %v2994, %v3920
  %v3961 = vsub.f32 %v3070, %v3923
  %v3962 = vsub.f32 %v3146, %v3926
  %v3963 = vsub.f32 %v3222, %v3929
  %v3964 = vsub.f32 %v3298, %v3932
  %v3965 = vsub.f32 %v3374, %v3935
  %v3966 = vsub.f32 %v3450, %v3938
  %v3967 = vsub.f32 %v3526, %v3941
  %v3968 = vsub.f32 %v3602, %v3944
  %v3969 = vsub.f32 %v3678, %v3947
  %v3970 = vsub.f32 %v3754, %v3950
  %v3971 = vsub.f32 %v3830, %v3953
  %v3972 = vsub.f32 %v3906, %v3956
  %v3973 = vmul.f32 %v3957, 1.442695
  %v3974 = vpow.pop %v3973
  %v3975 = vmul.f32 %v3958, 1.442695
  %v3976 = vpow.pop %v3975
  %v3977 = vmul.f32 %v3959, 1.442695
  %v3978 = vpow.pop %v3977
  %v3979 = vmul.f32 %v3960, 1.442695
  %v3980 = vpow.pop %v3979
  %v3981 = vmul.f32 %v3961, 1.442695
  %v3982 = vpow.pop %v3981
  %v3983 = vmul.f32 %v3962, 1.442695
  %v3984 = vpow.pop %v3983
  %v3985 = vmul.f32 %v3963, 1.442695
  %v3986 = vpow.pop %v3985
  %v3987 = vmul.f32 %v3964, 1.442695
  %v3988 = vpow.pop %v3987
  %v3989 = vmul.f32 %v3965, 1.442695
  %v3990 = vpow.pop %v3989
  %v3991 = vmul.f32 %v3966, 1.442695
  %v3992 = vpow.pop %v3991
  %v3993 = vmul.f32 %v3967, 1.442695
  %v3994 = vpow.pop %v3993
  %v3995 = vmul.f32 %v3968, 1.442695
  %v3996 = vpow.pop %v3995
  %v3997 = vmul.f32 %v3969, 1.442695
  %v3998 = vpow.pop %v3997
  %v3999 = vmul.f32 %v3970, 1.442695
  %v4000 = vpow.pop %v3999
  %v4001 = vmul.f32 %v3971, 1.442695
  %v4002 = vpow.pop %v4001
  %v4003 = vmul.f32 %v3972, 1.442695
  %v4004 = vpow.pop %v4003
  %v4005 = vsel %vm66, %v3974, 0.0
  %4006 = vadd.xlane.f32.xlu0 %v4005
  %v4007 = vpop.xlane.xlu0 %4006
  %v4008 = vsel %vm66, %v3976, 0.0
  %4009 = vadd.xlane.f32.xlu0 %v4008
  %v4010 = vpop.xlane.xlu0 %4009
  %v4011 = vsel %vm66, %v3978, 0.0
  %4012 = vadd.xlane.f32.xlu0 %v4011
  %v4013 = vpop.xlane.xlu0 %4012
  %v4014 = vsel %vm66, %v3980, 0.0
  %4015 = vadd.xlane.f32.xlu0 %v4014
  %v4016 = vpop.xlane.xlu0 %4015
  %v4017 = vsel %vm66, %v3982, 0.0
  %4018 = vadd.xlane.f32.xlu0 %v4017
  %v4019 = vpop.xlane.xlu0 %4018
  %v4020 = vsel %vm66, %v3984, 0.0
  %4021 = vadd.xlane.f32.xlu0 %v4020
  %v4022 = vpop.xlane.xlu0 %4021
  %v4023 = vsel %vm66, %v3986, 0.0
  %4024 = vadd.xlane.f32.xlu0 %v4023
  %v4025 = vpop.xlane.xlu0 %4024
  %v4026 = vsel %vm66, %v3988, 0.0
  %4027 = vadd.xlane.f32.xlu0 %v4026
  %v4028 = vpop.xlane.xlu0 %4027
  %v4029 = vsel %vm66, %v3990, 0.0
  %4030 = vadd.xlane.f32.xlu0 %v4029
  %v4031 = vpop.xlane.xlu0 %4030
  %v4032 = vsel %vm66, %v3992, 0.0
  %4033 = vadd.xlane.f32.xlu0 %v4032
  %v4034 = vpop.xlane.xlu0 %4033
  %v4035 = vsel %vm66, %v3994, 0.0
  %4036 = vadd.xlane.f32.xlu0 %v4035
  %v4037 = vpop.xlane.xlu0 %4036
  %v4038 = vsel %vm66, %v3996, 0.0
  %4039 = vadd.xlane.f32.xlu0 %v4038
  %v4040 = vpop.xlane.xlu0 %4039
  %v4041 = vsel %vm66, %v3998, 0.0
  %4042 = vadd.xlane.f32.xlu0 %v4041
  %v4043 = vpop.xlane.xlu0 %4042
  %v4044 = vsel %vm66, %v4000, 0.0
  %4045 = vadd.xlane.f32.xlu0 %v4044
  %v4046 = vpop.xlane.xlu0 %4045
  %v4047 = vsel %vm66, %v4002, 0.0
  %4048 = vadd.xlane.f32.xlu0 %v4047
  %v4049 = vpop.xlane.xlu0 %4048
  %v4050 = vsel %vm66, %v4004, 0.0
  %4051 = vadd.xlane.f32.xlu0 %v4050
  %v4052 = vpop.xlane.xlu0 %4051
  %v4053 = vrcp.pop %v4007
  %v4054 = vrcp.pop %v4010
  %v4055 = vrcp.pop %v4013
  %v4056 = vrcp.pop %v4016
  %v4057 = vrcp.pop %v4019
  %v4058 = vrcp.pop %v4022
  %v4059 = vrcp.pop %v4025
  %v4060 = vrcp.pop %v4028
  %v4061 = vrcp.pop %v4031
  %v4062 = vrcp.pop %v4034
  %v4063 = vrcp.pop %v4037
  %v4064 = vrcp.pop %v4040
  %v4065 = vrcp.pop %v4043
  %v4066 = vrcp.pop %v4046
  %v4067 = vrcp.pop %v4049
  %v4068 = vrcp.pop %v4052
  %v4069 = vmul.f32 %v3974, %v4053
  %v4070 = vmul.f32 %v3976, %v4054
  %v4071 = vmul.f32 %v3978, %v4055
  %v4072 = vmul.f32 %v3980, %v4056
  %v4073 = vmul.f32 %v3982, %v4057
  %v4074 = vmul.f32 %v3984, %v4058
  %v4075 = vmul.f32 %v3986, %v4059
  %v4076 = vmul.f32 %v3988, %v4060
  %v4077 = vmul.f32 %v3990, %v4061
  %v4078 = vmul.f32 %v3992, %v4062
  %v4079 = vmul.f32 %v3994, %v4063
  %v4080 = vmul.f32 %v3996, %v4064
  %v4081 = vmul.f32 %v3998, %v4065
  %v4082 = vmul.f32 %v4000, %v4066
  %v4083 = vmul.f32 %v4002, %v4067
  %v4084 = vmul.f32 %v4004, %v4068
  %s4085 = scalar_lea.vmem %s2, 128
  %v4086 = vld [vmem:[%s4085] sm:$0xff]
  %v4087 = vld [vmem:[%s4085 + $0x8] sm:$0xff]
  %v4088 = vld [vmem:[%s4085 + $0x10] sm:$0xff]
  %v4089 = vld [vmem:[%s4085 + $0x18] sm:$0xff]
  %v4090 = vld [vmem:[%s4085 + $0x20] sm:$0xff]
  %v4091 = vld [vmem:[%s4085 + $0x28] sm:$0xff]
  %v4092 = vld [vmem:[%s4085 + $0x30] sm:$0xff]
  %v4093 = vld [vmem:[%s4085 + $0x38] sm:$0xff]
  %v4094 = vld [vmem:[%s4085 + $0x40] sm:$0xff]
  %v4095 = vld [vmem:[%s4085 + $0x48] sm:$0xff]
  %v4096 = vld [vmem:[%s4085 + $0x50] sm:$0xff]
  %v4097 = vld [vmem:[%s4085 + $0x58] sm:$0xff]
  %v4098 = vld [vmem:[%s4085 + $0x60] sm:$0xff]
  %v4099 = vld [vmem:[%s4085 + $0x68] sm:$0xff]
  %v4100 = vld [vmem:[%s4085 + $0x70] sm:$0xff]
  %v4101 = vld [vmem:[%s4085 + $0x78] sm:$0xff]
  %v4103 = vsel %vm66, %v4069, 0
  %4105 = vmatprep.subr.mxu0 0.0
  %4106 = vmatpush1.msra.mxu0 0.0
  %4107 = vmatprep.subr.mxu0 0.0
  %4108 = vmatpush1.msra.mxu0 0.0
  %4109 = vmatprep.subr.mxu0 0.0
  %4110 = vmatpush1.msra.mxu0 0.0
  %4111 = vmatprep.subr.mxu0 0.0
  %4112 = vmatpush1.msra.mxu0 0.0
  %4113 = vmatprep.subr.mxu0 0.0
  %4114 = vmatpush1.msra.mxu0 0.0
  %4115 = vmatprep.subr.mxu0 0.0
  %4116 = vmatpush1.msra.mxu0 0.0
  %4117 = vmatprep.subr.mxu0 0.0
  %4118 = vmatpush1.msra.mxu0 0.0
  %4119 = vmatprep.subr.mxu0 0.0
  %4120 = vmatpush1.msra.mxu0 0.0
  %4121 = vmatprep.subr.mxu0 0.0
  %4122 = vmatpush1.msra.mxu0 0.0
  %4123 = vmatprep.subr.mxu0 0.0
  %4124 = vmatpush1.msra.mxu0 0.0
  %4125 = vmatprep.subr.mxu0 0.0
  %4126 = vmatpush1.msra.mxu0 0.0
  %4127 = vmatprep.subr.mxu0 0.0
  %4128 = vmatpush1.msra.mxu0 0.0
  %4129 = vmatprep.subr.mxu0 0.0
  %4130 = vmatpush1.msra.mxu0 0.0
  %4131 = vmatprep.subr.mxu0 0.0
  %4132 = vmatpush1.msra.mxu0 0.0
  %4133 = vmatprep.subr.mxu0 0.0
  %4134 = vmatpush1.msra.mxu0 0.0
  %4135 = vmatprep.subr.mxu0 0.0
  %4136 = vmatpush1.msra.mxu0 %v4086
  %4137 = vmatprep.subr.mxu0 0.0
  %4138 = vmatpush2.msra.mxu0 0.0
  %4139 = vmatprep.subr.mxu0 0.0
  %4140 = vmatpush2.msra.mxu0 0.0
  %4141 = vmatprep.subr.mxu0 0.0
  %4142 = vmatpush2.msra.mxu0 0.0
  %4143 = vmatprep.subr.mxu0 0.0
  %4144 = vmatpush2.msra.mxu0 0.0
  %4145 = vmatprep.subr.mxu0 0.0
  %4146 = vmatpush2.msra.mxu0 0.0
  %4147 = vmatprep.subr.mxu0 0.0
  %4148 = vmatpush2.msra.mxu0 0.0
  %4149 = vmatprep.subr.mxu0 0.0
  %4150 = vmatpush2.msra.mxu0 0.0
  %4151 = vmatprep.subr.mxu0 0.0
  %4152 = vmatpush2.msra.mxu0 0.0
  %4153 = vmatprep.subr.mxu0 0.0
  %4154 = vmatpush2.msra.mxu0 0.0
  %4155 = vmatprep.subr.mxu0 0.0
  %4156 = vmatpush2.msra.mxu0 0.0
  %4157 = vmatprep.subr.mxu0 0.0
  %4158 = vmatpush2.msra.mxu0 0.0
  %4159 = vmatprep.subr.mxu0 0.0
  %4160 = vmatpush2.msra.mxu0 0.0
  %4161 = vmatprep.subr.mxu0 0.0
  %4162 = vmatpush2.msra.mxu0 0.0
  %4163 = vmatprep.subr.mxu0 0.0
  %4164 = vmatpush2.msra.mxu0 0.0
  %4165 = vmatprep.subr.mxu0 0.0
  %4166 = vmatpush2.msra.mxu0 0.0
  %4167 = vmatprep.subr.mxu0 0.0
  %4168 = vmatpush2.msra.mxu0 0.0
  %4169 = vmatprep.mubr.f32.mxu0 0.0
  %4170 = vmatmul.mubr.f32.gmra.mxu0 %v4103
  %v4171 = vpop.f32.mrf.mxu0
  %v4172 = vadd.f32 0.0, %v4171
  %v4173 = vpop.f32.mrf.mxu0
  %4174 = vdwg.mxu0
  %v4176 = vsel %vm66, %v4070, 0
  %4178 = vmatprep.subr.mxu0 0.0
  %4179 = vmatpush1.msra.mxu0 0.0
  %4180 = vmatprep.subr.mxu0 0.0
  %4181 = vmatpush1.msra.mxu0 0.0
  %4182 = vmatprep.subr.mxu0 0.0
  %4183 = vmatpush1.msra.mxu0 0.0
  %4184 = vmatprep.subr.mxu0 0.0
  %4185 = vmatpush1.msra.mxu0 0.0
  %4186 = vmatprep.subr.mxu0 0.0
  %4187 = vmatpush1.msra.mxu0 0.0
  %4188 = vmatprep.subr.mxu0 0.0
  %4189 = vmatpush1.msra.mxu0 0.0
  %4190 = vmatprep.subr.mxu0 0.0
  %4191 = vmatpush1.msra.mxu0 0.0
  %4192 = vmatprep.subr.mxu0 0.0
  %4193 = vmatpush1.msra.mxu0 0.0
  %4194 = vmatprep.subr.mxu0 0.0
  %4195 = vmatpush1.msra.mxu0 0.0
  %4196 = vmatprep.subr.mxu0 0.0
  %4197 = vmatpush1.msra.mxu0 0.0
  %4198 = vmatprep.subr.mxu0 0.0
  %4199 = vmatpush1.msra.mxu0 0.0
  %4200 = vmatprep.subr.mxu0 0.0
  %4201 = vmatpush1.msra.mxu0 0.0
  %4202 = vmatprep.subr.mxu0 0.0
  %4203 = vmatpush1.msra.mxu0 0.0
  %4204 = vmatprep.subr.mxu0 0.0
  %4205 = vmatpush1.msra.mxu0 0.0
  %4206 = vmatprep.subr.mxu0 0.0
  %4207 = vmatpush1.msra.mxu0 0.0
  %4208 = vmatprep.subr.mxu0 0.0
  %4209 = vmatpush1.msra.mxu0 %v4087
  %4210 = vmatprep.subr.mxu0 0.0
  %4211 = vmatpush2.msra.mxu0 0.0
  %4212 = vmatprep.subr.mxu0 0.0
  %4213 = vmatpush2.msra.mxu0 0.0
  %4214 = vmatprep.subr.mxu0 0.0
  %4215 = vmatpush2.msra.mxu0 0.0
  %4216 = vmatprep.subr.mxu0 0.0
  %4217 = vmatpush2.msra.mxu0 0.0
  %4218 = vmatprep.subr.mxu0 0.0
  %4219 = vmatpush2.msra.mxu0 0.0
  %4220 = vmatprep.subr.mxu0 0.0
  %4221 = vmatpush2.msra.mxu0 0.0
  %4222 = vmatprep.subr.mxu0 0.0
  %4223 = vmatpush2.msra.mxu0 0.0
  %4224 = vmatprep.subr.mxu0 0.0
  %4225 = vmatpush2.msra.mxu0 0.0
  %4226 = vmatprep.subr.mxu0 0.0
  %4227 = vmatpush2.msra.mxu0 0.0
  %4228 = vmatprep.subr.mxu0 0.0
  %4229 = vmatpush2.msra.mxu0 0.0
  %4230 = vmatprep.subr.mxu0 0.0
  %4231 = vmatpush2.msra.mxu0 0.0
  %4232 = vmatprep.subr.mxu0 0.0
  %4233 = vmatpush2.msra.mxu0 0.0
  %4234 = vmatprep.subr.mxu0 0.0
  %4235 = vmatpush2.msra.mxu0 0.0
  %4236 = vmatprep.subr.mxu0 0.0
  %4237 = vmatpush2.msra.mxu0 0.0
  %4238 = vmatprep.subr.mxu0 0.0
  %4239 = vmatpush2.msra.mxu0 0.0
  %4240 = vmatprep.subr.mxu0 0.0
  %4241 = vmatpush2.msra.mxu0 0.0
  %4242 = vmatprep.mubr.f32.mxu0 0.0
  %4243 = vmatmul.mubr.f32.gmra.mxu0 %v4176
  %v4244 = vpop.f32.mrf.mxu0
  %v4245 = vadd.f32 0.0, %v4244
  %v4246 = vpop.f32.mrf.mxu0
  %4247 = vdwg.mxu0
  %v4249 = vsel %vm66, %v4071, 0
  %4251 = vmatprep.subr.mxu0 0.0
  %4252 = vmatpush1.msra.mxu0 0.0
  %4253 = vmatprep.subr.mxu0 0.0
  %4254 = vmatpush1.msra.mxu0 0.0
  %4255 = vmatprep.subr.mxu0 0.0
  %4256 = vmatpush1.msra.mxu0 0.0
  %4257 = vmatprep.subr.mxu0 0.0
  %4258 = vmatpush1.msra.mxu0 0.0
  %4259 = vmatprep.subr.mxu0 0.0
  %4260 = vmatpush1.msra.mxu0 0.0
  %4261 = vmatprep.subr.mxu0 0.0
  %4262 = vmatpush1.msra.mxu0 0.0
  %4263 = vmatprep.subr.mxu0 0.0
  %4264 = vmatpush1.msra.mxu0 0.0
  %4265 = vmatprep.subr.mxu0 0.0
  %4266 = vmatpush1.msra.mxu0 0.0
  %4267 = vmatprep.subr.mxu0 0.0
  %4268 = vmatpush1.msra.mxu0 0.0
  %4269 = vmatprep.subr.mxu0 0.0
  %4270 = vmatpush1.msra.mxu0 0.0
  %4271 = vmatprep.subr.mxu0 0.0
  %4272 = vmatpush1.msra.mxu0 0.0
  %4273 = vmatprep.subr.mxu0 0.0
  %4274 = vmatpush1.msra.mxu0 0.0
  %4275 = vmatprep.subr.mxu0 0.0
  %4276 = vmatpush1.msra.mxu0 0.0
  %4277 = vmatprep.subr.mxu0 0.0
  %4278 = vmatpush1.msra.mxu0 0.0
  %4279 = vmatprep.subr.mxu0 0.0
  %4280 = vmatpush1.msra.mxu0 0.0
  %4281 = vmatprep.subr.mxu0 0.0
  %4282 = vmatpush1.msra.mxu0 %v4088
  %4283 = vmatprep.subr.mxu0 0.0
  %4284 = vmatpush2.msra.mxu0 0.0
  %4285 = vmatprep.subr.mxu0 0.0
  %4286 = vmatpush2.msra.mxu0 0.0
  %4287 = vmatprep.subr.mxu0 0.0
  %4288 = vmatpush2.msra.mxu0 0.0
  %4289 = vmatprep.subr.mxu0 0.0
  %4290 = vmatpush2.msra.mxu0 0.0
  %4291 = vmatprep.subr.mxu0 0.0
  %4292 = vmatpush2.msra.mxu0 0.0
  %4293 = vmatprep.subr.mxu0 0.0
  %4294 = vmatpush2.msra.mxu0 0.0
  %4295 = vmatprep.subr.mxu0 0.0
  %4296 = vmatpush2.msra.mxu0 0.0
  %4297 = vmatprep.subr.mxu0 0.0
  %4298 = vmatpush2.msra.mxu0 0.0
  %4299 = vmatprep.subr.mxu0 0.0
  %4300 = vmatpush2.msra.mxu0 0.0
  %4301 = vmatprep.subr.mxu0 0.0
  %4302 = vmatpush2.msra.mxu0 0.0
  %4303 = vmatprep.subr.mxu0 0.0
  %4304 = vmatpush2.msra.mxu0 0.0
  %4305 = vmatprep.subr.mxu0 0.0
  %4306 = vmatpush2.msra.mxu0 0.0
  %4307 = vmatprep.subr.mxu0 0.0
  %4308 = vmatpush2.msra.mxu0 0.0
  %4309 = vmatprep.subr.mxu0 0.0
  %4310 = vmatpush2.msra.mxu0 0.0
  %4311 = vmatprep.subr.mxu0 0.0
  %4312 = vmatpush2.msra.mxu0 0.0
  %4313 = vmatprep.subr.mxu0 0.0
  %4314 = vmatpush2.msra.mxu0 0.0
  %4315 = vmatprep.mubr.f32.mxu0 0.0
  %4316 = vmatmul.mubr.f32.gmra.mxu0 %v4249
  %v4317 = vpop.f32.mrf.mxu0
  %v4318 = vadd.f32 0.0, %v4317
  %v4319 = vpop.f32.mrf.mxu0
  %4320 = vdwg.mxu0
  %v4322 = vsel %vm66, %v4072, 0
  %4324 = vmatprep.subr.mxu0 0.0
  %4325 = vmatpush1.msra.mxu0 0.0
  %4326 = vmatprep.subr.mxu0 0.0
  %4327 = vmatpush1.msra.mxu0 0.0
  %4328 = vmatprep.subr.mxu0 0.0
  %4329 = vmatpush1.msra.mxu0 0.0
  %4330 = vmatprep.subr.mxu0 0.0
  %4331 = vmatpush1.msra.mxu0 0.0
  %4332 = vmatprep.subr.mxu0 0.0
  %4333 = vmatpush1.msra.mxu0 0.0
  %4334 = vmatprep.subr.mxu0 0.0
  %4335 = vmatpush1.msra.mxu0 0.0
  %4336 = vmatprep.subr.mxu0 0.0
  %4337 = vmatpush1.msra.mxu0 0.0
  %4338 = vmatprep.subr.mxu0 0.0
  %4339 = vmatpush1.msra.mxu0 0.0
  %4340 = vmatprep.subr.mxu0 0.0
  %4341 = vmatpush1.msra.mxu0 0.0
  %4342 = vmatprep.subr.mxu0 0.0
  %4343 = vmatpush1.msra.mxu0 0.0
  %4344 = vmatprep.subr.mxu0 0.0
  %4345 = vmatpush1.msra.mxu0 0.0
  %4346 = vmatprep.subr.mxu0 0.0
  %4347 = vmatpush1.msra.mxu0 0.0
  %4348 = vmatprep.subr.mxu0 0.0
  %4349 = vmatpush1.msra.mxu0 0.0
  %4350 = vmatprep.subr.mxu0 0.0
  %4351 = vmatpush1.msra.mxu0 0.0
  %4352 = vmatprep.subr.mxu0 0.0
  %4353 = vmatpush1.msra.mxu0 0.0
  %4354 = vmatprep.subr.mxu0 0.0
  %4355 = vmatpush1.msra.mxu0 %v4089
  %4356 = vmatprep.subr.mxu0 0.0
  %4357 = vmatpush2.msra.mxu0 0.0
  %4358 = vmatprep.subr.mxu0 0.0
  %4359 = vmatpush2.msra.mxu0 0.0
  %4360 = vmatprep.subr.mxu0 0.0
  %4361 = vmatpush2.msra.mxu0 0.0
  %4362 = vmatprep.subr.mxu0 0.0
  %4363 = vmatpush2.msra.mxu0 0.0
  %4364 = vmatprep.subr.mxu0 0.0
  %4365 = vmatpush2.msra.mxu0 0.0
  %4366 = vmatprep.subr.mxu0 0.0
  %4367 = vmatpush2.msra.mxu0 0.0
  %4368 = vmatprep.subr.mxu0 0.0
  %4369 = vmatpush2.msra.mxu0 0.0
  %4370 = vmatprep.subr.mxu0 0.0
  %4371 = vmatpush2.msra.mxu0 0.0
  %4372 = vmatprep.subr.mxu0 0.0
  %4373 = vmatpush2.msra.mxu0 0.0
  %4374 = vmatprep.subr.mxu0 0.0
  %4375 = vmatpush2.msra.mxu0 0.0
  %4376 = vmatprep.subr.mxu0 0.0
  %4377 = vmatpush2.msra.mxu0 0.0
  %4378 = vmatprep.subr.mxu0 0.0
  %4379 = vmatpush2.msra.mxu0 0.0
  %4380 = vmatprep.subr.mxu0 0.0
  %4381 = vmatpush2.msra.mxu0 0.0
  %4382 = vmatprep.subr.mxu0 0.0
  %4383 = vmatpush2.msra.mxu0 0.0
  %4384 = vmatprep.subr.mxu0 0.0
  %4385 = vmatpush2.msra.mxu0 0.0
  %4386 = vmatprep.subr.mxu0 0.0
  %4387 = vmatpush2.msra.mxu0 0.0
  %4388 = vmatprep.mubr.f32.mxu0 0.0
  %4389 = vmatmul.mubr.f32.gmra.mxu0 %v4322
  %v4390 = vpop.f32.mrf.mxu0
  %v4391 = vadd.f32 0.0, %v4390
  %v4392 = vpop.f32.mrf.mxu0
  %4393 = vdwg.mxu0
  %v4395 = vsel %vm66, %v4073, 0
  %4397 = vmatprep.subr.mxu0 0.0
  %4398 = vmatpush1.msra.mxu0 0.0
  %4399 = vmatprep.subr.mxu0 0.0
  %4400 = vmatpush1.msra.mxu0 0.0
  %4401 = vmatprep.subr.mxu0 0.0
  %4402 = vmatpush1.msra.mxu0 0.0
  %4403 = vmatprep.subr.mxu0 0.0
  %4404 = vmatpush1.msra.mxu0 0.0
  %4405 = vmatprep.subr.mxu0 0.0
  %4406 = vmatpush1.msra.mxu0 0.0
  %4407 = vmatprep.subr.mxu0 0.0
  %4408 = vmatpush1.msra.mxu0 0.0
  %4409 = vmatprep.subr.mxu0 0.0
  %4410 = vmatpush1.msra.mxu0 0.0
  %4411 = vmatprep.subr.mxu0 0.0
  %4412 = vmatpush1.msra.mxu0 0.0
  %4413 = vmatprep.subr.mxu0 0.0
  %4414 = vmatpush1.msra.mxu0 0.0
  %4415 = vmatprep.subr.mxu0 0.0
  %4416 = vmatpush1.msra.mxu0 0.0
  %4417 = vmatprep.subr.mxu0 0.0
  %4418 = vmatpush1.msra.mxu0 0.0
  %4419 = vmatprep.subr.mxu0 0.0
  %4420 = vmatpush1.msra.mxu0 0.0
  %4421 = vmatprep.subr.mxu0 0.0
  %4422 = vmatpush1.msra.mxu0 0.0
  %4423 = vmatprep.subr.mxu0 0.0
  %4424 = vmatpush1.msra.mxu0 0.0
  %4425 = vmatprep.subr.mxu0 0.0
  %4426 = vmatpush1.msra.mxu0 0.0
  %4427 = vmatprep.subr.mxu0 0.0
  %4428 = vmatpush1.msra.mxu0 %v4090
  %4429 = vmatprep.subr.mxu0 0.0
  %4430 = vmatpush2.msra.mxu0 0.0
  %4431 = vmatprep.subr.mxu0 0.0
  %4432 = vmatpush2.msra.mxu0 0.0
  %4433 = vmatprep.subr.mxu0 0.0
  %4434 = vmatpush2.msra.mxu0 0.0
  %4435 = vmatprep.subr.mxu0 0.0
  %4436 = vmatpush2.msra.mxu0 0.0
  %4437 = vmatprep.subr.mxu0 0.0
  %4438 = vmatpush2.msra.mxu0 0.0
  %4439 = vmatprep.subr.mxu0 0.0
  %4440 = vmatpush2.msra.mxu0 0.0
  %4441 = vmatprep.subr.mxu0 0.0
  %4442 = vmatpush2.msra.mxu0 0.0
  %4443 = vmatprep.subr.mxu0 0.0
  %4444 = vmatpush2.msra.mxu0 0.0
  %4445 = vmatprep.subr.mxu0 0.0
  %4446 = vmatpush2.msra.mxu0 0.0
  %4447 = vmatprep.subr.mxu0 0.0
  %4448 = vmatpush2.msra.mxu0 0.0
  %4449 = vmatprep.subr.mxu0 0.0
  %4450 = vmatpush2.msra.mxu0 0.0
  %4451 = vmatprep.subr.mxu0 0.0
  %4452 = vmatpush2.msra.mxu0 0.0
  %4453 = vmatprep.subr.mxu0 0.0
  %4454 = vmatpush2.msra.mxu0 0.0
  %4455 = vmatprep.subr.mxu0 0.0
  %4456 = vmatpush2.msra.mxu0 0.0
  %4457 = vmatprep.subr.mxu0 0.0
  %4458 = vmatpush2.msra.mxu0 0.0
  %4459 = vmatprep.subr.mxu0 0.0
  %4460 = vmatpush2.msra.mxu0 0.0
  %4461 = vmatprep.mubr.f32.mxu0 0.0
  %4462 = vmatmul.mubr.f32.gmra.mxu0 %v4395
  %v4463 = vpop.f32.mrf.mxu0
  %v4464 = vadd.f32 0.0, %v4463
  %v4465 = vpop.f32.mrf.mxu0
  %4466 = vdwg.mxu0
  %v4468 = vsel %vm66, %v4074, 0
  %4470 = vmatprep.subr.mxu0 0.0
  %4471 = vmatpush1.msra.mxu0 0.0
  %4472 = vmatprep.subr.mxu0 0.0
  %4473 = vmatpush1.msra.mxu0 0.0
  %4474 = vmatprep.subr.mxu0 0.0
  %4475 = vmatpush1.msra.mxu0 0.0
  %4476 = vmatprep.subr.mxu0 0.0
  %4477 = vmatpush1.msra.mxu0 0.0
  %4478 = vmatprep.subr.mxu0 0.0
  %4479 = vmatpush1.msra.mxu0 0.0
  %4480 = vmatprep.subr.mxu0 0.0
  %4481 = vmatpush1.msra.mxu0 0.0
  %4482 = vmatprep.subr.mxu0 0.0
  %4483 = vmatpush1.msra.mxu0 0.0
  %4484 = vmatprep.subr.mxu0 0.0
  %4485 = vmatpush1.msra.mxu0 0.0
  %4486 = vmatprep.subr.mxu0 0.0
  %4487 = vmatpush1.msra.mxu0 0.0
  %4488 = vmatprep.subr.mxu0 0.0
  %4489 = vmatpush1.msra.mxu0 0.0
  %4490 = vmatprep.subr.mxu0 0.0
  %4491 = vmatpush1.msra.mxu0 0.0
  %4492 = vmatprep.subr.mxu0 0.0
  %4493 = vmatpush1.msra.mxu0 0.0
  %4494 = vmatprep.subr.mxu0 0.0
  %4495 = vmatpush1.msra.mxu0 0.0
  %4496 = vmatprep.subr.mxu0 0.0
  %4497 = vmatpush1.msra.mxu0 0.0
  %4498 = vmatprep.subr.mxu0 0.0
  %4499 = vmatpush1.msra.mxu0 0.0
  %4500 = vmatprep.subr.mxu0 0.0
  %4501 = vmatpush1.msra.mxu0 %v4091
  %4502 = vmatprep.subr.mxu0 0.0
  %4503 = vmatpush2.msra.mxu0 0.0
  %4504 = vmatprep.subr.mxu0 0.0
  %4505 = vmatpush2.msra.mxu0 0.0
  %4506 = vmatprep.subr.mxu0 0.0
  %4507 = vmatpush2.msra.mxu0 0.0
  %4508 = vmatprep.subr.mxu0 0.0
  %4509 = vmatpush2.msra.mxu0 0.0
  %4510 = vmatprep.subr.mxu0 0.0
  %4511 = vmatpush2.msra.mxu0 0.0
  %4512 = vmatprep.subr.mxu0 0.0
  %4513 = vmatpush2.msra.mxu0 0.0
  %4514 = vmatprep.subr.mxu0 0.0
  %4515 = vmatpush2.msra.mxu0 0.0
  %4516 = vmatprep.subr.mxu0 0.0
  %4517 = vmatpush2.msra.mxu0 0.0
  %4518 = vmatprep.subr.mxu0 0.0
  %4519 = vmatpush2.msra.mxu0 0.0
  %4520 = vmatprep.subr.mxu0 0.0
  %4521 = vmatpush2.msra.mxu0 0.0
  %4522 = vmatprep.subr.mxu0 0.0
  %4523 = vmatpush2.msra.mxu0 0.0
  %4524 = vmatprep.subr.mxu0 0.0
  %4525 = vmatpush2.msra.mxu0 0.0
  %4526 = vmatprep.subr.mxu0 0.0
  %4527 = vmatpush2.msra.mxu0 0.0
  %4528 = vmatprep.subr.mxu0 0.0
  %4529 = vmatpush2.msra.mxu0 0.0
  %4530 = vmatprep.subr.mxu0 0.0
  %4531 = vmatpush2.msra.mxu0 0.0
  %4532 = vmatprep.subr.mxu0 0.0
  %4533 = vmatpush2.msra.mxu0 0.0
  %4534 = vmatprep.mubr.f32.mxu0 0.0
  %4535 = vmatmul.mubr.f32.gmra.mxu0 %v4468
  %v4536 = vpop.f32.mrf.mxu0
  %v4537 = vadd.f32 0.0, %v4536
  %v4538 = vpop.f32.mrf.mxu0
  %4539 = vdwg.mxu0
  %v4541 = vsel %vm66, %v4075, 0
  %4543 = vmatprep.subr.mxu0 0.0
  %4544 = vmatpush1.msra.mxu0 0.0
  %4545 = vmatprep.subr.mxu0 0.0
  %4546 = vmatpush1.msra.mxu0 0.0
  %4547 = vmatprep.subr.mxu0 0.0
  %4548 = vmatpush1.msra.mxu0 0.0
  %4549 = vmatprep.subr.mxu0 0.0
  %4550 = vmatpush1.msra.mxu0 0.0
  %4551 = vmatprep.subr.mxu0 0.0
  %4552 = vmatpush1.msra.mxu0 0.0
  %4553 = vmatprep.subr.mxu0 0.0
  %4554 = vmatpush1.msra.mxu0 0.0
  %4555 = vmatprep.subr.mxu0 0.0
  %4556 = vmatpush1.msra.mxu0 0.0
  %4557 = vmatprep.subr.mxu0 0.0
  %4558 = vmatpush1.msra.mxu0 0.0
  %4559 = vmatprep.subr.mxu0 0.0
  %4560 = vmatpush1.msra.mxu0 0.0
  %4561 = vmatprep.subr.mxu0 0.0
  %4562 = vmatpush1.msra.mxu0 0.0
  %4563 = vmatprep.subr.mxu0 0.0
  %4564 = vmatpush1.msra.mxu0 0.0
  %4565 = vmatprep.subr.mxu0 0.0
  %4566 = vmatpush1.msra.mxu0 0.0
  %4567 = vmatprep.subr.mxu0 0.0
  %4568 = vmatpush1.msra.mxu0 0.0
  %4569 = vmatprep.subr.mxu0 0.0
  %4570 = vmatpush1.msra.mxu0 0.0
  %4571 = vmatprep.subr.mxu0 0.0
  %4572 = vmatpush1.msra.mxu0 0.0
  %4573 = vmatprep.subr.mxu0 0.0
  %4574 = vmatpush1.msra.mxu0 %v4092
  %4575 = vmatprep.subr.mxu0 0.0
  %4576 = vmatpush2.msra.mxu0 0.0
  %4577 = vmatprep.subr.mxu0 0.0
  %4578 = vmatpush2.msra.mxu0 0.0
  %4579 = vmatprep.subr.mxu0 0.0
  %4580 = vmatpush2.msra.mxu0 0.0
  %4581 = vmatprep.subr.mxu0 0.0
  %4582 = vmatpush2.msra.mxu0 0.0
  %4583 = vmatprep.subr.mxu0 0.0
  %4584 = vmatpush2.msra.mxu0 0.0
  %4585 = vmatprep.subr.mxu0 0.0
  %4586 = vmatpush2.msra.mxu0 0.0
  %4587 = vmatprep.subr.mxu0 0.0
  %4588 = vmatpush2.msra.mxu0 0.0
  %4589 = vmatprep.subr.mxu0 0.0
  %4590 = vmatpush2.msra.mxu0 0.0
  %4591 = vmatprep.subr.mxu0 0.0
  %4592 = vmatpush2.msra.mxu0 0.0
  %4593 = vmatprep.subr.mxu0 0.0
  %4594 = vmatpush2.msra.mxu0 0.0
  %4595 = vmatprep.subr.mxu0 0.0
  %4596 = vmatpush2.msra.mxu0 0.0
  %4597 = vmatprep.subr.mxu0 0.0
  %4598 = vmatpush2.msra.mxu0 0.0
  %4599 = vmatprep.subr.mxu0 0.0
  %4600 = vmatpush2.msra.mxu0 0.0
  %4601 = vmatprep.subr.mxu0 0.0
  %4602 = vmatpush2.msra.mxu0 0.0
  %4603 = vmatprep.subr.mxu0 0.0
  %4604 = vmatpush2.msra.mxu0 0.0
  %4605 = vmatprep.subr.mxu0 0.0
  %4606 = vmatpush2.msra.mxu0 0.0
  %4607 = vmatprep.mubr.f32.mxu0 0.0
  %4608 = vmatmul.mubr.f32.gmra.mxu0 %v4541
  %v4609 = vpop.f32.mrf.mxu0
  %v4610 = vadd.f32 0.0, %v4609
  %v4611 = vpop.f32.mrf.mxu0
  %4612 = vdwg.mxu0
  %v4614 = vsel %vm66, %v4076, 0
  %4616 = vmatprep.subr.mxu0 0.0
  %4617 = vmatpush1.msra.mxu0 0.0
  %4618 = vmatprep.subr.mxu0 0.0
  %4619 = vmatpush1.msra.mxu0 0.0
  %4620 = vmatprep.subr.mxu0 0.0
  %4621 = vmatpush1.msra.mxu0 0.0
  %4622 = vmatprep.subr.mxu0 0.0
  %4623 = vmatpush1.msra.mxu0 0.0
  %4624 = vmatprep.subr.mxu0 0.0
  %4625 = vmatpush1.msra.mxu0 0.0
  %4626 = vmatprep.subr.mxu0 0.0
  %4627 = vmatpush1.msra.mxu0 0.0
  %4628 = vmatprep.subr.mxu0 0.0
  %4629 = vmatpush1.msra.mxu0 0.0
  %4630 = vmatprep.subr.mxu0 0.0
  %4631 = vmatpush1.msra.mxu0 0.0
  %4632 = vmatprep.subr.mxu0 0.0
  %4633 = vmatpush1.msra.mxu0 0.0
  %4634 = vmatprep.subr.mxu0 0.0
  %4635 = vmatpush1.msra.mxu0 0.0
  %4636 = vmatprep.subr.mxu0 0.0
  %4637 = vmatpush1.msra.mxu0 0.0
  %4638 = vmatprep.subr.mxu0 0.0
  %4639 = vmatpush1.msra.mxu0 0.0
  %4640 = vmatprep.subr.mxu0 0.0
  %4641 = vmatpush1.msra.mxu0 0.0
  %4642 = vmatprep.subr.mxu0 0.0
  %4643 = vmatpush1.msra.mxu0 0.0
  %4644 = vmatprep.subr.mxu0 0.0
  %4645 = vmatpush1.msra.mxu0 0.0
  %4646 = vmatprep.subr.mxu0 0.0
  %4647 = vmatpush1.msra.mxu0 %v4093
  %4648 = vmatprep.subr.mxu0 0.0
  %4649 = vmatpush2.msra.mxu0 0.0
  %4650 = vmatprep.subr.mxu0 0.0
  %4651 = vmatpush2.msra.mxu0 0.0
  %4652 = vmatprep.subr.mxu0 0.0
  %4653 = vmatpush2.msra.mxu0 0.0
  %4654 = vmatprep.subr.mxu0 0.0
  %4655 = vmatpush2.msra.mxu0 0.0
  %4656 = vmatprep.subr.mxu0 0.0
  %4657 = vmatpush2.msra.mxu0 0.0
  %4658 = vmatprep.subr.mxu0 0.0
  %4659 = vmatpush2.msra.mxu0 0.0
  %4660 = vmatprep.subr.mxu0 0.0
  %4661 = vmatpush2.msra.mxu0 0.0
  %4662 = vmatprep.subr.mxu0 0.0
  %4663 = vmatpush2.msra.mxu0 0.0
  %4664 = vmatprep.subr.mxu0 0.0
  %4665 = vmatpush2.msra.mxu0 0.0
  %4666 = vmatprep.subr.mxu0 0.0
  %4667 = vmatpush2.msra.mxu0 0.0
  %4668 = vmatprep.subr.mxu0 0.0
  %4669 = vmatpush2.msra.mxu0 0.0
  %4670 = vmatprep.subr.mxu0 0.0
  %4671 = vmatpush2.msra.mxu0 0.0
  %4672 = vmatprep.subr.mxu0 0.0
  %4673 = vmatpush2.msra.mxu0 0.0
  %4674 = vmatprep.subr.mxu0 0.0
  %4675 = vmatpush2.msra.mxu0 0.0
  %4676 = vmatprep.subr.mxu0 0.0
  %4677 = vmatpush2.msra.mxu0 0.0
  %4678 = vmatprep.subr.mxu0 0.0
  %4679 = vmatpush2.msra.mxu0 0.0
  %4680 = vmatprep.mubr.f32.mxu0 0.0
  %4681 = vmatmul.mubr.f32.gmra.mxu0 %v4614
  %v4682 = vpop.f32.mrf.mxu0
  %v4683 = vadd.f32 0.0, %v4682
  %v4684 = vpop.f32.mrf.mxu0
  %4685 = vdwg.mxu0
  %v4687 = vsel %vm66, %v4077, 0
  %4689 = vmatprep.subr.mxu0 0.0
  %4690 = vmatpush1.msra.mxu0 0.0
  %4691 = vmatprep.subr.mxu0 0.0
  %4692 = vmatpush1.msra.mxu0 0.0
  %4693 = vmatprep.subr.mxu0 0.0
  %4694 = vmatpush1.msra.mxu0 0.0
  %4695 = vmatprep.subr.mxu0 0.0
  %4696 = vmatpush1.msra.mxu0 0.0
  %4697 = vmatprep.subr.mxu0 0.0
  %4698 = vmatpush1.msra.mxu0 0.0
  %4699 = vmatprep.subr.mxu0 0.0
  %4700 = vmatpush1.msra.mxu0 0.0
  %4701 = vmatprep.subr.mxu0 0.0
  %4702 = vmatpush1.msra.mxu0 0.0
  %4703 = vmatprep.subr.mxu0 0.0
  %4704 = vmatpush1.msra.mxu0 0.0
  %4705 = vmatprep.subr.mxu0 0.0
  %4706 = vmatpush1.msra.mxu0 0.0
  %4707 = vmatprep.subr.mxu0 0.0
  %4708 = vmatpush1.msra.mxu0 0.0
  %4709 = vmatprep.subr.mxu0 0.0
  %4710 = vmatpush1.msra.mxu0 0.0
  %4711 = vmatprep.subr.mxu0 0.0
  %4712 = vmatpush1.msra.mxu0 0.0
  %4713 = vmatprep.subr.mxu0 0.0
  %4714 = vmatpush1.msra.mxu0 0.0
  %4715 = vmatprep.subr.mxu0 0.0
  %4716 = vmatpush1.msra.mxu0 0.0
  %4717 = vmatprep.subr.mxu0 0.0
  %4718 = vmatpush1.msra.mxu0 0.0
  %4719 = vmatprep.subr.mxu0 0.0
  %4720 = vmatpush1.msra.mxu0 %v4094
  %4721 = vmatprep.subr.mxu0 0.0
  %4722 = vmatpush2.msra.mxu0 0.0
  %4723 = vmatprep.subr.mxu0 0.0
  %4724 = vmatpush2.msra.mxu0 0.0
  %4725 = vmatprep.subr.mxu0 0.0
  %4726 = vmatpush2.msra.mxu0 0.0
  %4727 = vmatprep.subr.mxu0 0.0
  %4728 = vmatpush2.msra.mxu0 0.0
  %4729 = vmatprep.subr.mxu0 0.0
  %4730 = vmatpush2.msra.mxu0 0.0
  %4731 = vmatprep.subr.mxu0 0.0
  %4732 = vmatpush2.msra.mxu0 0.0
  %4733 = vmatprep.subr.mxu0 0.0
  %4734 = vmatpush2.msra.mxu0 0.0
  %4735 = vmatprep.subr.mxu0 0.0
  %4736 = vmatpush2.msra.mxu0 0.0
  %4737 = vmatprep.subr.mxu0 0.0
  %4738 = vmatpush2.msra.mxu0 0.0
  %4739 = vmatprep.subr.mxu0 0.0
  %4740 = vmatpush2.msra.mxu0 0.0
  %4741 = vmatprep.subr.mxu0 0.0
  %4742 = vmatpush2.msra.mxu0 0.0
  %4743 = vmatprep.subr.mxu0 0.0
  %4744 = vmatpush2.msra.mxu0 0.0
  %4745 = vmatprep.subr.mxu0 0.0
  %4746 = vmatpush2.msra.mxu0 0.0
  %4747 = vmatprep.subr.mxu0 0.0
  %4748 = vmatpush2.msra.mxu0 0.0
  %4749 = vmatprep.subr.mxu0 0.0
  %4750 = vmatpush2.msra.mxu0 0.0
  %4751 = vmatprep.subr.mxu0 0.0
  %4752 = vmatpush2.msra.mxu0 0.0
  %4753 = vmatprep.mubr.f32.mxu0 0.0
  %4754 = vmatmul.mubr.f32.gmra.mxu0 %v4687
  %v4755 = vpop.f32.mrf.mxu0
  %v4756 = vadd.f32 0.0, %v4755
  %v4757 = vpop.f32.mrf.mxu0
  %4758 = vdwg.mxu0
  %v4760 = vsel %vm66, %v4078, 0
  %4762 = vmatprep.subr.mxu0 0.0
  %4763 = vmatpush1.msra.mxu0 0.0
  %4764 = vmatprep.subr.mxu0 0.0
  %4765 = vmatpush1.msra.mxu0 0.0
  %4766 = vmatprep.subr.mxu0 0.0
  %4767 = vmatpush1.msra.mxu0 0.0
  %4768 = vmatprep.subr.mxu0 0.0
  %4769 = vmatpush1.msra.mxu0 0.0
  %4770 = vmatprep.subr.mxu0 0.0
  %4771 = vmatpush1.msra.mxu0 0.0
  %4772 = vmatprep.subr.mxu0 0.0
  %4773 = vmatpush1.msra.mxu0 0.0
  %4774 = vmatprep.subr.mxu0 0.0
  %4775 = vmatpush1.msra.mxu0 0.0
  %4776 = vmatprep.subr.mxu0 0.0
  %4777 = vmatpush1.msra.mxu0 0.0
  %4778 = vmatprep.subr.mxu0 0.0
  %4779 = vmatpush1.msra.mxu0 0.0
  %4780 = vmatprep.subr.mxu0 0.0
  %4781 = vmatpush1.msra.mxu0 0.0
  %4782 = vmatprep.subr.mxu0 0.0
  %4783 = vmatpush1.msra.mxu0 0.0
  %4784 = vmatprep.subr.mxu0 0.0
  %4785 = vmatpush1.msra.mxu0 0.0
  %4786 = vmatprep.subr.mxu0 0.0
  %4787 = vmatpush1.msra.mxu0 0.0
  %4788 = vmatprep.subr.mxu0 0.0
  %4789 = vmatpush1.msra.mxu0 0.0
  %4790 = vmatprep.subr.mxu0 0.0
  %4791 = vmatpush1.msra.mxu0 0.0
  %4792 = vmatprep.subr.mxu0 0.0
  %4793 = vmatpush1.msra.mxu0 %v4095
  %4794 = vmatprep.subr.mxu0 0.0
  %4795 = vmatpush2.msra.mxu0 0.0
  %4796 = vmatprep.subr.mxu0 0.0
  %4797 = vmatpush2.msra.mxu0 0.0
  %4798 = vmatprep.subr.mxu0 0.0
  %4799 = vmatpush2.msra.mxu0 0.0
  %4800 = vmatprep.subr.mxu0 0.0
  %4801 = vmatpush2.msra.mxu0 0.0
  %4802 = vmatprep.subr.mxu0 0.0
  %4803 = vmatpush2.msra.mxu0 0.0
  %4804 = vmatprep.subr.mxu0 0.0
  %4805 = vmatpush2.msra.mxu0 0.0
  %4806 = vmatprep.subr.mxu0 0.0
  %4807 = vmatpush2.msra.mxu0 0.0
  %4808 = vmatprep.subr.mxu0 0.0
  %4809 = vmatpush2.msra.mxu0 0.0
  %4810 = vmatprep.subr.mxu0 0.0
  %4811 = vmatpush2.msra.mxu0 0.0
  %4812 = vmatprep.subr.mxu0 0.0
  %4813 = vmatpush2.msra.mxu0 0.0
  %4814 = vmatprep.subr.mxu0 0.0
  %4815 = vmatpush2.msra.mxu0 0.0
  %4816 = vmatprep.subr.mxu0 0.0
  %4817 = vmatpush2.msra.mxu0 0.0
  %4818 = vmatprep.subr.mxu0 0.0
  %4819 = vmatpush2.msra.mxu0 0.0
  %4820 = vmatprep.subr.mxu0 0.0
  %4821 = vmatpush2.msra.mxu0 0.0
  %4822 = vmatprep.subr.mxu0 0.0
  %4823 = vmatpush2.msra.mxu0 0.0
  %4824 = vmatprep.subr.mxu0 0.0
  %4825 = vmatpush2.msra.mxu0 0.0
  %4826 = vmatprep.mubr.f32.mxu0 0.0
  %4827 = vmatmul.mubr.f32.gmra.mxu0 %v4760
  %v4828 = vpop.f32.mrf.mxu0
  %v4829 = vadd.f32 0.0, %v4828
  %v4830 = vpop.f32.mrf.mxu0
  %4831 = vdwg.mxu0
  %v4833 = vsel %vm66, %v4079, 0
  %4835 = vmatprep.subr.mxu0 0.0
  %4836 = vmatpush1.msra.mxu0 0.0
  %4837 = vmatprep.subr.mxu0 0.0
  %4838 = vmatpush1.msra.mxu0 0.0
  %4839 = vmatprep.subr.mxu0 0.0
  %4840 = vmatpush1.msra.mxu0 0.0
  %4841 = vmatprep.subr.mxu0 0.0
  %4842 = vmatpush1.msra.mxu0 0.0
  %4843 = vmatprep.subr.mxu0 0.0
  %4844 = vmatpush1.msra.mxu0 0.0
  %4845 = vmatprep.subr.mxu0 0.0
  %4846 = vmatpush1.msra.mxu0 0.0
  %4847 = vmatprep.subr.mxu0 0.0
  %4848 = vmatpush1.msra.mxu0 0.0
  %4849 = vmatprep.subr.mxu0 0.0
  %4850 = vmatpush1.msra.mxu0 0.0
  %4851 = vmatprep.subr.mxu0 0.0
  %4852 = vmatpush1.msra.mxu0 0.0
  %4853 = vmatprep.subr.mxu0 0.0
  %4854 = vmatpush1.msra.mxu0 0.0
  %4855 = vmatprep.subr.mxu0 0.0
  %4856 = vmatpush1.msra.mxu0 0.0
  %4857 = vmatprep.subr.mxu0 0.0
  %4858 = vmatpush1.msra.mxu0 0.0
  %4859 = vmatprep.subr.mxu0 0.0
  %4860 = vmatpush1.msra.mxu0 0.0
  %4861 = vmatprep.subr.mxu0 0.0
  %4862 = vmatpush1.msra.mxu0 0.0
  %4863 = vmatprep.subr.mxu0 0.0
  %4864 = vmatpush1.msra.mxu0 0.0
  %4865 = vmatprep.subr.mxu0 0.0
  %4866 = vmatpush1.msra.mxu0 %v4096
  %4867 = vmatprep.subr.mxu0 0.0
  %4868 = vmatpush2.msra.mxu0 0.0
  %4869 = vmatprep.subr.mxu0 0.0
  %4870 = vmatpush2.msra.mxu0 0.0
  %4871 = vmatprep.subr.mxu0 0.0
  %4872 = vmatpush2.msra.mxu0 0.0
  %4873 = vmatprep.subr.mxu0 0.0
  %4874 = vmatpush2.msra.mxu0 0.0
  %4875 = vmatprep.subr.mxu0 0.0
  %4876 = vmatpush2.msra.mxu0 0.0
  %4877 = vmatprep.subr.mxu0 0.0
  %4878 = vmatpush2.msra.mxu0 0.0
  %4879 = vmatprep.subr.mxu0 0.0
  %4880 = vmatpush2.msra.mxu0 0.0
  %4881 = vmatprep.subr.mxu0 0.0
  %4882 = vmatpush2.msra.mxu0 0.0
  %4883 = vmatprep.subr.mxu0 0.0
  %4884 = vmatpush2.msra.mxu0 0.0
  %4885 = vmatprep.subr.mxu0 0.0
  %4886 = vmatpush2.msra.mxu0 0.0
  %4887 = vmatprep.subr.mxu0 0.0
  %4888 = vmatpush2.msra.mxu0 0.0
  %4889 = vmatprep.subr.mxu0 0.0
  %4890 = vmatpush2.msra.mxu0 0.0
  %4891 = vmatprep.subr.mxu0 0.0
  %4892 = vmatpush2.msra.mxu0 0.0
  %4893 = vmatprep.subr.mxu0 0.0
  %4894 = vmatpush2.msra.mxu0 0.0
  %4895 = vmatprep.subr.mxu0 0.0
  %4896 = vmatpush2.msra.mxu0 0.0
  %4897 = vmatprep.subr.mxu0 0.0
  %4898 = vmatpush2.msra.mxu0 0.0
  %4899 = vmatprep.mubr.f32.mxu0 0.0
  %4900 = vmatmul.mubr.f32.gmra.mxu0 %v4833
  %v4901 = vpop.f32.mrf.mxu0
  %v4902 = vadd.f32 0.0, %v4901
  %v4903 = vpop.f32.mrf.mxu0
  %4904 = vdwg.mxu0
  %v4906 = vsel %vm66, %v4080, 0
  %4908 = vmatprep.subr.mxu0 0.0
  %4909 = vmatpush1.msra.mxu0 0.0
  %4910 = vmatprep.subr.mxu0 0.0
  %4911 = vmatpush1.msra.mxu0 0.0
  %4912 = vmatprep.subr.mxu0 0.0
  %4913 = vmatpush1.msra.mxu0 0.0
  %4914 = vmatprep.subr.mxu0 0.0
  %4915 = vmatpush1.msra.mxu0 0.0
  %4916 = vmatprep.subr.mxu0 0.0
  %4917 = vmatpush1.msra.mxu0 0.0
  %4918 = vmatprep.subr.mxu0 0.0
  %4919 = vmatpush1.msra.mxu0 0.0
  %4920 = vmatprep.subr.mxu0 0.0
  %4921 = vmatpush1.msra.mxu0 0.0
  %4922 = vmatprep.subr.mxu0 0.0
  %4923 = vmatpush1.msra.mxu0 0.0
  %4924 = vmatprep.subr.mxu0 0.0
  %4925 = vmatpush1.msra.mxu0 0.0
  %4926 = vmatprep.subr.mxu0 0.0
  %4927 = vmatpush1.msra.mxu0 0.0
  %4928 = vmatprep.subr.mxu0 0.0
  %4929 = vmatpush1.msra.mxu0 0.0
  %4930 = vmatprep.subr.mxu0 0.0
  %4931 = vmatpush1.msra.mxu0 0.0
  %4932 = vmatprep.subr.mxu0 0.0
  %4933 = vmatpush1.msra.mxu0 0.0
  %4934 = vmatprep.subr.mxu0 0.0
  %4935 = vmatpush1.msra.mxu0 0.0
  %4936 = vmatprep.subr.mxu0 0.0
  %4937 = vmatpush1.msra.mxu0 0.0
  %4938 = vmatprep.subr.mxu0 0.0
  %4939 = vmatpush1.msra.mxu0 %v4097
  %4940 = vmatprep.subr.mxu0 0.0
  %4941 = vmatpush2.msra.mxu0 0.0
  %4942 = vmatprep.subr.mxu0 0.0
  %4943 = vmatpush2.msra.mxu0 0.0
  %4944 = vmatprep.subr.mxu0 0.0
  %4945 = vmatpush2.msra.mxu0 0.0
  %4946 = vmatprep.subr.mxu0 0.0
  %4947 = vmatpush2.msra.mxu0 0.0
  %4948 = vmatprep.subr.mxu0 0.0
  %4949 = vmatpush2.msra.mxu0 0.0
  %4950 = vmatprep.subr.mxu0 0.0
  %4951 = vmatpush2.msra.mxu0 0.0
  %4952 = vmatprep.subr.mxu0 0.0
  %4953 = vmatpush2.msra.mxu0 0.0
  %4954 = vmatprep.subr.mxu0 0.0
  %4955 = vmatpush2.msra.mxu0 0.0
  %4956 = vmatprep.subr.mxu0 0.0
  %4957 = vmatpush2.msra.mxu0 0.0
  %4958 = vmatprep.subr.mxu0 0.0
  %4959 = vmatpush2.msra.mxu0 0.0
  %4960 = vmatprep.subr.mxu0 0.0
  %4961 = vmatpush2.msra.mxu0 0.0
  %4962 = vmatprep.subr.mxu0 0.0
  %4963 = vmatpush2.msra.mxu0 0.0
  %4964 = vmatprep.subr.mxu0 0.0
  %4965 = vmatpush2.msra.mxu0 0.0
  %4966 = vmatprep.subr.mxu0 0.0
  %4967 = vmatpush2.msra.mxu0 0.0
  %4968 = vmatprep.subr.mxu0 0.0
  %4969 = vmatpush2.msra.mxu0 0.0
  %4970 = vmatprep.subr.mxu0 0.0
  %4971 = vmatpush2.msra.mxu0 0.0
  %4972 = vmatprep.mubr.f32.mxu0 0.0
  %4973 = vmatmul.mubr.f32.gmra.mxu0 %v4906
  %v4974 = vpop.f32.mrf.mxu0
  %v4975 = vadd.f32 0.0, %v4974
  %v4976 = vpop.f32.mrf.mxu0
  %4977 = vdwg.mxu0
  %v4979 = vsel %vm66, %v4081, 0
  %4981 = vmatprep.subr.mxu0 0.0
  %4982 = vmatpush1.msra.mxu0 0.0
  %4983 = vmatprep.subr.mxu0 0.0
  %4984 = vmatpush1.msra.mxu0 0.0
  %4985 = vmatprep.subr.mxu0 0.0
  %4986 = vmatpush1.msra.mxu0 0.0
  %4987 = vmatprep.subr.mxu0 0.0
  %4988 = vmatpush1.msra.mxu0 0.0
  %4989 = vmatprep.subr.mxu0 0.0
  %4990 = vmatpush1.msra.mxu0 0.0
  %4991 = vmatprep.subr.mxu0 0.0
  %4992 = vmatpush1.msra.mxu0 0.0
  %4993 = vmatprep.subr.mxu0 0.0
  %4994 = vmatpush1.msra.mxu0 0.0
  %4995 = vmatprep.subr.mxu0 0.0
  %4996 = vmatpush1.msra.mxu0 0.0
  %4997 = vmatprep.subr.mxu0 0.0
  %4998 = vmatpush1.msra.mxu0 0.0
  %4999 = vmatprep.subr.mxu0 0.0
  %5000 = vmatpush1.msra.mxu0 0.0
  %5001 = vmatprep.subr.mxu0 0.0
  %5002 = vmatpush1.msra.mxu0 0.0
  %5003 = vmatprep.subr.mxu0 0.0
  %5004 = vmatpush1.msra.mxu0 0.0
  %5005 = vmatprep.subr.mxu0 0.0
  %5006 = vmatpush1.msra.mxu0 0.0
  %5007 = vmatprep.subr.mxu0 0.0
  %5008 = vmatpush1.msra.mxu0 0.0
  %5009 = vmatprep.subr.mxu0 0.0
  %5010 = vmatpush1.msra.mxu0 0.0
  %5011 = vmatprep.subr.mxu0 0.0
  %5012 = vmatpush1.msra.mxu0 %v4098
  %5013 = vmatprep.subr.mxu0 0.0
  %5014 = vmatpush2.msra.mxu0 0.0
  %5015 = vmatprep.subr.mxu0 0.0
  %5016 = vmatpush2.msra.mxu0 0.0
  %5017 = vmatprep.subr.mxu0 0.0
  %5018 = vmatpush2.msra.mxu0 0.0
  %5019 = vmatprep.subr.mxu0 0.0
  %5020 = vmatpush2.msra.mxu0 0.0
  %5021 = vmatprep.subr.mxu0 0.0
  %5022 = vmatpush2.msra.mxu0 0.0
  %5023 = vmatprep.subr.mxu0 0.0
  %5024 = vmatpush2.msra.mxu0 0.0
  %5025 = vmatprep.subr.mxu0 0.0
  %5026 = vmatpush2.msra.mxu0 0.0
  %5027 = vmatprep.subr.mxu0 0.0
  %5028 = vmatpush2.msra.mxu0 0.0
  %5029 = vmatprep.subr.mxu0 0.0
  %5030 = vmatpush2.msra.mxu0 0.0
  %5031 = vmatprep.subr.mxu0 0.0
  %5032 = vmatpush2.msra.mxu0 0.0
  %5033 = vmatprep.subr.mxu0 0.0
  %5034 = vmatpush2.msra.mxu0 0.0
  %5035 = vmatprep.subr.mxu0 0.0
  %5036 = vmatpush2.msra.mxu0 0.0
  %5037 = vmatprep.subr.mxu0 0.0
  %5038 = vmatpush2.msra.mxu0 0.0
  %5039 = vmatprep.subr.mxu0 0.0
  %5040 = vmatpush2.msra.mxu0 0.0
  %5041 = vmatprep.subr.mxu0 0.0
  %5042 = vmatpush2.msra.mxu0 0.0
  %5043 = vmatprep.subr.mxu0 0.0
  %5044 = vmatpush2.msra.mxu0 0.0
  %5045 = vmatprep.mubr.f32.mxu0 0.0
  %5046 = vmatmul.mubr.f32.gmra.mxu0 %v4979
  %v5047 = vpop.f32.mrf.mxu0
  %v5048 = vadd.f32 0.0, %v5047
  %v5049 = vpop.f32.mrf.mxu0
  %5050 = vdwg.mxu0
  %v5052 = vsel %vm66, %v4082, 0
  %5054 = vmatprep.subr.mxu0 0.0
  %5055 = vmatpush1.msra.mxu0 0.0
  %5056 = vmatprep.subr.mxu0 0.0
  %5057 = vmatpush1.msra.mxu0 0.0
  %5058 = vmatprep.subr.mxu0 0.0
  %5059 = vmatpush1.msra.mxu0 0.0
  %5060 = vmatprep.subr.mxu0 0.0
  %5061 = vmatpush1.msra.mxu0 0.0
  %5062 = vmatprep.subr.mxu0 0.0
  %5063 = vmatpush1.msra.mxu0 0.0
  %5064 = vmatprep.subr.mxu0 0.0
  %5065 = vmatpush1.msra.mxu0 0.0
  %5066 = vmatprep.subr.mxu0 0.0
  %5067 = vmatpush1.msra.mxu0 0.0
  %5068 = vmatprep.subr.mxu0 0.0
  %5069 = vmatpush1.msra.mxu0 0.0
  %5070 = vmatprep.subr.mxu0 0.0
  %5071 = vmatpush1.msra.mxu0 0.0
  %5072 = vmatprep.subr.mxu0 0.0
  %5073 = vmatpush1.msra.mxu0 0.0
  %5074 = vmatprep.subr.mxu0 0.0
  %5075 = vmatpush1.msra.mxu0 0.0
  %5076 = vmatprep.subr.mxu0 0.0
  %5077 = vmatpush1.msra.mxu0 0.0
  %5078 = vmatprep.subr.mxu0 0.0
  %5079 = vmatpush1.msra.mxu0 0.0
  %5080 = vmatprep.subr.mxu0 0.0
  %5081 = vmatpush1.msra.mxu0 0.0
  %5082 = vmatprep.subr.mxu0 0.0
  %5083 = vmatpush1.msra.mxu0 0.0
  %5084 = vmatprep.subr.mxu0 0.0
  %5085 = vmatpush1.msra.mxu0 %v4099
  %5086 = vmatprep.subr.mxu0 0.0
  %5087 = vmatpush2.msra.mxu0 0.0
  %5088 = vmatprep.subr.mxu0 0.0
  %5089 = vmatpush2.msra.mxu0 0.0
  %5090 = vmatprep.subr.mxu0 0.0
  %5091 = vmatpush2.msra.mxu0 0.0
  %5092 = vmatprep.subr.mxu0 0.0
  %5093 = vmatpush2.msra.mxu0 0.0
  %5094 = vmatprep.subr.mxu0 0.0
  %5095 = vmatpush2.msra.mxu0 0.0
  %5096 = vmatprep.subr.mxu0 0.0
  %5097 = vmatpush2.msra.mxu0 0.0
  %5098 = vmatprep.subr.mxu0 0.0
  %5099 = vmatpush2.msra.mxu0 0.0
  %5100 = vmatprep.subr.mxu0 0.0
  %5101 = vmatpush2.msra.mxu0 0.0
  %5102 = vmatprep.subr.mxu0 0.0
  %5103 = vmatpush2.msra.mxu0 0.0
  %5104 = vmatprep.subr.mxu0 0.0
  %5105 = vmatpush2.msra.mxu0 0.0
  %5106 = vmatprep.subr.mxu0 0.0
  %5107 = vmatpush2.msra.mxu0 0.0
  %5108 = vmatprep.subr.mxu0 0.0
  %5109 = vmatpush2.msra.mxu0 0.0
  %5110 = vmatprep.subr.mxu0 0.0
  %5111 = vmatpush2.msra.mxu0 0.0
  %5112 = vmatprep.subr.mxu0 0.0
  %5113 = vmatpush2.msra.mxu0 0.0
  %5114 = vmatprep.subr.mxu0 0.0
  %5115 = vmatpush2.msra.mxu0 0.0
  %5116 = vmatprep.subr.mxu0 0.0
  %5117 = vmatpush2.msra.mxu0 0.0
  %5118 = vmatprep.mubr.f32.mxu0 0.0
  %5119 = vmatmul.mubr.f32.gmra.mxu0 %v5052
  %v5120 = vpop.f32.mrf.mxu0
  %v5121 = vadd.f32 0.0, %v5120
  %v5122 = vpop.f32.mrf.mxu0
  %5123 = vdwg.mxu0
  %v5125 = vsel %vm66, %v4083, 0
  %5127 = vmatprep.subr.mxu0 0.0
  %5128 = vmatpush1.msra.mxu0 0.0
  %5129 = vmatprep.subr.mxu0 0.0
  %5130 = vmatpush1.msra.mxu0 0.0
  %5131 = vmatprep.subr.mxu0 0.0
  %5132 = vmatpush1.msra.mxu0 0.0
  %5133 = vmatprep.subr.mxu0 0.0
  %5134 = vmatpush1.msra.mxu0 0.0
  %5135 = vmatprep.subr.mxu0 0.0
  %5136 = vmatpush1.msra.mxu0 0.0
  %5137 = vmatprep.subr.mxu0 0.0
  %5138 = vmatpush1.msra.mxu0 0.0
  %5139 = vmatprep.subr.mxu0 0.0
  %5140 = vmatpush1.msra.mxu0 0.0
  %5141 = vmatprep.subr.mxu0 0.0
  %5142 = vmatpush1.msra.mxu0 0.0
  %5143 = vmatprep.subr.mxu0 0.0
  %5144 = vmatpush1.msra.mxu0 0.0
  %5145 = vmatprep.subr.mxu0 0.0
  %5146 = vmatpush1.msra.mxu0 0.0
  %5147 = vmatprep.subr.mxu0 0.0
  %5148 = vmatpush1.msra.mxu0 0.0
  %5149 = vmatprep.subr.mxu0 0.0
  %5150 = vmatpush1.msra.mxu0 0.0
  %5151 = vmatprep.subr.mxu0 0.0
  %5152 = vmatpush1.msra.mxu0 0.0
  %5153 = vmatprep.subr.mxu0 0.0
  %5154 = vmatpush1.msra.mxu0 0.0
  %5155 = vmatprep.subr.mxu0 0.0
  %5156 = vmatpush1.msra.mxu0 0.0
  %5157 = vmatprep.subr.mxu0 0.0
  %5158 = vmatpush1.msra.mxu0 %v4100
  %5159 = vmatprep.subr.mxu0 0.0
  %5160 = vmatpush2.msra.mxu0 0.0
  %5161 = vmatprep.subr.mxu0 0.0
  %5162 = vmatpush2.msra.mxu0 0.0
  %5163 = vmatprep.subr.mxu0 0.0
  %5164 = vmatpush2.msra.mxu0 0.0
  %5165 = vmatprep.subr.mxu0 0.0
  %5166 = vmatpush2.msra.mxu0 0.0
  %5167 = vmatprep.subr.mxu0 0.0
  %5168 = vmatpush2.msra.mxu0 0.0
  %5169 = vmatprep.subr.mxu0 0.0
  %5170 = vmatpush2.msra.mxu0 0.0
  %5171 = vmatprep.subr.mxu0 0.0
  %5172 = vmatpush2.msra.mxu0 0.0
  %5173 = vmatprep.subr.mxu0 0.0
  %5174 = vmatpush2.msra.mxu0 0.0
  %5175 = vmatprep.subr.mxu0 0.0
  %5176 = vmatpush2.msra.mxu0 0.0
  %5177 = vmatprep.subr.mxu0 0.0
  %5178 = vmatpush2.msra.mxu0 0.0
  %5179 = vmatprep.subr.mxu0 0.0
  %5180 = vmatpush2.msra.mxu0 0.0
  %5181 = vmatprep.subr.mxu0 0.0
  %5182 = vmatpush2.msra.mxu0 0.0
  %5183 = vmatprep.subr.mxu0 0.0
  %5184 = vmatpush2.msra.mxu0 0.0
  %5185 = vmatprep.subr.mxu0 0.0
  %5186 = vmatpush2.msra.mxu0 0.0
  %5187 = vmatprep.subr.mxu0 0.0
  %5188 = vmatpush2.msra.mxu0 0.0
  %5189 = vmatprep.subr.mxu0 0.0
  %5190 = vmatpush2.msra.mxu0 0.0
  %5191 = vmatprep.mubr.f32.mxu0 0.0
  %5192 = vmatmul.mubr.f32.gmra.mxu0 %v5125
  %v5193 = vpop.f32.mrf.mxu0
  %v5194 = vadd.f32 0.0, %v5193
  %v5195 = vpop.f32.mrf.mxu0
  %5196 = vdwg.mxu0
  %v5198 = vsel %vm66, %v4084, 0
  %5200 = vmatprep.subr.mxu0 0.0
  %5201 = vmatpush1.msra.mxu0 0.0
  %5202 = vmatprep.subr.mxu0 0.0
  %5203 = vmatpush1.msra.mxu0 0.0
  %5204 = vmatprep.subr.mxu0 0.0
  %5205 = vmatpush1.msra.mxu0 0.0
  %5206 = vmatprep.subr.mxu0 0.0
  %5207 = vmatpush1.msra.mxu0 0.0
  %5208 = vmatprep.subr.mxu0 0.0
  %5209 = vmatpush1.msra.mxu0 0.0
  %5210 = vmatprep.subr.mxu0 0.0
  %5211 = vmatpush1.msra.mxu0 0.0
  %5212 = vmatprep.subr.mxu0 0.0
  %5213 = vmatpush1.msra.mxu0 0.0
  %5214 = vmatprep.subr.mxu0 0.0
  %5215 = vmatpush1.msra.mxu0 0.0
  %5216 = vmatprep.subr.mxu0 0.0
  %5217 = vmatpush1.msra.mxu0 0.0
  %5218 = vmatprep.subr.mxu0 0.0
  %5219 = vmatpush1.msra.mxu0 0.0
  %5220 = vmatprep.subr.mxu0 0.0
  %5221 = vmatpush1.msra.mxu0 0.0
  %5222 = vmatprep.subr.mxu0 0.0
  %5223 = vmatpush1.msra.mxu0 0.0
  %5224 = vmatprep.subr.mxu0 0.0
  %5225 = vmatpush1.msra.mxu0 0.0
  %5226 = vmatprep.subr.mxu0 0.0
  %5227 = vmatpush1.msra.mxu0 0.0
  %5228 = vmatprep.subr.mxu0 0.0
  %5229 = vmatpush1.msra.mxu0 0.0
  %5230 = vmatprep.subr.mxu0 0.0
  %5231 = vmatpush1.msra.mxu0 %v4101
  %5232 = vmatprep.subr.mxu0 0.0
  %5233 = vmatpush2.msra.mxu0 0.0
  %5234 = vmatprep.subr.mxu0 0.0
  %5235 = vmatpush2.msra.mxu0 0.0
  %5236 = vmatprep.subr.mxu0 0.0
  %5237 = vmatpush2.msra.mxu0 0.0
  %5238 = vmatprep.subr.mxu0 0.0
  %5239 = vmatpush2.msra.mxu0 0.0
  %5240 = vmatprep.subr.mxu0 0.0
  %5241 = vmatpush2.msra.mxu0 0.0
  %5242 = vmatprep.subr.mxu0 0.0
  %5243 = vmatpush2.msra.mxu0 0.0
  %5244 = vmatprep.subr.mxu0 0.0
  %5245 = vmatpush2.msra.mxu0 0.0
  %5246 = vmatprep.subr.mxu0 0.0
  %5247 = vmatpush2.msra.mxu0 0.0
  %5248 = vmatprep.subr.mxu0 0.0
  %5249 = vmatpush2.msra.mxu0 0.0
  %5250 = vmatprep.subr.mxu0 0.0
  %5251 = vmatpush2.msra.mxu0 0.0
  %5252 = vmatprep.subr.mxu0 0.0
  %5253 = vmatpush2.msra.mxu0 0.0
  %5254 = vmatprep.subr.mxu0 0.0
  %5255 = vmatpush2.msra.mxu0 0.0
  %5256 = vmatprep.subr.mxu0 0.0
  %5257 = vmatpush2.msra.mxu0 0.0
  %5258 = vmatprep.subr.mxu0 0.0
  %5259 = vmatpush2.msra.mxu0 0.0
  %5260 = vmatprep.subr.mxu0 0.0
  %5261 = vmatpush2.msra.mxu0 0.0
  %5262 = vmatprep.subr.mxu0 0.0
  %5263 = vmatpush2.msra.mxu0 0.0
  %5264 = vmatprep.mubr.f32.mxu0 0.0
  %5265 = vmatmul.mubr.f32.gmra.mxu0 %v5198
  %v5266 = vpop.f32.mrf.mxu0
  %v5267 = vadd.f32 0.0, %v5266
  %v5268 = vpop.f32.mrf.mxu0
  %5269 = vdwg.mxu0
  %5286 = vrot.lane.b32.xlu0 %v4172, 8
  %v5287 = vpop.permute.xlu0 %5286
  %5288 = vrot.lane.b32.xlu0 %v4245, 8
  %v5289 = vpop.permute.xlu0 %5288
  %5290 = vrot.lane.b32.xlu0 %v4318, 8
  %v5291 = vpop.permute.xlu0 %5290
  %5292 = vrot.lane.b32.xlu0 %v4391, 8
  %v5293 = vpop.permute.xlu0 %5292
  %5294 = vrot.lane.b32.xlu0 %v4464, 8
  %v5295 = vpop.permute.xlu0 %5294
  %5296 = vrot.lane.b32.xlu0 %v4537, 8
  %v5297 = vpop.permute.xlu0 %5296
  %5298 = vrot.lane.b32.xlu0 %v4610, 8
  %v5299 = vpop.permute.xlu0 %5298
  %5300 = vrot.lane.b32.xlu0 %v4683, 8
  %v5301 = vpop.permute.xlu0 %5300
  %5302 = vrot.lane.b32.xlu0 %v4756, 8
  %v5303 = vpop.permute.xlu0 %5302
  %5304 = vrot.lane.b32.xlu0 %v4829, 8
  %v5305 = vpop.permute.xlu0 %5304
  %5306 = vrot.lane.b32.xlu0 %v4902, 8
  %v5307 = vpop.permute.xlu0 %5306
  %5308 = vrot.lane.b32.xlu0 %v4975, 8
  %v5309 = vpop.permute.xlu0 %5308
  %5310 = vrot.lane.b32.xlu0 %v5048, 8
  %v5311 = vpop.permute.xlu0 %5310
  %5312 = vrot.lane.b32.xlu0 %v5121, 8
  %v5313 = vpop.permute.xlu0 %5312
  %5314 = vrot.lane.b32.xlu0 %v5194, 8
  %v5315 = vpop.permute.xlu0 %5314
  %5316 = vrot.lane.b32.xlu0 %v5267, 8
  %v5317 = vpop.permute.xlu0 %5316
  %v5334 = vsel %vm66, %v1545, %v5287
  %v5335 = vsel %vm66, %v1618, %v5289
  %v5336 = vsel %vm66, %v1691, %v5291
  %v5337 = vsel %vm66, %v1764, %v5293
  %v5338 = vsel %vm66, %v1837, %v5295
  %v5339 = vsel %vm66, %v1910, %v5297
  %v5340 = vsel %vm66, %v1983, %v5299
  %v5341 = vsel %vm66, %v2056, %v5301
  %v5342 = vsel %vm66, %v2129, %v5303
  %v5343 = vsel %vm66, %v2202, %v5305
  %v5344 = vsel %vm66, %v2275, %v5307
  %v5345 = vsel %vm66, %v2348, %v5309
  %v5346 = vsel %vm66, %v2421, %v5311
  %v5347 = vsel %vm66, %v2494, %v5313
  %v5348 = vsel %vm66, %v2567, %v5315
  %v5349 = vsel %vm66, %v2640, %v5317
  %vm5350 = vcmask 130048
  %5351 = vst.msk [vmem:[%s4] sm:$0xff] %vm5350, %v5334
  %5352 = vst.msk [vmem:[%s4 + $0x8] sm:$0xff] %vm5350, %v5335
  %5353 = vst.msk [vmem:[%s4 + $0x10] sm:$0xff] %vm5350, %v5336
  %5354 = vst.msk [vmem:[%s4 + $0x18] sm:$0xff] %vm5350, %v5337
  %5355 = vst.msk [vmem:[%s4 + $0x20] sm:$0xff] %vm5350, %v5338
  %5356 = vst.msk [vmem:[%s4 + $0x28] sm:$0xff] %vm5350, %v5339
  %5357 = vst.msk [vmem:[%s4 + $0x30] sm:$0xff] %vm5350, %v5340
  %5358 = vst.msk [vmem:[%s4 + $0x38] sm:$0xff] %vm5350, %v5341
  %5359 = vst.msk [vmem:[%s4 + $0x40] sm:$0xff] %vm5350, %v5342
  %5360 = vst.msk [vmem:[%s4 + $0x48] sm:$0xff] %vm5350, %v5343
  %5361 = vst.msk [vmem:[%s4 + $0x50] sm:$0xff] %vm5350, %v5344
  %5362 = vst.msk [vmem:[%s4 + $0x58] sm:$0xff] %vm5350, %v5345
  %5363 = vst.msk [vmem:[%s4 + $0x60] sm:$0xff] %vm5350, %v5346
  %5364 = vst.msk [vmem:[%s4 + $0x68] sm:$0xff] %vm5350, %v5347
  %5365 = vst.msk [vmem:[%s4 + $0x70] sm:$0xff] %vm5350, %v5348
  %5366 = vst.msk [vmem:[%s4 + $0x78] sm:$0xff] %vm5350, %v5349
  // Predicated region
  $region18: #{window_attention.4} parent=0 // pred_check
    _
  $region19: #{window_attention.4} parent=0 // pred_check_branch
    %5368 = sbr.rel (0) target = $region21
  $region20: #{window_attention.4} parent=0 // pred_region
    _
  $region21: #{window_attention.4} parent=0 // pred_fallthru
    _
  // Predicated region
  $region22: #{window_attention.4} parent=0 // pred_check
    _
  $region23: #{window_attention.4} parent=0 // pred_check_branch
    %5370 = sbr.rel (0) target = $region25
  $region24: #{window_attention.4} parent=0 // pred_region
    _
  $region25: #{window_attention.4} parent=0 // pred_fallthru
    _

</llo_original>
